<compile_context>
chip_gen: v5e
topology: v5e:2x2
jax: 0.10.0
libtpu: 0.0.40
codegen_flags: <defaults>
</compile_context>

<pallas_src>
import math

import jax
import jax.numpy as jnp
from jax.experimental import pallas as pl
from jax.experimental.pallas import tpu as pltpu

_C_PAD = 16                      # channel padding (multiple of 8 sublanes)
_INV_SQRT2 = 0.7071067811865476
_TAN_3PI_8 = 2.414213562373095   # tan(3*pi/8)
_TAN_PI_8 = 0.4142135623730951   # tan(pi/8)


def _gelu(x):
    # exact (erf-based) GELU -- matches torch.nn.GELU() default (approximate='none')
    return 0.5 * x * (1.0 + jax.lax.erf(x * _INV_SQRT2))


def _atan(x):
    # TODO(synk): Mosaic has no native atan lowering; this is the Cephes atanf
    # branchless range-reduced polynomial (few-ulp f32 accuracy).  The two divides
    # are expressed with pl.reciprocal so they run on the EUP slot, not the VALU.
    t = jnp.abs(x)
    big = t > _TAN_3PI_8
    mid = t > _TAN_PI_8
    inv_t = pl.reciprocal(t)            # inf at t == 0, selected away below
    inv_t1 = pl.reciprocal(t + 1.0)
    xr = jnp.where(big, -inv_t, jnp.where(mid, (t - 1.0) * inv_t1, t))
    y0 = jnp.where(big, 0.5 * math.pi, jnp.where(mid, 0.25 * math.pi, 0.0))
    z = xr * xr
    p = (((8.05374449538e-2 * z - 1.38776856032e-1) * z + 1.99777106478e-1) * z
         - 3.33329491539e-1)
    r = y0 + (p * z * xr + xr)
    return jnp.where(x < 0, -r, r)


def _make_kernel(width, n_lanes, row_stride, n_conv):
    """width: W, n_lanes: H*Bb*W, row_stride: Bb*W, n_conv: 2 + 2*num_res_blocks."""
    num_res = (n_conv - 2) // 2

    def kernel(x_ref, w_ref, b_ref, out_ref, stage_ref):
        # Wrap masks for the circular W shift: generated in-kernel (no col-index
        # input / DMA) and hoisted once per grid step out of all 8 convs.
        col = jax.lax.broadcasted_iota(jnp.int32, (1, n_lanes), 1) % width
        m_first = col == 0
        m_last = col == width - 1

        def conv(x, idx):
            # --- circular column (W) shifts on the flat (H, Bb, W) lane axis ---
            # roll by -/+1 covers interior columns; the wrap column is fixed by
            # selecting the +/-(W-1) roll (which stays inside the same image row).
            s_p1 = jnp.where(m_last,
                             pltpu.roll(x, width - 1, 1),
                             pltpu.roll(x, n_lanes - 1, 1))        # x[.., (j+1)%W]
            s_m1 = jnp.where(m_first,
                             pltpu.roll(x, n_lanes - (width - 1), 1),
                             pltpu.roll(x, 1, 1))                  # x[.., (j-1)%W]

            # --- stage the 3 column variants at 16-row-aligned offsets (unmasked) ---
            stage_ref[0 * _C_PAD:1 * _C_PAD, :] = s_m1
            stage_ref[1 * _C_PAD:2 * _C_PAD, :] = x
            stage_ref[2 * _C_PAD:3 * _C_PAD, :] = s_p1

            # --- ONE fused MXU matmul per conv; weights read at point of use ---
            z = jnp.dot(w_ref[idx], stage_ref[...],
                        preferred_element_type=jnp.float32)        # (48, N)

            # --- circular row (H) shifts on the per-di output blocks ---
            # lane axis is (H, Bb, W): rolling by +-row_stride is an exact circular
            # H shift for every image (batch interleaved inside each row).
            y = (z[1 * _C_PAD:2 * _C_PAD]
                 + pltpu.roll(z[0 * _C_PAD:1 * _C_PAD], row_stride, 1)
                 + pltpu.roll(z[2 * _C_PAD:3 * _C_PAD], n_lanes - row_stride, 1))
            return y + b_ref[idx]

        # initial conv (input already channel-concatenated & zero-padded to 16)
        x = _gelu(conv(x_ref[...], 0))
        # residual blocks
        for r in range(num_res):
            identity = x
            h = _gelu(conv(x, 1 + 2 * r))
            x = _gelu(conv(h, 2 + 2 * r) + identity)
        # final conv + GELU + fused arctan / pi / 2 epilogue
        x = _gelu(conv(x, n_conv - 1))
        out_ref[...] = (_atan(x) * (0.5 / math.pi)).astype(out_ref.dtype)

    return kernel


# ---------------------------------------------------------------------------
# Parameter construction (deterministic, PyTorch-default-like uniform init)
# ---------------------------------------------------------------------------
def _conv_init(key, cin, cout):
    k_w, k_b = jax.random.split(key)
    bound = 1.0 / math.sqrt(cin * 9)
    w = jax.random.uniform(k_w, (cout, cin, 3, 3), jnp.float32, -bound, bound)
    b = jax.random.uniform(k_b, (cout,), jnp.float32, -bound, bound)
    return w, b   # torch layout: (Cout, Cin, kH, kW)


def _pack_conv(w, b):
    """torch (Cout, Cin, 3, 3) -> fused (3*C_PAD, 3*C_PAD) with
    W_fused[(di+1)*16 + co, (dj+1)*16 + ci] = w[co, ci, di+1, dj+1], zero-padded."""
    cout, cin = w.shape[:2]
    w_t = jnp.transpose(w, (2, 0, 3, 1))                     # (3, Cout, 3, Cin)
    wp = jnp.zeros((3, _C_PAD, 3, _C_PAD), jnp.float32)
    wp = wp.at[:, :cout, :, :cin].set(w_t)
    bp = jnp.zeros((_C_PAD,), jnp.float32).at[:cout].set(b)
    return wp.reshape(3 * _C_PAD, 3 * _C_PAD), bp.reshape(_C_PAD, 1)


def build_params(key, plaq_input_channels=2, rect_input_channels=4,
                 plaq_output_channels=4, rect_output_channels=8,
                 num_res_blocks=3):
    c_in = plaq_input_channels + rect_input_channels          # 6
    c_mid = c_in * 2                                          # 12
    c_out = plaq_output_channels + rect_output_channels       # 12

    keys = jax.random.split(key, 2 + 2 * num_res_blocks)
    convs = [_conv_init(keys[0], c_in, c_mid)]
    for r in range(num_res_blocks):
        convs.append(_conv_init(keys[1 + 2 * r], c_mid, c_mid))
        convs.append(_conv_init(keys[2 + 2 * r], c_mid, c_mid))
    convs.append(_conv_init(keys[-1], c_mid, c_out))

    ws, bs = zip(*[_pack_conv(w, b) for (w, b) in convs])
    packed = (jnp.stack(ws), jnp.stack(bs))     # (n_conv, 48, 48), (n_conv, 16, 1)
    return packed, convs                        # fused params, torch-layout pairs


# ---------------------------------------------------------------------------
# Wrapper
# ---------------------------------------------------------------------------
def joint_cnn_rnet_forward(plaq_features, rect_features, packed_params,
                           plaq_output_channels=4, rect_output_channels=8,
                           block_batch=None):
    """plaq_features: (B, 2, H, W), rect_features: (B, 4, H, W) -- NCHW like torch."""
    w_all, b_all = packed_params
    n_conv = w_all.shape[0]
    B, c_plaq, H, W = plaq_features.shape
    c_rect = rect_features.shape[1]
    c_in = c_plaq + c_rect
    c_out = plaq_output_channels + rect_output_channels
    assert c_in <= _C_PAD and c_out <= _C_PAD

    # Batch block per grid step; keep >= 2 grid steps so both v7x TCs get work.
    if block_batch is None:
        bb = max(1, min(4, B // 2)) if B >= 2 else 1
    else:
        bb = max(1, min(block_batch, B))
    nb = -(-B // bb)
    b_pad = nb * bb

    # torch.cat([plaq, rect], dim=1); zero-pad channels to 16 and batch to nb*bb.
    x = jnp.concatenate([plaq_features, rect_features], axis=1).astype(jnp.float32)
    x = jnp.pad(x, ((0, b_pad - B), (0, _C_PAD - c_in), (0, 0), (0, 0)))
    # Interleave the bb images of a grid step along W so the flat lane axis is
    # (H, bb, W): H rolls by bb*W stay exact, W rolls stay per-image.
    x = x.reshape(nb, bb, _C_PAD, H, W).transpose(0, 2, 3, 1, 4)
    n_lanes = H * bb * W
    x = x.reshape(nb, _C_PAD, n_lanes)

    out = pl.pallas_call(
        _make_kernel(W, n_lanes, bb * W, n_conv),
        out_shape=jax.ShapeDtypeStruct((nb, _C_PAD, n_lanes), jnp.float32),
        grid=(nb,),
        in_specs=[
            pl.BlockSpec((None, _C_PAD, n_lanes), lambda g: (g, 0, 0)),
            pl.BlockSpec(w_all.shape, lambda g: (0, 0, 0)),
            pl.BlockSpec(b_all.shape, lambda g: (0, 0, 0)),
        ],
        out_specs=pl.BlockSpec((None, _C_PAD, n_lanes), lambda g: (g, 0, 0)),
        scratch_shapes=[pltpu.VMEM((3 * _C_PAD, n_lanes), jnp.float32)],
        compiler_params=pltpu.CompilerParams(dimension_semantics=("parallel",)),
    )(x, w_all, b_all)

    # Un-interleave: (nb, 16, H, bb, W) -> (B, 16, H, W), then drop padding.
    y = out.reshape(nb, _C_PAD, H, bb, W).transpose(0, 3, 1, 2, 4)
    y = y.reshape(b_pad, _C_PAD, H, W)[:B, :c_out]
    return y[:, :plaq_output_channels], y[:, plaq_output_channels:]


# ---------------------------------------------------------------------------
# Pure-JAX/XLA reference of the torch module (for correctness check)
# ---------------------------------------------------------------------------
def _ref_conv(x, w, b):
    xp = jnp.pad(x, ((0, 0), (0, 0), (1, 1), (1, 1)), mode='wrap')
    y = jax.lax.conv_general_dilated(
        xp, w, window_strides=(1, 1), padding='VALID',
        dimension_numbers=('NCHW', 'OIHW', 'NCHW'))
    return y + b.reshape(1, -1, 1, 1)


def _ref_forward(plaq, rect, torch_params, plaq_output_channels=4):
    x = jnp.concatenate([plaq, rect], axis=1).astype(jnp.float32)
    w0, b0 = torch_params[0]
    x = _gelu(_ref_conv(x, w0, b0))
    n_res = (len(torch_params) - 2) // 2
    for r in range(n_res):
        wa, ba = torch_params[1 + 2 * r]
        wb, bb_ = torch_params[2 + 2 * r]
        identity = x
        h = _gelu(_ref_conv(x, wa, ba))
        x = _gelu(_ref_conv(h, wb, bb_) + identity)
    wf, bf = torch_params[-1]
    x = _gelu(_ref_conv(x, wf, bf))
    x = jnp.arctan(x) / jnp.pi / 2.0
    return x[:, :plaq_output_channels], x[:, plaq_output_channels:]


if __name__ == "__main__":
    key = jax.random.PRNGKey(0)
    k_params, k_plaq, k_rect = jax.random.split(key, 3)

    B, H, W = 2, 16, 16
    plaq = jax.random.normal(k_plaq, (B, 2, H, W), jnp.float32)
    rect = jax.random.normal(k_rect, (B, 4, H, W), jnp.float32)

    packed_params, torch_params = build_params(k_params)

    plaq_coeffs, rect_coeffs = joint_cnn_rnet_forward(plaq, rect, packed_params)
    jax.block_until_ready((plaq_coeffs, rect_coeffs))

    assert plaq_coeffs.shape == (B, 4, H, W), plaq_coeffs.shape
    assert rect_coeffs.shape == (B, 8, H, W), rect_coeffs.shape
    assert bool(jnp.all(jnp.isfinite(plaq_coeffs)))
    assert bool(jnp.all(jnp.isfinite(rect_coeffs)))
    # arctan(x)/pi/2 is bounded in (-0.25, 0.25)
    assert float(jnp.max(jnp.abs(plaq_coeffs))) < 0.25
    assert float(jnp.max(jnp.abs(rect_coeffs))) < 0.25

    # correctness vs pure-JAX reference of the PyTorch module
    ref_p, ref_r = _ref_forward(plaq, rect, torch_params)
    err_p = float(jnp.max(jnp.abs(plaq_coeffs - ref_p)))
    err_r = float(jnp.max(jnp.abs(rect_coeffs - ref_r)))
    assert err_p < 1e-4, err_p
    assert err_r < 1e-4, err_r

    print("KERNEL_OK")
</pallas_src>

<mosaic_0001>
module attributes {stable_mosaic.version = 11 : i64} {
  func.func @kernel(%arg0: i32, %arg1: memref<1x16x256xf32, #tpu.memory_space<vmem>>, %arg2: memref<8x48x48xf32, #tpu.memory_space<vmem>>, %arg3: memref<8x16x1xf32, #tpu.memory_space<vmem>>, %arg4: memref<1x16x256xf32, #tpu.memory_space<vmem>>, %arg5: memref<48x256xf32, #tpu.memory_space<vmem>>) attributes {dimension_semantics = [#tpu.dimension_semantics<parallel>], iteration_bounds = array<i64: 2>, scalar_prefetch = 0 : i64, scratch_operands = 1 : i64, tpu.core_type = #tpu.core_type<tc>, window_params = [{transform_indices = @transform_0, window_bounds = array<i64: 1, 16, 256>}, {pipeline_mode = #tpu.pipeline_mode<synchronous>, transform_indices = @transform_1, window_bounds = array<i64: 8, 48, 48>}, {pipeline_mode = #tpu.pipeline_mode<synchronous>, transform_indices = @transform_2, window_bounds = array<i64: 8, 16, 1>}, {transform_indices = @transform_3, window_bounds = array<i64: 1, 16, 256>}]} {
    %0 = tpu.iota {dimensions = array<i32: 1>} : vector<1x256xi32>
    %c16_i32 = arith.constant 16 : i32
    %c0_i32 = arith.constant 0 : i32
    %1 = arith.cmpi eq, %c16_i32, %c0_i32 : i32
    %c1_i32 = arith.constant 1 : i32
    %2 = arith.select %1, %c1_i32, %c16_i32 : i32
    %3 = vector.broadcast %2 : i32 to vector<1x256xi32>
    %4 = arith.remsi %0, %3 : vector<1x256xi32>
    %c0_i32_0 = arith.constant 0 : i32
    %5 = vector.broadcast %c0_i32_0 : i32 to vector<1x256xi32>
    %6 = arith.cmpi ne, %4, %5 : vector<1x256xi32>
    %c0_i32_1 = arith.constant 0 : i32
    %7 = vector.broadcast %c0_i32_1 : i32 to vector<1x256xi32>
    %8 = arith.cmpi slt, %4, %7 : vector<1x256xi32>
    %c0_i32_2 = arith.constant 0 : i32
    %9 = arith.cmpi slt, %2, %c0_i32_2 : i32
    %10 = vector.broadcast %9 : i1 to vector<1x256xi1>
    %11 = vector.broadcast %10 : vector<1x256xi1> to vector<1x256xi1>
    %12 = arith.xori %8, %11 : vector<1x256xi1>
    %13 = arith.andi %12, %6 : vector<1x256xi1>
    %14 = vector.broadcast %2 : i32 to vector<1x256xi32>
    %15 = arith.addi %4, %14 : vector<1x256xi32>
    %16 = arith.select %13, %15, %4 : vector<1x256xi1>, vector<1x256xi32>
    %c0_i32_3 = arith.constant 0 : i32
    %17 = vector.broadcast %c0_i32_3 : i32 to vector<1x256xi32>
    %18 = arith.cmpi eq, %16, %17 : vector<1x256xi32>
    %c15_i32 = arith.constant 15 : i32
    %19 = vector.broadcast %c15_i32 : i32 to vector<1x256xi32>
    %20 = arith.cmpi eq, %16, %19 : vector<1x256xi32>
    %c0 = arith.constant 0 : index
    %c0_4 = arith.constant 0 : index
    %c0_5 = arith.constant 0 : index
    %21 = vector.load %arg1[%c0, %c0_4, %c0_5] : memref<1x16x256xf32, #tpu.memory_space<vmem>>, vector<1x16x256xf32>
    %22 = vector.shape_cast %21 : vector<1x16x256xf32> to vector<16x256xf32>
    %c15_i32_6 = arith.constant 15 : i32
    %23 = tpu.dynamic_rotate %22 by %c15_i32_6 dim 1 : vector<16x256xf32>, i32 -> vector<16x256xf32>
    %c255_i32 = arith.constant 255 : i32
    %24 = tpu.dynamic_rotate %22 by %c255_i32 dim 1 : vector<16x256xf32>, i32 -> vector<16x256xf32>
    %25 = vector.shape_cast %20 : vector<1x256xi1> to vector<1x256xi1>
    %26 = vector.broadcast %25 : vector<1x256xi1> to vector<16x256xi1>
    %27 = arith.select %26, %23, %24 : vector<16x256xi1>, vector<16x256xf32>
    %c241_i32 = arith.constant 241 : i32
    %28 = tpu.dynamic_rotate %22 by %c241_i32 dim 1 : vector<16x256xf32>, i32 -> vector<16x256xf32>
    %c1_i32_7 = arith.constant 1 : i32
    %29 = tpu.dynamic_rotate %22 by %c1_i32_7 dim 1 : vector<16x256xf32>, i32 -> vector<16x256xf32>
    %30 = vector.shape_cast %18 : vector<1x256xi1> to vector<1x256xi1>
    %31 = vector.broadcast %30 : vector<1x256xi1> to vector<16x256xi1>
    %32 = arith.select %31, %28, %29 : vector<16x256xi1>, vector<16x256xf32>
    %c0_8 = arith.constant 0 : index
    %c0_9 = arith.constant 0 : index
    %33 = vector.load %arg5[%c0_8, %c0_9] : memref<48x256xf32, #tpu.memory_space<vmem>>, vector<16x256xf32>
    tpu.vector_store %arg5[%c0_8, %c0_9], %32 {strides = array<i32>} : memref<48x256xf32, #tpu.memory_space<vmem>>, vector<16x256xf32>,
    %c16 = arith.constant 16 : index
    %c0_10 = arith.constant 0 : index
    %34 = vector.load %arg5[%c16, %c0_10] : memref<48x256xf32, #tpu.memory_space<vmem>>, vector<16x256xf32>
    tpu.vector_store %arg5[%c16, %c0_10], %22 {strides = array<i32>} : memref<48x256xf32, #tpu.memory_space<vmem>>, vector<16x256xf32>,
    %c32 = arith.constant 32 : index
    %c0_11 = arith.constant 0 : index
    %35 = vector.load %arg5[%c32, %c0_11] : memref<48x256xf32, #tpu.memory_space<vmem>>, vector<16x256xf32>
    tpu.vector_store %arg5[%c32, %c0_11], %27 {strides = array<i32>} : memref<48x256xf32, #tpu.memory_space<vmem>>, vector<16x256xf32>,
    %c0_12 = arith.constant 0 : index
    %c0_13 = arith.constant 0 : index
    %c0_14 = arith.constant 0 : index
    %36 = vector.load %arg2[%c0_12, %c0_13, %c0_14] : memref<8x48x48xf32, #tpu.memory_space<vmem>>, vector<1x48x48xf32>
    %37 = vector.shape_cast %36 : vector<1x48x48xf32> to vector<48x48xf32>
    %c0_15 = arith.constant 0 : index
    %c0_16 = arith.constant 0 : index
    %38 = vector.load %arg5[%c0_15, %c0_16] : memref<48x256xf32, #tpu.memory_space<vmem>>, vector<48x256xf32>
    %cst = arith.constant dense<0.000000e+00> : vector<48x256xf32>
    %39 = tpu.matmul %37, %38, %cst {dimension_numbers = #tpu.dot_dimension_numbers<[1], [0], [0], [1], [0, 0, 1, 1], [], []>} : vector<48x48xf32>, vector<48x256xf32>, vector<48x256xf32> -> vector<48x256xf32>
    %40 = vector.extract_strided_slice %39 {offsets = [16, 0], sizes = [16, 256], strides = [1, 1]} : vector<48x256xf32> to vector<16x256xf32>
    %41 = vector.extract_strided_slice %39 {offsets = [0, 0], sizes = [16, 256], strides = [1, 1]} : vector<48x256xf32> to vector<16x256xf32>
    %c16_i32_17 = arith.constant 16 : i32
    %42 = tpu.dynamic_rotate %41 by %c16_i32_17 dim 1 : vector<16x256xf32>, i32 -> vector<16x256xf32>
    %43 = arith.addf %40, %42 : vector<16x256xf32>
    %44 = vector.extract_strided_slice %39 {offsets = [32, 0], sizes = [16, 256], strides = [1, 1]} : vector<48x256xf32> to vector<16x256xf32>
    %c240_i32 = arith.constant 240 : i32
    %45 = tpu.dynamic_rotate %44 by %c240_i32 dim 1 : vector<16x256xf32>, i32 -> vector<16x256xf32>
    %46 = arith.addf %43, %45 : vector<16x256xf32>
    %c0_18 = arith.constant 0 : index
    %c0_19 = arith.constant 0 : index
    %c0_20 = arith.constant 0 : index
    %47 = vector.load %arg3[%c0_18, %c0_19, %c0_20] : memref<8x16x1xf32, #tpu.memory_space<vmem>>, vector<1x16x1xf32>
    %48 = vector.shape_cast %47 : vector<1x16x1xf32> to vector<16x1xf32>
    %49 = vector.broadcast %48 : vector<16x1xf32> to vector<16x256xf32>
    %50 = arith.addf %46, %49 : vector<16x256xf32>
    %cst_21 = arith.constant 5.000000e-01 : f32
    %51 = vector.broadcast %cst_21 : f32 to vector<16x256xf32>
    %52 = arith.mulf %51, %50 : vector<16x256xf32>
    %cst_22 = arith.constant 0.707106769 : f32
    %53 = vector.broadcast %cst_22 : f32 to vector<16x256xf32>
    %54 = arith.mulf %50, %53 : vector<16x256xf32>
    %55 = math.erf %54 : vector<16x256xf32>
    %cst_23 = arith.constant 1.000000e+00 : f32
    %56 = vector.broadcast %cst_23 : f32 to vector<16x256xf32>
    %57 = arith.addf %56, %55 : vector<16x256xf32>
    %58 = arith.mulf %52, %57 : vector<16x256xf32>
    %c15_i32_24 = arith.constant 15 : i32
    %59 = tpu.dynamic_rotate %58 by %c15_i32_24 dim 1 : vector<16x256xf32>, i32 -> vector<16x256xf32>
    %c255_i32_25 = arith.constant 255 : i32
    %60 = tpu.dynamic_rotate %58 by %c255_i32_25 dim 1 : vector<16x256xf32>, i32 -> vector<16x256xf32>
    %61 = vector.shape_cast %20 : vector<1x256xi1> to vector<1x256xi1>
    %62 = vector.broadcast %61 : vector<1x256xi1> to vector<16x256xi1>
    %63 = arith.select %62, %59, %60 : vector<16x256xi1>, vector<16x256xf32>
    %c241_i32_26 = arith.constant 241 : i32
    %64 = tpu.dynamic_rotate %58 by %c241_i32_26 dim 1 : vector<16x256xf32>, i32 -> vector<16x256xf32>
    %c1_i32_27 = arith.constant 1 : i32
    %65 = tpu.dynamic_rotate %58 by %c1_i32_27 dim 1 : vector<16x256xf32>, i32 -> vector<16x256xf32>
    %66 = vector.shape_cast %18 : vector<1x256xi1> to vector<1x256xi1>
    %67 = vector.broadcast %66 : vector<1x256xi1> to vector<16x256xi1>
    %68 = arith.select %67, %64, %65 : vector<16x256xi1>, vector<16x256xf32>
    %c0_28 = arith.constant 0 : index
    %c0_29 = arith.constant 0 : index
    %69 = vector.load %arg5[%c0_28, %c0_29] : memref<48x256xf32, #tpu.memory_space<vmem>>, vector<16x256xf32>
    tpu.vector_store %arg5[%c0_28, %c0_29], %68 {strides = array<i32>} : memref<48x256xf32, #tpu.memory_space<vmem>>, vector<16x256xf32>,
    %c16_30 = arith.constant 16 : index
    %c0_31 = arith.constant 0 : index
    %70 = vector.load %arg5[%c16_30, %c0_31] : memref<48x256xf32, #tpu.memory_space<vmem>>, vector<16x256xf32>
    tpu.vector_store %arg5[%c16_30, %c0_31], %58 {strides = array<i32>} : memref<48x256xf32, #tpu.memory_space<vmem>>, vector<16x256xf32>,
    %c32_32 = arith.constant 32 : index
    %c0_33 = arith.constant 0 : index
    %71 = vector.load %arg5[%c32_32, %c0_33] : memref<48x256xf32, #tpu.memory_space<vmem>>, vector<16x256xf32>
    tpu.vector_store %arg5[%c32_32, %c0_33], %63 {strides = array<i32>} : memref<48x256xf32, #tpu.memory_space<vmem>>, vector<16x256xf32>,
    %c1 = arith.constant 1 : index
    %c0_34 = arith.constant 0 : index
    %c0_35 = arith.constant 0 : index
    %72 = vector.load %arg2[%c1, %c0_34, %c0_35] : memref<8x48x48xf32, #tpu.memory_space<vmem>>, vector<1x48x48xf32>
    %73 = vector.shape_cast %72 : vector<1x48x48xf32> to vector<48x48xf32>
    %c0_36 = arith.constant 0 : index
    %c0_37 = arith.constant 0 : index
    %74 = vector.load %arg5[%c0_36, %c0_37] : memref<48x256xf32, #tpu.memory_space<vmem>>, vector<48x256xf32>
    %cst_38 = arith.constant dense<0.000000e+00> : vector<48x256xf32>
    %75 = tpu.matmul %73, %74, %cst_38 {dimension_numbers = #tpu.dot_dimension_numbers<[1], [0], [0], [1], [0, 0, 1, 1], [], []>} : vector<48x48xf32>, vector<48x256xf32>, vector<48x256xf32> -> vector<48x256xf32>
    %76 = vector.extract_strided_slice %75 {offsets = [16, 0], sizes = [16, 256], strides = [1, 1]} : vector<48x256xf32> to vector<16x256xf32>
    %77 = vector.extract_strided_slice %75 {offsets = [0, 0], sizes = [16, 256], strides = [1, 1]} : vector<48x256xf32> to vector<16x256xf32>
    %c16_i32_39 = arith.constant 16 : i32
    %78 = tpu.dynamic_rotate %77 by %c16_i32_39 dim 1 : vector<16x256xf32>, i32 -> vector<16x256xf32>
    %79 = arith.addf %76, %78 : vector<16x256xf32>
    %80 = vector.extract_strided_slice %75 {offsets = [32, 0], sizes = [16, 256], strides = [1, 1]} : vector<48x256xf32> to vector<16x256xf32>
    %c240_i32_40 = arith.constant 240 : i32
    %81 = tpu.dynamic_rotate %80 by %c240_i32_40 dim 1 : vector<16x256xf32>, i32 -> vector<16x256xf32>
    %82 = arith.addf %79, %81 : vector<16x256xf32>
    %c1_41 = arith.constant 1 : index
    %c0_42 = arith.constant 0 : index
    %c0_43 = arith.constant 0 : index
    %83 = vector.load %arg3[%c1_41, %c0_42, %c0_43] : memref<8x16x1xf32, #tpu.memory_space<vmem>>, vector<1x16x1xf32>
    %84 = vector.shape_cast %83 : vector<1x16x1xf32> to vector<16x1xf32>
    %85 = vector.broadcast %84 : vector<16x1xf32> to vector<16x256xf32>
    %86 = arith.addf %82, %85 : vector<16x256xf32>
    %cst_44 = arith.constant 5.000000e-01 : f32
    %87 = vector.broadcast %cst_44 : f32 to vector<16x256xf32>
    %88 = arith.mulf %87, %86 : vector<16x256xf32>
    %cst_45 = arith.constant 0.707106769 : f32
    %89 = vector.broadcast %cst_45 : f32 to vector<16x256xf32>
    %90 = arith.mulf %86, %89 : vector<16x256xf32>
    %91 = math.erf %90 : vector<16x256xf32>
    %cst_46 = arith.constant 1.000000e+00 : f32
    %92 = vector.broadcast %cst_46 : f32 to vector<16x256xf32>
    %93 = arith.addf %92, %91 : vector<16x256xf32>
    %94 = arith.mulf %88, %93 : vector<16x256xf32>
    %c15_i32_47 = arith.constant 15 : i32
    %95 = tpu.dynamic_rotate %94 by %c15_i32_47 dim 1 : vector<16x256xf32>, i32 -> vector<16x256xf32>
    %c255_i32_48 = arith.constant 255 : i32
    %96 = tpu.dynamic_rotate %94 by %c255_i32_48 dim 1 : vector<16x256xf32>, i32 -> vector<16x256xf32>
    %97 = vector.shape_cast %20 : vector<1x256xi1> to vector<1x256xi1>
    %98 = vector.broadcast %97 : vector<1x256xi1> to vector<16x256xi1>
    %99 = arith.select %98, %95, %96 : vector<16x256xi1>, vector<16x256xf32>
    %c241_i32_49 = arith.constant 241 : i32
    %100 = tpu.dynamic_rotate %94 by %c241_i32_49 dim 1 : vector<16x256xf32>, i32 -> vector<16x256xf32>
    %c1_i32_50 = arith.constant 1 : i32
    %101 = tpu.dynamic_rotate %94 by %c1_i32_50 dim 1 : vector<16x256xf32>, i32 -> vector<16x256xf32>
    %102 = vector.shape_cast %18 : vector<1x256xi1> to vector<1x256xi1>
    %103 = vector.broadcast %102 : vector<1x256xi1> to vector<16x256xi1>
    %104 = arith.select %103, %100, %101 : vector<16x256xi1>, vector<16x256xf32>
    %c0_51 = arith.constant 0 : index
    %c0_52 = arith.constant 0 : index
    %105 = vector.load %arg5[%c0_51, %c0_52] : memref<48x256xf32, #tpu.memory_space<vmem>>, vector<16x256xf32>
    tpu.vector_store %arg5[%c0_51, %c0_52], %104 {strides = array<i32>} : memref<48x256xf32, #tpu.memory_space<vmem>>, vector<16x256xf32>,
    %c16_53 = arith.constant 16 : index
    %c0_54 = arith.constant 0 : index
    %106 = vector.load %arg5[%c16_53, %c0_54] : memref<48x256xf32, #tpu.memory_space<vmem>>, vector<16x256xf32>
    tpu.vector_store %arg5[%c16_53, %c0_54], %94 {strides = array<i32>} : memref<48x256xf32, #tpu.memory_space<vmem>>, vector<16x256xf32>,
    %c32_55 = arith.constant 32 : index
    %c0_56 = arith.constant 0 : index
    %107 = vector.load %arg5[%c32_55, %c0_56] : memref<48x256xf32, #tpu.memory_space<vmem>>, vector<16x256xf32>
    tpu.vector_store %arg5[%c32_55, %c0_56], %99 {strides = array<i32>} : memref<48x256xf32, #tpu.memory_space<vmem>>, vector<16x256xf32>,
    %c2 = arith.constant 2 : index
    %c0_57 = arith.constant 0 : index
    %c0_58 = arith.constant 0 : index
    %108 = vector.load %arg2[%c2, %c0_57, %c0_58] : memref<8x48x48xf32, #tpu.memory_space<vmem>>, vector<1x48x48xf32>
    %109 = vector.shape_cast %108 : vector<1x48x48xf32> to vector<48x48xf32>
    %c0_59 = arith.constant 0 : index
    %c0_60 = arith.constant 0 : index
    %110 = vector.load %arg5[%c0_59, %c0_60] : memref<48x256xf32, #tpu.memory_space<vmem>>, vector<48x256xf32>
    %cst_61 = arith.constant dense<0.000000e+00> : vector<48x256xf32>
    %111 = tpu.matmul %109, %110, %cst_61 {dimension_numbers = #tpu.dot_dimension_numbers<[1], [0], [0], [1], [0, 0, 1, 1], [], []>} : vector<48x48xf32>, vector<48x256xf32>, vector<48x256xf32> -> vector<48x256xf32>
    %112 = vector.extract_strided_slice %111 {offsets = [16, 0], sizes = [16, 256], strides = [1, 1]} : vector<48x256xf32> to vector<16x256xf32>
    %113 = vector.extract_strided_slice %111 {offsets = [0, 0], sizes = [16, 256], strides = [1, 1]} : vector<48x256xf32> to vector<16x256xf32>
    %c16_i32_62 = arith.constant 16 : i32
    %114 = tpu.dynamic_rotate %113 by %c16_i32_62 dim 1 : vector<16x256xf32>, i32 -> vector<16x256xf32>
    %115 = arith.addf %112, %114 : vector<16x256xf32>
    %116 = vector.extract_strided_slice %111 {offsets = [32, 0], sizes = [16, 256], strides = [1, 1]} : vector<48x256xf32> to vector<16x256xf32>
    %c240_i32_63 = arith.constant 240 : i32
    %117 = tpu.dynamic_rotate %116 by %c240_i32_63 dim 1 : vector<16x256xf32>, i32 -> vector<16x256xf32>
    %118 = arith.addf %115, %117 : vector<16x256xf32>
    %c2_64 = arith.constant 2 : index
    %c0_65 = arith.constant 0 : index
    %c0_66 = arith.constant 0 : index
    %119 = vector.load %arg3[%c2_64, %c0_65, %c0_66] : memref<8x16x1xf32, #tpu.memory_space<vmem>>, vector<1x16x1xf32>
    %120 = vector.shape_cast %119 : vector<1x16x1xf32> to vector<16x1xf32>
    %121 = vector.broadcast %120 : vector<16x1xf32> to vector<16x256xf32>
    %122 = arith.addf %118, %121 : vector<16x256xf32>
    %123 = arith.addf %122, %58 : vector<16x256xf32>
    %cst_67 = arith.constant 5.000000e-01 : f32
    %124 = vector.broadcast %cst_67 : f32 to vector<16x256xf32>
    %125 = arith.mulf %124, %123 : vector<16x256xf32>
    %cst_68 = arith.constant 0.707106769 : f32
    %126 = vector.broadcast %cst_68 : f32 to vector<16x256xf32>
    %127 = arith.mulf %123, %126 : vector<16x256xf32>
    %128 = math.erf %127 : vector<16x256xf32>
    %cst_69 = arith.constant 1.000000e+00 : f32
    %129 = vector.broadcast %cst_69 : f32 to vector<16x256xf32>
    %130 = arith.addf %129, %128 : vector<16x256xf32>
    %131 = arith.mulf %125, %130 : vector<16x256xf32>
    %c15_i32_70 = arith.constant 15 : i32
    %132 = tpu.dynamic_rotate %131 by %c15_i32_70 dim 1 : vector<16x256xf32>, i32 -> vector<16x256xf32>
    %c255_i32_71 = arith.constant 255 : i32
    %133 = tpu.dynamic_rotate %131 by %c255_i32_71 dim 1 : vector<16x256xf32>, i32 -> vector<16x256xf32>
    %134 = vector.shape_cast %20 : vector<1x256xi1> to vector<1x256xi1>
    %135 = vector.broadcast %134 : vector<1x256xi1> to vector<16x256xi1>
    %136 = arith.select %135, %132, %133 : vector<16x256xi1>, vector<16x256xf32>
    %c241_i32_72 = arith.constant 241 : i32
    %137 = tpu.dynamic_rotate %131 by %c241_i32_72 dim 1 : vector<16x256xf32>, i32 -> vector<16x256xf32>
    %c1_i32_73 = arith.constant 1 : i32
    %138 = tpu.dynamic_rotate %131 by %c1_i32_73 dim 1 : vector<16x256xf32>, i32 -> vector<16x256xf32>
    %139 = vector.shape_cast %18 : vector<1x256xi1> to vector<1x256xi1>
    %140 = vector.broadcast %139 : vector<1x256xi1> to vector<16x256xi1>
    %141 = arith.select %140, %137, %138 : vector<16x256xi1>, vector<16x256xf32>
    %c0_74 = arith.constant 0 : index
    %c0_75 = arith.constant 0 : index
    %142 = vector.load %arg5[%c0_74, %c0_75] : memref<48x256xf32, #tpu.memory_space<vmem>>, vector<16x256xf32>
    tpu.vector_store %arg5[%c0_74, %c0_75], %141 {strides = array<i32>} : memref<48x256xf32, #tpu.memory_space<vmem>>, vector<16x256xf32>,
    %c16_76 = arith.constant 16 : index
    %c0_77 = arith.constant 0 : index
    %143 = vector.load %arg5[%c16_76, %c0_77] : memref<48x256xf32, #tpu.memory_space<vmem>>, vector<16x256xf32>
    tpu.vector_store %arg5[%c16_76, %c0_77], %131 {strides = array<i32>} : memref<48x256xf32, #tpu.memory_space<vmem>>, vector<16x256xf32>,
    %c32_78 = arith.constant 32 : index
    %c0_79 = arith.constant 0 : index
    %144 = vector.load %arg5[%c32_78, %c0_79] : memref<48x256xf32, #tpu.memory_space<vmem>>, vector<16x256xf32>
    tpu.vector_store %arg5[%c32_78, %c0_79], %136 {strides = array<i32>} : memref<48x256xf32, #tpu.memory_space<vmem>>, vector<16x256xf32>,
    %c3 = arith.constant 3 : index
    %c0_80 = arith.constant 0 : index
    %c0_81 = arith.constant 0 : index
    %145 = vector.load %arg2[%c3, %c0_80, %c0_81] : memref<8x48x48xf32, #tpu.memory_space<vmem>>, vector<1x48x48xf32>
    %146 = vector.shape_cast %145 : vector<1x48x48xf32> to vector<48x48xf32>
    %c0_82 = arith.constant 0 : index
    %c0_83 = arith.constant 0 : index
    %147 = vector.load %arg5[%c0_82, %c0_83] : memref<48x256xf32, #tpu.memory_space<vmem>>, vector<48x256xf32>
    %cst_84 = arith.constant dense<0.000000e+00> : vector<48x256xf32>
    %148 = tpu.matmul %146, %147, %cst_84 {dimension_numbers = #tpu.dot_dimension_numbers<[1], [0], [0], [1], [0, 0, 1, 1], [], []>} : vector<48x48xf32>, vector<48x256xf32>, vector<48x256xf32> -> vector<48x256xf32>
    %149 = vector.extract_strided_slice %148 {offsets = [16, 0], sizes = [16, 256], strides = [1, 1]} : vector<48x256xf32> to vector<16x256xf32>
    %150 = vector.extract_strided_slice %148 {offsets = [0, 0], sizes = [16, 256], strides = [1, 1]} : vector<48x256xf32> to vector<16x256xf32>
    %c16_i32_85 = arith.constant 16 : i32
    %151 = tpu.dynamic_rotate %150 by %c16_i32_85 dim 1 : vector<16x256xf32>, i32 -> vector<16x256xf32>
    %152 = arith.addf %149, %151 : vector<16x256xf32>
    %153 = vector.extract_strided_slice %148 {offsets = [32, 0], sizes = [16, 256], strides = [1, 1]} : vector<48x256xf32> to vector<16x256xf32>
    %c240_i32_86 = arith.constant 240 : i32
    %154 = tpu.dynamic_rotate %153 by %c240_i32_86 dim 1 : vector<16x256xf32>, i32 -> vector<16x256xf32>
    %155 = arith.addf %152, %154 : vector<16x256xf32>
    %c3_87 = arith.constant 3 : index
    %c0_88 = arith.constant 0 : index
    %c0_89 = arith.constant 0 : index
    %156 = vector.load %arg3[%c3_87, %c0_88, %c0_89] : memref<8x16x1xf32, #tpu.memory_space<vmem>>, vector<1x16x1xf32>
    %157 = vector.shape_cast %156 : vector<1x16x1xf32> to vector<16x1xf32>
    %158 = vector.broadcast %157 : vector<16x1xf32> to vector<16x256xf32>
    %159 = arith.addf %155, %158 : vector<16x256xf32>
    %cst_90 = arith.constant 5.000000e-01 : f32
    %160 = vector.broadcast %cst_90 : f32 to vector<16x256xf32>
    %161 = arith.mulf %160, %159 : vector<16x256xf32>
    %cst_91 = arith.constant 0.707106769 : f32
    %162 = vector.broadcast %cst_91 : f32 to vector<16x256xf32>
    %163 = arith.mulf %159, %162 : vector<16x256xf32>
    %164 = math.erf %163 : vector<16x256xf32>
    %cst_92 = arith.constant 1.000000e+00 : f32
    %165 = vector.broadcast %cst_92 : f32 to vector<16x256xf32>
    %166 = arith.addf %165, %164 : vector<16x256xf32>
    %167 = arith.mulf %161, %166 : vector<16x256xf32>
    %c15_i32_93 = arith.constant 15 : i32
    %168 = tpu.dynamic_rotate %167 by %c15_i32_93 dim 1 : vector<16x256xf32>, i32 -> vector<16x256xf32>
    %c255_i32_94 = arith.constant 255 : i32
    %169 = tpu.dynamic_rotate %167 by %c255_i32_94 dim 1 : vector<16x256xf32>, i32 -> vector<16x256xf32>
    %170 = vector.shape_cast %20 : vector<1x256xi1> to vector<1x256xi1>
    %171 = vector.broadcast %170 : vector<1x256xi1> to vector<16x256xi1>
    %172 = arith.select %171, %168, %169 : vector<16x256xi1>, vector<16x256xf32>
    %c241_i32_95 = arith.constant 241 : i32
    %173 = tpu.dynamic_rotate %167 by %c241_i32_95 dim 1 : vector<16x256xf32>, i32 -> vector<16x256xf32>
    %c1_i32_96 = arith.constant 1 : i32
    %174 = tpu.dynamic_rotate %167 by %c1_i32_96 dim 1 : vector<16x256xf32>, i32 -> vector<16x256xf32>
    %175 = vector.shape_cast %18 : vector<1x256xi1> to vector<1x256xi1>
    %176 = vector.broadcast %175 : vector<1x256xi1> to vector<16x256xi1>
    %177 = arith.select %176, %173, %174 : vector<16x256xi1>, vector<16x256xf32>
    %c0_97 = arith.constant 0 : index
    %c0_98 = arith.constant 0 : index
    %178 = vector.load %arg5[%c0_97, %c0_98] : memref<48x256xf32, #tpu.memory_space<vmem>>, vector<16x256xf32>
    tpu.vector_store %arg5[%c0_97, %c0_98], %177 {strides = array<i32>} : memref<48x256xf32, #tpu.memory_space<vmem>>, vector<16x256xf32>,
    %c16_99 = arith.constant 16 : index
    %c0_100 = arith.constant 0 : index
    %179 = vector.load %arg5[%c16_99, %c0_100] : memref<48x256xf32, #tpu.memory_space<vmem>>, vector<16x256xf32>
    tpu.vector_store %arg5[%c16_99, %c0_100], %167 {strides = array<i32>} : memref<48x256xf32, #tpu.memory_space<vmem>>, vector<16x256xf32>,
    %c32_101 = arith.constant 32 : index
    %c0_102 = arith.constant 0 : index
    %180 = vector.load %arg5[%c32_101, %c0_102] : memref<48x256xf32, #tpu.memory_space<vmem>>, vector<16x256xf32>
    tpu.vector_store %arg5[%c32_101, %c0_102], %172 {strides = array<i32>} : memref<48x256xf32, #tpu.memory_space<vmem>>, vector<16x256xf32>,
    %c4 = arith.constant 4 : index
    %c0_103 = arith.constant 0 : index
    %c0_104 = arith.constant 0 : index
    %181 = vector.load %arg2[%c4, %c0_103, %c0_104] : memref<8x48x48xf32, #tpu.memory_space<vmem>>, vector<1x48x48xf32>
    %182 = vector.shape_cast %181 : vector<1x48x48xf32> to vector<48x48xf32>
    %c0_105 = arith.constant 0 : index
    %c0_106 = arith.constant 0 : index
    %183 = vector.load %arg5[%c0_105, %c0_106] : memref<48x256xf32, #tpu.memory_space<vmem>>, vector<48x256xf32>
    %cst_107 = arith.constant dense<0.000000e+00> : vector<48x256xf32>
    %184 = tpu.matmul %182, %183, %cst_107 {dimension_numbers = #tpu.dot_dimension_numbers<[1], [0], [0], [1], [0, 0, 1, 1], [], []>} : vector<48x48xf32>, vector<48x256xf32>, vector<48x256xf32> -> vector<48x256xf32>
    %185 = vector.extract_strided_slice %184 {offsets = [16, 0], sizes = [16, 256], strides = [1, 1]} : vector<48x256xf32> to vector<16x256xf32>
    %186 = vector.extract_strided_slice %184 {offsets = [0, 0], sizes = [16, 256], strides = [1, 1]} : vector<48x256xf32> to vector<16x256xf32>
    %c16_i32_108 = arith.constant 16 : i32
    %187 = tpu.dynamic_rotate %186 by %c16_i32_108 dim 1 : vector<16x256xf32>, i32 -> vector<16x256xf32>
    %188 = arith.addf %185, %187 : vector<16x256xf32>
    %189 = vector.extract_strided_slice %184 {offsets = [32, 0], sizes = [16, 256], strides = [1, 1]} : vector<48x256xf32> to vector<16x256xf32>
    %c240_i32_109 = arith.constant 240 : i32
    %190 = tpu.dynamic_rotate %189 by %c240_i32_109 dim 1 : vector<16x256xf32>, i32 -> vector<16x256xf32>
    %191 = arith.addf %188, %190 : vector<16x256xf32>
    %c4_110 = arith.constant 4 : index
    %c0_111 = arith.constant 0 : index
    %c0_112 = arith.constant 0 : index
    %192 = vector.load %arg3[%c4_110, %c0_111, %c0_112] : memref<8x16x1xf32, #tpu.memory_space<vmem>>, vector<1x16x1xf32>
    %193 = vector.shape_cast %192 : vector<1x16x1xf32> to vector<16x1xf32>
    %194 = vector.broadcast %193 : vector<16x1xf32> to vector<16x256xf32>
    %195 = arith.addf %191, %194 : vector<16x256xf32>
    %196 = arith.addf %195, %131 : vector<16x256xf32>
    %cst_113 = arith.constant 5.000000e-01 : f32
    %197 = vector.broadcast %cst_113 : f32 to vector<16x256xf32>
    %198 = arith.mulf %197, %196 : vector<16x256xf32>
    %cst_114 = arith.constant 0.707106769 : f32
    %199 = vector.broadcast %cst_114 : f32 to vector<16x256xf32>
    %200 = arith.mulf %196, %199 : vector<16x256xf32>
    %201 = math.erf %200 : vector<16x256xf32>
    %cst_115 = arith.constant 1.000000e+00 : f32
    %202 = vector.broadcast %cst_115 : f32 to vector<16x256xf32>
    %203 = arith.addf %202, %201 : vector<16x256xf32>
    %204 = arith.mulf %198, %203 : vector<16x256xf32>
    %c15_i32_116 = arith.constant 15 : i32
    %205 = tpu.dynamic_rotate %204 by %c15_i32_116 dim 1 : vector<16x256xf32>, i32 -> vector<16x256xf32>
    %c255_i32_117 = arith.constant 255 : i32
    %206 = tpu.dynamic_rotate %204 by %c255_i32_117 dim 1 : vector<16x256xf32>, i32 -> vector<16x256xf32>
    %207 = vector.shape_cast %20 : vector<1x256xi1> to vector<1x256xi1>
    %208 = vector.broadcast %207 : vector<1x256xi1> to vector<16x256xi1>
    %209 = arith.select %208, %205, %206 : vector<16x256xi1>, vector<16x256xf32>
    %c241_i32_118 = arith.constant 241 : i32
    %210 = tpu.dynamic_rotate %204 by %c241_i32_118 dim 1 : vector<16x256xf32>, i32 -> vector<16x256xf32>
    %c1_i32_119 = arith.constant 1 : i32
    %211 = tpu.dynamic_rotate %204 by %c1_i32_119 dim 1 : vector<16x256xf32>, i32 -> vector<16x256xf32>
    %212 = vector.shape_cast %18 : vector<1x256xi1> to vector<1x256xi1>
    %213 = vector.broadcast %212 : vector<1x256xi1> to vector<16x256xi1>
    %214 = arith.select %213, %210, %211 : vector<16x256xi1>, vector<16x256xf32>
    %c0_120 = arith.constant 0 : index
    %c0_121 = arith.constant 0 : index
    %215 = vector.load %arg5[%c0_120, %c0_121] : memref<48x256xf32, #tpu.memory_space<vmem>>, vector<16x256xf32>
    tpu.vector_store %arg5[%c0_120, %c0_121], %214 {strides = array<i32>} : memref<48x256xf32, #tpu.memory_space<vmem>>, vector<16x256xf32>,
    %c16_122 = arith.constant 16 : index
    %c0_123 = arith.constant 0 : index
    %216 = vector.load %arg5[%c16_122, %c0_123] : memref<48x256xf32, #tpu.memory_space<vmem>>, vector<16x256xf32>
    tpu.vector_store %arg5[%c16_122, %c0_123], %204 {strides = array<i32>} : memref<48x256xf32, #tpu.memory_space<vmem>>, vector<16x256xf32>,
    %c32_124 = arith.constant 32 : index
    %c0_125 = arith.constant 0 : index
    %217 = vector.load %arg5[%c32_124, %c0_125] : memref<48x256xf32, #tpu.memory_space<vmem>>, vector<16x256xf32>
    tpu.vector_store %arg5[%c32_124, %c0_125], %209 {strides = array<i32>} : memref<48x256xf32, #tpu.memory_space<vmem>>, vector<16x256xf32>,
    %c5 = arith.constant 5 : index
    %c0_126 = arith.constant 0 : index
    %c0_127 = arith.constant 0 : index
    %218 = vector.load %arg2[%c5, %c0_126, %c0_127] : memref<8x48x48xf32, #tpu.memory_space<vmem>>, vector<1x48x48xf32>
    %219 = vector.shape_cast %218 : vector<1x48x48xf32> to vector<48x48xf32>
    %c0_128 = arith.constant 0 : index
    %c0_129 = arith.constant 0 : index
    %220 = vector.load %arg5[%c0_128, %c0_129] : memref<48x256xf32, #tpu.memory_space<vmem>>, vector<48x256xf32>
    %cst_130 = arith.constant dense<0.000000e+00> : vector<48x256xf32>
    %221 = tpu.matmul %219, %220, %cst_130 {dimension_numbers = #tpu.dot_dimension_numbers<[1], [0], [0], [1], [0, 0, 1, 1], [], []>} : vector<48x48xf32>, vector<48x256xf32>, vector<48x256xf32> -> vector<48x256xf32>
    %222 = vector.extract_strided_slice %221 {offsets = [16, 0], sizes = [16, 256], strides = [1, 1]} : vector<48x256xf32> to vector<16x256xf32>
    %223 = vector.extract_strided_slice %221 {offsets = [0, 0], sizes = [16, 256], strides = [1, 1]} : vector<48x256xf32> to vector<16x256xf32>
    %c16_i32_131 = arith.constant 16 : i32
    %224 = tpu.dynamic_rotate %223 by %c16_i32_131 dim 1 : vector<16x256xf32>, i32 -> vector<16x256xf32>
    %225 = arith.addf %222, %224 : vector<16x256xf32>
    %226 = vector.extract_strided_slice %221 {offsets = [32, 0], sizes = [16, 256], strides = [1, 1]} : vector<48x256xf32> to vector<16x256xf32>
    %c240_i32_132 = arith.constant 240 : i32
    %227 = tpu.dynamic_rotate %226 by %c240_i32_132 dim 1 : vector<16x256xf32>, i32 -> vector<16x256xf32>
    %228 = arith.addf %225, %227 : vector<16x256xf32>
    %c5_133 = arith.constant 5 : index
    %c0_134 = arith.constant 0 : index
    %c0_135 = arith.constant 0 : index
    %229 = vector.load %arg3[%c5_133, %c0_134, %c0_135] : memref<8x16x1xf32, #tpu.memory_space<vmem>>, vector<1x16x1xf32>
    %230 = vector.shape_cast %229 : vector<1x16x1xf32> to vector<16x1xf32>
    %231 = vector.broadcast %230 : vector<16x1xf32> to vector<16x256xf32>
    %232 = arith.addf %228, %231 : vector<16x256xf32>
    %cst_136 = arith.constant 5.000000e-01 : f32
    %233 = vector.broadcast %cst_136 : f32 to vector<16x256xf32>
    %234 = arith.mulf %233, %232 : vector<16x256xf32>
    %cst_137 = arith.constant 0.707106769 : f32
    %235 = vector.broadcast %cst_137 : f32 to vector<16x256xf32>
    %236 = arith.mulf %232, %235 : vector<16x256xf32>
    %237 = math.erf %236 : vector<16x256xf32>
    %cst_138 = arith.constant 1.000000e+00 : f32
    %238 = vector.broadcast %cst_138 : f32 to vector<16x256xf32>
    %239 = arith.addf %238, %237 : vector<16x256xf32>
    %240 = arith.mulf %234, %239 : vector<16x256xf32>
    %c15_i32_139 = arith.constant 15 : i32
    %241 = tpu.dynamic_rotate %240 by %c15_i32_139 dim 1 : vector<16x256xf32>, i32 -> vector<16x256xf32>
    %c255_i32_140 = arith.constant 255 : i32
    %242 = tpu.dynamic_rotate %240 by %c255_i32_140 dim 1 : vector<16x256xf32>, i32 -> vector<16x256xf32>
    %243 = vector.shape_cast %20 : vector<1x256xi1> to vector<1x256xi1>
    %244 = vector.broadcast %243 : vector<1x256xi1> to vector<16x256xi1>
    %245 = arith.select %244, %241, %242 : vector<16x256xi1>, vector<16x256xf32>
    %c241_i32_141 = arith.constant 241 : i32
    %246 = tpu.dynamic_rotate %240 by %c241_i32_141 dim 1 : vector<16x256xf32>, i32 -> vector<16x256xf32>
    %c1_i32_142 = arith.constant 1 : i32
    %247 = tpu.dynamic_rotate %240 by %c1_i32_142 dim 1 : vector<16x256xf32>, i32 -> vector<16x256xf32>
    %248 = vector.shape_cast %18 : vector<1x256xi1> to vector<1x256xi1>
    %249 = vector.broadcast %248 : vector<1x256xi1> to vector<16x256xi1>
    %250 = arith.select %249, %246, %247 : vector<16x256xi1>, vector<16x256xf32>
    %c0_143 = arith.constant 0 : index
    %c0_144 = arith.constant 0 : index
    %251 = vector.load %arg5[%c0_143, %c0_144] : memref<48x256xf32, #tpu.memory_space<vmem>>, vector<16x256xf32>
    tpu.vector_store %arg5[%c0_143, %c0_144], %250 {strides = array<i32>} : memref<48x256xf32, #tpu.memory_space<vmem>>, vector<16x256xf32>,
    %c16_145 = arith.constant 16 : index
    %c0_146 = arith.constant 0 : index
    %252 = vector.load %arg5[%c16_145, %c0_146] : memref<48x256xf32, #tpu.memory_space<vmem>>, vector<16x256xf32>
    tpu.vector_store %arg5[%c16_145, %c0_146], %240 {strides = array<i32>} : memref<48x256xf32, #tpu.memory_space<vmem>>, vector<16x256xf32>,
    %c32_147 = arith.constant 32 : index
    %c0_148 = arith.constant 0 : index
    %253 = vector.load %arg5[%c32_147, %c0_148] : memref<48x256xf32, #tpu.memory_space<vmem>>, vector<16x256xf32>
    tpu.vector_store %arg5[%c32_147, %c0_148], %245 {strides = array<i32>} : memref<48x256xf32, #tpu.memory_space<vmem>>, vector<16x256xf32>,
    %c6 = arith.constant 6 : index
    %c0_149 = arith.constant 0 : index
    %c0_150 = arith.constant 0 : index
    %254 = vector.load %arg2[%c6, %c0_149, %c0_150] : memref<8x48x48xf32, #tpu.memory_space<vmem>>, vector<1x48x48xf32>
    %255 = vector.shape_cast %254 : vector<1x48x48xf32> to vector<48x48xf32>
    %c0_151 = arith.constant 0 : index
    %c0_152 = arith.constant 0 : index
    %256 = vector.load %arg5[%c0_151, %c0_152] : memref<48x256xf32, #tpu.memory_space<vmem>>, vector<48x256xf32>
    %cst_153 = arith.constant dense<0.000000e+00> : vector<48x256xf32>
    %257 = tpu.matmul %255, %256, %cst_153 {dimension_numbers = #tpu.dot_dimension_numbers<[1], [0], [0], [1], [0, 0, 1, 1], [], []>} : vector<48x48xf32>, vector<48x256xf32>, vector<48x256xf32> -> vector<48x256xf32>
    %258 = vector.extract_strided_slice %257 {offsets = [16, 0], sizes = [16, 256], strides = [1, 1]} : vector<48x256xf32> to vector<16x256xf32>
    %259 = vector.extract_strided_slice %257 {offsets = [0, 0], sizes = [16, 256], strides = [1, 1]} : vector<48x256xf32> to vector<16x256xf32>
    %c16_i32_154 = arith.constant 16 : i32
    %260 = tpu.dynamic_rotate %259 by %c16_i32_154 dim 1 : vector<16x256xf32>, i32 -> vector<16x256xf32>
    %261 = arith.addf %258, %260 : vector<16x256xf32>
    %262 = vector.extract_strided_slice %257 {offsets = [32, 0], sizes = [16, 256], strides = [1, 1]} : vector<48x256xf32> to vector<16x256xf32>
    %c240_i32_155 = arith.constant 240 : i32
    %263 = tpu.dynamic_rotate %262 by %c240_i32_155 dim 1 : vector<16x256xf32>, i32 -> vector<16x256xf32>
    %264 = arith.addf %261, %263 : vector<16x256xf32>
    %c6_156 = arith.constant 6 : index
    %c0_157 = arith.constant 0 : index
    %c0_158 = arith.constant 0 : index
    %265 = vector.load %arg3[%c6_156, %c0_157, %c0_158] : memref<8x16x1xf32, #tpu.memory_space<vmem>>, vector<1x16x1xf32>
    %266 = vector.shape_cast %265 : vector<1x16x1xf32> to vector<16x1xf32>
    %267 = vector.broadcast %266 : vector<16x1xf32> to vector<16x256xf32>
    %268 = arith.addf %264, %267 : vector<16x256xf32>
    %269 = arith.addf %268, %204 : vector<16x256xf32>
    %cst_159 = arith.constant 5.000000e-01 : f32
    %270 = vector.broadcast %cst_159 : f32 to vector<16x256xf32>
    %271 = arith.mulf %270, %269 : vector<16x256xf32>
    %cst_160 = arith.constant 0.707106769 : f32
    %272 = vector.broadcast %cst_160 : f32 to vector<16x256xf32>
    %273 = arith.mulf %269, %272 : vector<16x256xf32>
    %274 = math.erf %273 : vector<16x256xf32>
    %cst_161 = arith.constant 1.000000e+00 : f32
    %275 = vector.broadcast %cst_161 : f32 to vector<16x256xf32>
    %276 = arith.addf %275, %274 : vector<16x256xf32>
    %277 = arith.mulf %271, %276 : vector<16x256xf32>
    %c15_i32_162 = arith.constant 15 : i32
    %278 = tpu.dynamic_rotate %277 by %c15_i32_162 dim 1 : vector<16x256xf32>, i32 -> vector<16x256xf32>
    %c255_i32_163 = arith.constant 255 : i32
    %279 = tpu.dynamic_rotate %277 by %c255_i32_163 dim 1 : vector<16x256xf32>, i32 -> vector<16x256xf32>
    %280 = vector.shape_cast %20 : vector<1x256xi1> to vector<1x256xi1>
    %281 = vector.broadcast %280 : vector<1x256xi1> to vector<16x256xi1>
    %282 = arith.select %281, %278, %279 : vector<16x256xi1>, vector<16x256xf32>
    %c241_i32_164 = arith.constant 241 : i32
    %283 = tpu.dynamic_rotate %277 by %c241_i32_164 dim 1 : vector<16x256xf32>, i32 -> vector<16x256xf32>
    %c1_i32_165 = arith.constant 1 : i32
    %284 = tpu.dynamic_rotate %277 by %c1_i32_165 dim 1 : vector<16x256xf32>, i32 -> vector<16x256xf32>
    %285 = vector.shape_cast %18 : vector<1x256xi1> to vector<1x256xi1>
    %286 = vector.broadcast %285 : vector<1x256xi1> to vector<16x256xi1>
    %287 = arith.select %286, %283, %284 : vector<16x256xi1>, vector<16x256xf32>
    %c0_166 = arith.constant 0 : index
    %c0_167 = arith.constant 0 : index
    %288 = vector.load %arg5[%c0_166, %c0_167] : memref<48x256xf32, #tpu.memory_space<vmem>>, vector<16x256xf32>
    tpu.vector_store %arg5[%c0_166, %c0_167], %287 {strides = array<i32>} : memref<48x256xf32, #tpu.memory_space<vmem>>, vector<16x256xf32>,
    %c16_168 = arith.constant 16 : index
    %c0_169 = arith.constant 0 : index
    %289 = vector.load %arg5[%c16_168, %c0_169] : memref<48x256xf32, #tpu.memory_space<vmem>>, vector<16x256xf32>
    tpu.vector_store %arg5[%c16_168, %c0_169], %277 {strides = array<i32>} : memref<48x256xf32, #tpu.memory_space<vmem>>, vector<16x256xf32>,
    %c32_170 = arith.constant 32 : index
    %c0_171 = arith.constant 0 : index
    %290 = vector.load %arg5[%c32_170, %c0_171] : memref<48x256xf32, #tpu.memory_space<vmem>>, vector<16x256xf32>
    tpu.vector_store %arg5[%c32_170, %c0_171], %282 {strides = array<i32>} : memref<48x256xf32, #tpu.memory_space<vmem>>, vector<16x256xf32>,
    %c7 = arith.constant 7 : index
    %c0_172 = arith.constant 0 : index
    %c0_173 = arith.constant 0 : index
    %291 = vector.load %arg2[%c7, %c0_172, %c0_173] : memref<8x48x48xf32, #tpu.memory_space<vmem>>, vector<1x48x48xf32>
    %292 = vector.shape_cast %291 : vector<1x48x48xf32> to vector<48x48xf32>
    %c0_174 = arith.constant 0 : index
    %c0_175 = arith.constant 0 : index
    %293 = vector.load %arg5[%c0_174, %c0_175] : memref<48x256xf32, #tpu.memory_space<vmem>>, vector<48x256xf32>
    %cst_176 = arith.constant dense<0.000000e+00> : vector<48x256xf32>
    %294 = tpu.matmul %292, %293, %cst_176 {dimension_numbers = #tpu.dot_dimension_numbers<[1], [0], [0], [1], [0, 0, 1, 1], [], []>} : vector<48x48xf32>, vector<48x256xf32>, vector<48x256xf32> -> vector<48x256xf32>
    %295 = vector.extract_strided_slice %294 {offsets = [16, 0], sizes = [16, 256], strides = [1, 1]} : vector<48x256xf32> to vector<16x256xf32>
    %296 = vector.extract_strided_slice %294 {offsets = [0, 0], sizes = [16, 256], strides = [1, 1]} : vector<48x256xf32> to vector<16x256xf32>
    %c16_i32_177 = arith.constant 16 : i32
    %297 = tpu.dynamic_rotate %296 by %c16_i32_177 dim 1 : vector<16x256xf32>, i32 -> vector<16x256xf32>
    %298 = arith.addf %295, %297 : vector<16x256xf32>
    %299 = vector.extract_strided_slice %294 {offsets = [32, 0], sizes = [16, 256], strides = [1, 1]} : vector<48x256xf32> to vector<16x256xf32>
    %c240_i32_178 = arith.constant 240 : i32
    %300 = tpu.dynamic_rotate %299 by %c240_i32_178 dim 1 : vector<16x256xf32>, i32 -> vector<16x256xf32>
    %301 = arith.addf %298, %300 : vector<16x256xf32>
    %c7_179 = arith.constant 7 : index
    %c0_180 = arith.constant 0 : index
    %c0_181 = arith.constant 0 : index
    %302 = vector.load %arg3[%c7_179, %c0_180, %c0_181] : memref<8x16x1xf32, #tpu.memory_space<vmem>>, vector<1x16x1xf32>
    %303 = vector.shape_cast %302 : vector<1x16x1xf32> to vector<16x1xf32>
    %304 = vector.broadcast %303 : vector<16x1xf32> to vector<16x256xf32>
    %305 = arith.addf %301, %304 : vector<16x256xf32>
    %cst_182 = arith.constant 5.000000e-01 : f32
    %306 = vector.broadcast %cst_182 : f32 to vector<16x256xf32>
    %307 = arith.mulf %306, %305 : vector<16x256xf32>
    %cst_183 = arith.constant 0.707106769 : f32
    %308 = vector.broadcast %cst_183 : f32 to vector<16x256xf32>
    %309 = arith.mulf %305, %308 : vector<16x256xf32>
    %310 = math.erf %309 : vector<16x256xf32>
    %cst_184 = arith.constant 1.000000e+00 : f32
    %311 = vector.broadcast %cst_184 : f32 to vector<16x256xf32>
    %312 = arith.addf %311, %310 : vector<16x256xf32>
    %313 = arith.mulf %307, %312 : vector<16x256xf32>
    %314 = math.absf %313 : vector<16x256xf32>
    %cst_185 = arith.constant 2.41421366 : f32
    %315 = vector.broadcast %cst_185 : f32 to vector<16x256xf32>
    %316 = arith.cmpf ogt, %314, %315 : vector<16x256xf32>
    %cst_186 = arith.constant 0.414213568 : f32
    %317 = vector.broadcast %cst_186 : f32 to vector<16x256xf32>
    %318 = arith.cmpf ogt, %314, %317 : vector<16x256xf32>
    %319 = tpu.reciprocal %314 : vector<16x256xf32> -> vector<16x256xf32>
    %cst_187 = arith.constant 1.000000e+00 : f32
    %320 = vector.broadcast %cst_187 : f32 to vector<16x256xf32>
    %321 = arith.addf %314, %320 : vector<16x256xf32>
    %322 = tpu.reciprocal %321 : vector<16x256xf32> -> vector<16x256xf32>
    %cst_188 = arith.constant 0.000000e+00 : f32
    %323 = vector.broadcast %cst_188 : f32 to vector<16x256xf32>
    %324 = arith.subf %323, %319 : vector<16x256xf32>
    %cst_189 = arith.constant 1.000000e+00 : f32
    %325 = vector.broadcast %cst_189 : f32 to vector<16x256xf32>
    %326 = arith.subf %314, %325 : vector<16x256xf32>
    %327 = arith.mulf %326, %322 : vector<16x256xf32>
    %328 = arith.select %318, %327, %314 : vector<16x256xi1>, vector<16x256xf32>
    %329 = arith.select %316, %324, %328 : vector<16x256xi1>, vector<16x256xf32>
    %cst_190 = arith.constant 0.785398185 : f32
    %cst_191 = arith.constant 0.000000e+00 : f32
    %330 = vector.broadcast %cst_190 : f32 to vector<16x256xf32>
    %331 = vector.broadcast %cst_191 : f32 to vector<16x256xf32>
    %332 = arith.select %318, %330, %331 : vector<16x256xi1>, vector<16x256xf32>
    %cst_192 = arith.constant 1.57079637 : f32
    %333 = vector.broadcast %cst_192 : f32 to vector<16x256xf32>
    %334 = arith.select %316, %333, %332 : vector<16x256xi1>, vector<16x256xf32>
    %335 = arith.mulf %329, %329 : vector<16x256xf32>
    %cst_193 = arith.constant 0.0805374458 : f32
    %336 = vector.broadcast %cst_193 : f32 to vector<16x256xf32>
    %337 = arith.mulf %336, %335 : vector<16x256xf32>
    %cst_194 = arith.constant 0.138776854 : f32
    %338 = vector.broadcast %cst_194 : f32 to vector<16x256xf32>
    %339 = arith.subf %337, %338 : vector<16x256xf32>
    %340 = arith.mulf %339, %335 : vector<16x256xf32>
    %cst_195 = arith.constant 0.199777111 : f32
    %341 = vector.broadcast %cst_195 : f32 to vector<16x256xf32>
    %342 = arith.addf %340, %341 : vector<16x256xf32>
    %343 = arith.mulf %342, %335 : vector<16x256xf32>
    %cst_196 = arith.constant 0.333329499 : f32
    %344 = vector.broadcast %cst_196 : f32 to vector<16x256xf32>
    %345 = arith.subf %343, %344 : vector<16x256xf32>
    %346 = arith.mulf %345, %335 : vector<16x256xf32>
    %347 = arith.mulf %346, %329 : vector<16x256xf32>
    %348 = arith.addf %347, %329 : vector<16x256xf32>
    %349 = arith.addf %334, %348 : vector<16x256xf32>
    %cst_197 = arith.constant 0.000000e+00 : f32
    %350 = vector.broadcast %cst_197 : f32 to vector<16x256xf32>
    %351 = arith.cmpf olt, %313, %350 : vector<16x256xf32>
    %cst_198 = arith.constant 0.000000e+00 : f32
    %352 = vector.broadcast %cst_198 : f32 to vector<16x256xf32>
    %353 = arith.subf %352, %349 : vector<16x256xf32>
    %354 = arith.select %351, %353, %349 : vector<16x256xi1>, vector<16x256xf32>
    %cst_199 = arith.constant 0.159154937 : f32
    %355 = vector.broadcast %cst_199 : f32 to vector<16x256xf32>
    %356 = arith.mulf %354, %355 : vector<16x256xf32>
    %c0_200 = arith.constant 0 : index
    %c0_201 = arith.constant 0 : index
    %c0_202 = arith.constant 0 : index
    %357 = vector.load %arg4[%c0_200, %c0_201, %c0_202] : memref<1x16x256xf32, #tpu.memory_space<vmem>>, vector<1x16x256xf32>
    %358 = vector.shape_cast %357 : vector<1x16x256xf32> to vector<16x256xf32>
    %359 = vector.shape_cast %356 : vector<16x256xf32> to vector<1x16x256xf32>
    tpu.vector_store %arg4[%c0_200, %c0_201, %c0_202], %359 {strides = array<i32>} : memref<1x16x256xf32, #tpu.memory_space<vmem>>, vector<1x16x256xf32>,
    return
  }
  func.func @transform_0(%arg0: i32) -> (i32, i32, i32) {
    %c0_i32 = arith.constant 0 : i32
    %c0_i32_0 = arith.constant 0 : i32
    %c0_i32_1 = arith.constant 0 : i32
    return %arg0, %c0_i32, %c0_i32_0 : i32, i32, i32
  }
  func.func @transform_1(%arg0: i32) -> (i32, i32, i32) {
    %c0_i32 = arith.constant 0 : i32
    %c0_i32_0 = arith.constant 0 : i32
    %c0_i32_1 = arith.constant 0 : i32
    %c0_i32_2 = arith.constant 0 : i32
    return %c0_i32, %c0_i32_0, %c0_i32_1 : i32, i32, i32
  }
  func.func @transform_2(%arg0: i32) -> (i32, i32, i32) {
    %c0_i32 = arith.constant 0 : i32
    %c0_i32_0 = arith.constant 0 : i32
    %c0_i32_1 = arith.constant 0 : i32
    %c0_i32_2 = arith.constant 0 : i32
    return %c0_i32, %c0_i32_0, %c0_i32_1 : i32, i32, i32
  }
  func.func @transform_3(%arg0: i32) -> (i32, i32, i32) {
    %c0_i32 = arith.constant 0 : i32
    %c0_i32_0 = arith.constant 0 : i32
    %c0_i32_1 = arith.constant 0 : i32
    return %arg0, %c0_i32, %c0_i32_0 : i32, i32, i32
  }
}

</mosaic_0001>

<llo_original>
// kernel: tpu_custom_call.1
$region0: #{tpu_custom_call.1}
  #allocation0 [shape = 'u32[]', space=smem, size = 0x4, offset = 0x4, fixed_abs, tag = 'smem constant byte address 0x4 - core index']
  #allocation1 [shape = 'u32[72,128]{1,0:T(1,128)}', space=vmem, size = 0x9000, scoped, tag = 'internal scratch']
  #allocation2 [shape = 'f32[48,256]{1,0:T(8,128)}', space=vmem, size = 0xc000, scoped, tag = 'scratch operand']
  %s0 = inlined_call_operand.vmem [shape: f32[2,16,256], index: 0, kind: input, shape index: {}]
  %s1 = inlined_call_operand.hbm [shape: f32[8,48,48], index: 1, kind: input, shape index: {}]
  %s2 = inlined_call_operand.vmem [shape: f32[8,16,1], index: 2, kind: input, shape index: {}]
  %s3 = inlined_call_operand.hbm [shape: f32[2,16,256], index: 3, kind: output, shape index: {}]
  %s4 = sld [smem:[#allocation0]]
  $region49: #{tpu_custom_call.1} parent=0
    _
  %s6 = ssub.s32 1, %s4
  %s7 = scalar_select 0, %s6, %s4
  $region1: #{tpu_custom_call.1} parent=0
    #allocation3 [shape = 'u8[196608]{0}', space=vmem, size = 0x30000, scoped, tag = 'input window, operand 1, single buffered']
    #allocation4 [shape = 's32[2]{0}', space=sflag, size = 0x8, scoped, tag = 'scoped memory for tpu_custom_call.1']
    #allocation5 [shape = 's32[2]{0}', space=sflag, size = 0x8, scoped, tag = 'scoped memory for tpu_custom_call.1']
    #allocation6 [shape = 'u8[32768]{0}', space=vmem, size = 0x8000, scoped, tag = 'output window, operand 0']
    %8 = vsyncpa [#allocation4], 0
    %9 = vsyncpa [#allocation5], 0
    %s10 = scalar_lea.sflag [#allocation5], 1
    %11 = vsyncpa %s10, 0
    loop: start=0, step=1, limit=4
    $region2: #{tpu_custom_call.1} parent=1 // loop_pre_header
      _
    $region3: #{tpu_custom_call.1} parent=1 // loop_header
      %s13 = sphi 0, %s17
      %p14 = scmp.ge.s32.totalorder %s13, 4
      %s23 = sphi 0, %s25
      %s26 = sphi 0, %s23
      %s27 = sphi 0, %s26
      %s43 = sphi 0, %s27
      %s47 = sphi 0, %s47
      %s49 = sphi 0, %s47
      %s50 = sphi 0, %s49
      %s64 = sphi 0, %s50
      %s68 = sphi 0, %s68
      %s70 = sphi 0, %s68
      %s71 = sphi 0, %s70
      %s85 = sphi 0, %s71
      %s91 = sphi 0, %s93
      %s94 = sphi 0, %s91
      %s95 = sphi 0, %s94
      %s111 = sphi 0, %s95
    $region4: #{tpu_custom_call.1} parent=1 // loop_header_branch
      %16 = sbr.rel (%p14) target = $region8
    $region5: #{tpu_custom_call.1} parent=1 // loop_body
      %s18 = ssub.s32 %s13, 1
      %s19 = ssub.s32 %s13, 2
      %s20 = sadd.s32 %s13, 1
      %s21 = ssub.s32 %s13, %s20
      %p22 = scmp.eq.s32.totalorder %s21, 0
      %s24 = sadd.s32 %s23, 1
      %s25 = scalar_select %p22, %s23, %s24
      %p28 = pneg %p22
      %p29 = scmp.eq.s32.totalorder %s13, 1
      %p30 = por %p28, %p29
      %p31 = scmp.ne.s32.totalorder %s23, %s26
      %p32 = scmp.eq.s32.totalorder %s13, 0
      %p33 = por %p31, %p32
      %p34 = scmp.ne.s32.totalorder %s23, %s26
      %p35 = scmp.eq.s32.totalorder %s18, 1
      %p36 = por %p34, %p35
      %p37 = scmp.ne.s32.totalorder %s26, %s27
      %p38 = scmp.eq.s32.totalorder %s18, 0
      %p39 = por %p37, %p38
      %p40 = scmp.ne.s32.totalorder %s26, %s27
      %p41 = scmp.eq.s32.totalorder %s19, 1
      %p42 = por %p40, %p41
      %p44 = scmp.ne.s32.totalorder %s27, %s43
      %p45 = scmp.eq.s32.totalorder %s19, 0
      %p46 = por %p44, %p45
      %s48 = sadd.s32 %s47, 1
      %p51 = scmp.eq.s32.totalorder %s13, 1
      %p52 = scmp.ne.s32.totalorder %s47, %s49
      %p53 = scmp.eq.s32.totalorder %s13, 0
      %p54 = por %p52, %p53
      %p55 = scmp.ne.s32.totalorder %s47, %s49
      %p56 = scmp.eq.s32.totalorder %s18, 1
      %p57 = por %p55, %p56
      %p58 = scmp.ne.s32.totalorder %s49, %s50
      %p59 = scmp.eq.s32.totalorder %s18, 0
      %p60 = por %p58, %p59
      %p61 = scmp.ne.s32.totalorder %s49, %s50
      %p62 = scmp.eq.s32.totalorder %s19, 1
      %p63 = por %p61, %p62
      %p65 = scmp.ne.s32.totalorder %s50, %s64
      %p66 = scmp.eq.s32.totalorder %s19, 0
      %p67 = por %p65, %p66
      %s69 = sadd.s32 %s68, 1
      %p72 = scmp.eq.s32.totalorder %s13, 1
      %p73 = scmp.ne.s32.totalorder %s68, %s70
      %p74 = scmp.eq.s32.totalorder %s13, 0
      %p75 = por %p73, %p74
      %p76 = scmp.ne.s32.totalorder %s68, %s70
      %p77 = scmp.eq.s32.totalorder %s18, 1
      %p78 = por %p76, %p77
      %p79 = scmp.ne.s32.totalorder %s70, %s71
      %p80 = scmp.eq.s32.totalorder %s18, 0
      %p81 = por %p79, %p80
      %p82 = scmp.ne.s32.totalorder %s70, %s71
      %p83 = scmp.eq.s32.totalorder %s19, 1
      %p84 = por %p82, %p83
      %p86 = scmp.ne.s32.totalorder %s71, %s85
      %p87 = scmp.eq.s32.totalorder %s19, 0
      %p88 = por %p86, %p87
      %s89 = ssub.s32 %s13, %s20
      %p90 = scmp.eq.s32.totalorder %s89, 0
      %s92 = sadd.s32 %s91, 1
      %s93 = scalar_select %p90, %s91, %s92
      %p96 = pneg %p90
      %p97 = scmp.eq.s32.totalorder %s13, 1
      %p98 = por %p96, %p97
      %p99 = scmp.ne.s32.totalorder %s91, %s94
      %p100 = scmp.eq.s32.totalorder %s13, 0
      %p101 = por %p99, %p100
      %p102 = scmp.ne.s32.totalorder %s91, %s94
      %p103 = scmp.eq.s32.totalorder %s18, 1
      %p104 = por %p102, %p103
      %p105 = scmp.ne.s32.totalorder %s94, %s95
      %p106 = scmp.eq.s32.totalorder %s18, 0
      %p107 = por %p105, %p106
      %p108 = scmp.ne.s32.totalorder %s94, %s95
      %p109 = scmp.eq.s32.totalorder %s19, 1
      %p110 = por %p108, %p109
      %p112 = scmp.ne.s32.totalorder %s95, %s111
      %p113 = scmp.eq.s32.totalorder %s19, 0
      %p114 = por %p112, %p113
      %p115 = scmp.le.s32.totalorder 1, %s13
      %p116 = scmp.lt.s32.totalorder %s13, 3
      %p117 = pnand %p115, %p116
      %p118 = pneg %p117
      // Predicated region
      $region9: #{tpu_custom_call.1} parent=5 // pred_check
        _
      $region10: #{tpu_custom_call.1} parent=5 // pred_check_branch
        %120 = sbr.rel (%p117) target = $region12
      $region11: #{tpu_custom_call.1} parent=5 // pred_region
        %s121 = ssub.s32 %s13, 1
        // Predicated region
        $region13: #{tpu_custom_call.1} parent=11 // pred_check
          %p122 = pneg %p60
        $region14: #{tpu_custom_call.1} parent=11 // pred_check_branch
          %124 = sbr.rel (%p122) target = $region16
        $region15: #{tpu_custom_call.1} parent=11 // pred_region
          %126 = vsyncadd [#allocation4], 0
          %s127 = sshll.u32 %s1, 4
          %s128 = int_to_ptr.hbm [resolvable:$true] %s127
          %s129 = sshll.u32 [#allocation3], 4
          %s130 = int_to_ptr.vmem [resolvable:$true] %s129
          %135 = dma.hbm_to_vmem [thread:$0]  %s128, 6144, %s130, [#allocation4], 128, 128, 8
        $region16: #{tpu_custom_call.1} parent=11 // pred_fallthru
          _
        // Predicated region
        $region17: #{tpu_custom_call.1} parent=11 // pred_check
          %p136 = pneg %p81
        $region18: #{tpu_custom_call.1} parent=11 // pred_check_branch
          %138 = sbr.rel (%p136) target = $region20
        $region19: #{tpu_custom_call.1} parent=11 // pred_region
          _
        $region20: #{tpu_custom_call.1} parent=11 // pred_fallthru
          _
      $region12: #{tpu_custom_call.1} parent=5 // pred_fallthru
        _
      %p139 = scmp.lt.s32.totalorder %s13, 2
      // Predicated region
      $region21: #{tpu_custom_call.1} parent=5 // pred_check
        %p140 = pneg %p139
      $region22: #{tpu_custom_call.1} parent=5 // pred_check_branch
        %142 = sbr.rel (%p140) target = $region24
      $region23: #{tpu_custom_call.1} parent=5 // pred_region
        // Predicated region
        $region25: #{tpu_custom_call.1} parent=23 // pred_check
          %p143 = pneg %p33
        $region26: #{tpu_custom_call.1} parent=23 // pred_check_branch
          %145 = sbr.rel (%p143) target = $region28
        $region27: #{tpu_custom_call.1} parent=23 // pred_region
          %p146 = scmp.lt.s32.totalorder %s13, 1
          %s147 = scalar_select %p146, %s13, 1
          %s148 = smul.addr %s147, 4
          %s149 = smul.addr %s148, 8
          %s150 = scalar_lea.vmem %s0, %s149
        $region28: #{tpu_custom_call.1} parent=23 // pred_fallthru
          _
      $region24: #{tpu_custom_call.1} parent=5 // pred_fallthru
        _
      %p151 = scmp.le.s32.totalorder 1, %s13
      %p152 = scmp.lt.s32.totalorder %s13, 3
      %p153 = pnand %p151, %p152
      %p154 = pneg %p153
      // Predicated region
      $region29: #{tpu_custom_call.1} parent=5 // pred_check
        _
      $region30: #{tpu_custom_call.1} parent=5 // pred_check_branch
        %156 = sbr.rel (%p153) target = $region32
      $region31: #{tpu_custom_call.1} parent=5 // pred_region
        %s157 = ssub.s32 %s13, 1
        // Predicated region
        $region33: #{tpu_custom_call.1} parent=31 // pred_check
          %p158 = pneg %p60
        $region34: #{tpu_custom_call.1} parent=31 // pred_check_branch
          %160 = sbr.rel (%p158) target = $region36
        $region35: #{tpu_custom_call.1} parent=31 // pred_region
          %162 = dma.done [#allocation4], 6144
        $region36: #{tpu_custom_call.1} parent=31 // pred_fallthru
          _
        %p163 = scmp.lt.s32.totalorder %s18, 1
        %s164 = scalar_select %p163, %s18, 1
        %s165 = smul.addr %s164, 4
        %s166 = smul.addr %s165, 8
        %s167 = scalar_lea.vmem %s0, %s166
        %p168 = pneg %p39
        %p169 = pneg %p36
        %p170 = pneg %p60
        %p171 = pneg %p57
        %p172 = pneg %p81
        %p173 = pneg %p78
        %p174 = pneg %p107
        %p175 = pneg %p104
        %s176 = sand.u32 %s94, 1
        %s177 = scalar_lea.sflag [#allocation5], %s176
        %s178 = sand.u32 %s94, 1
        %s179 = smul.addr %s178, 32
        %s180 = scalar_lea.vmem [#allocation6], %s179
        %p181 = scmp.lt.s32.totalorder %s18, 1
        %s182 = scalar_select %p181, %s18, 1
        %s183 = smul.addr %s182, 4
        %s184 = smul.addr %s183, 8
        %s185 = scalar_lea.vmem %s0, %s184
        %v186 = vlaneseq
        %v187 = vand.u32 %v186, 127
        %v188 = vadd.s32 %v187, 128
        %vm189 = vcmp.lt.s32.totalorder %v187, 0
        %v190 = vsub.s32 0, %v187
        %v191 = vsel %vm189, %v190, %v187
        %v192 = vshrl.u32 %v191, 4
        %v193 = vand.u32 %v191, 15
        %v194 = vsub.s32 0, %v193
        %v195 = vsel %vm189, %v194, %v193
        %vm196 = vcmp.lt.s32.totalorder %v188, 0
        %v197 = vsub.s32 0, %v188
        %v198 = vsel %vm196, %v197, %v188
        %v199 = vshrl.u32 %v198, 4
        %v200 = vand.u32 %v198, 15
        %v201 = vsub.s32 0, %v200
        %v202 = vsel %vm196, %v201, %v200
        %vm203 = vcmp.ne.s32.totalorder %v195, 0
        %vm204 = vcmp.ne.s32.totalorder %v202, 0
        %vm205 = vcmp.lt.s32.totalorder %v195, 0
        %vm206 = vcmp.lt.s32.totalorder %v202, 0
        %vm207 = vmand %vm205, %vm203
        %vm208 = vmand %vm206, %vm204
        %v209 = vadd.s32 %v195, 16
        %v210 = vadd.s32 %v202, 16
        %v211 = vsel %vm207, %v209, %v195
        %v212 = vsel %vm208, %v210, %v202
        %vm213 = vcmp.eq.s32.totalorder %v211, 0
        %vm214 = vcmp.eq.s32.totalorder %v212, 0
        %vm215 = vcmp.eq.s32.totalorder %v211, 15
        %vm216 = vcmp.eq.s32.totalorder %v212, 15
        %v217 = vld [vmem:[%s185] sm:$0xff]
        %v218 = vld [vmem:[%s185 + $0x8] sm:$0xff]
        %v219 = vld [vmem:[%s185 + $0x10] sm:$0xff]
        %v220 = vld [vmem:[%s185 + $0x18] sm:$0xff]
        %221 = vrot.lane.b32.xlu0 %v217, 15
        %v222 = vpop.permute.xlu0 %221
        %223 = vrot.lane.b32.xlu0 %v219, 15
        %v224 = vpop.permute.xlu0 %223
        %225 = vrot.lane.b32.xlu0 %v218, 15
        %v226 = vpop.permute.xlu0 %225
        %227 = vrot.lane.b32.xlu0 %v220, 15
        %v228 = vpop.permute.xlu0 %227
        %vm229 = vcmp.lt.s32.totalorder %v187, 15
        %v230 = vsel %vm229, %v222, %v226
        %v231 = vsel %vm229, %v224, %v228
        %v232 = vsel %vm229, %v226, %v222
        %v233 = vsel %vm229, %v228, %v224
        %234 = vrot.lane.b32.xlu0 %v217, 127
        %v235 = vpop.permute.xlu0 %234
        %236 = vrot.lane.b32.xlu0 %v219, 127
        %v237 = vpop.permute.xlu0 %236
        %238 = vrot.lane.b32.xlu0 %v218, 127
        %v239 = vpop.permute.xlu0 %238
        %240 = vrot.lane.b32.xlu0 %v220, 127
        %v241 = vpop.permute.xlu0 %240
        %vm242 = vcmp.lt.s32.totalorder %v187, 127
        %v243 = vsel %vm242, %v235, %v239
        %v244 = vsel %vm242, %v237, %v241
        %v245 = vsel %vm242, %v239, %v235
        %v246 = vsel %vm242, %v241, %v237
        %v247 = vsel %vm215, 1, 0
        %v248 = vsel %vm216, 1, 0
        %vm249 = vcmp.eq.s32.totalorder %v247, 1
        %vm250 = vcmp.eq.s32.totalorder %v248, 1
        %v251 = vsel %vm249, %v232, %v243
        %v252 = vsel %vm250, %v230, %v245
        %v253 = vsel %vm249, %v233, %v244
        %v254 = vsel %vm250, %v231, %v246
        %255 = vrot.lane.b32.xlu0 %v217, 113
        %v256 = vpop.permute.xlu0 %255
        %257 = vrot.lane.b32.xlu0 %v219, 113
        %v258 = vpop.permute.xlu0 %257
        %259 = vrot.lane.b32.xlu0 %v218, 113
        %v260 = vpop.permute.xlu0 %259
        %261 = vrot.lane.b32.xlu0 %v220, 113
        %v262 = vpop.permute.xlu0 %261
        %vm263 = vcmp.lt.s32.totalorder %v187, 113
        %v264 = vsel %vm263, %v256, %v260
        %v265 = vsel %vm263, %v258, %v262
        %v266 = vsel %vm263, %v260, %v256
        %v267 = vsel %vm263, %v262, %v258
        %268 = vrot.lane.b32.xlu0 %v217, 1
        %v269 = vpop.permute.xlu0 %268
        %270 = vrot.lane.b32.xlu0 %v219, 1
        %v271 = vpop.permute.xlu0 %270
        %272 = vrot.lane.b32.xlu0 %v218, 1
        %v273 = vpop.permute.xlu0 %272
        %274 = vrot.lane.b32.xlu0 %v220, 1
        %v275 = vpop.permute.xlu0 %274
        %vm276 = vcmp.lt.s32.totalorder %v187, 1
        %v277 = vsel %vm276, %v269, %v273
        %v278 = vsel %vm276, %v271, %v275
        %v279 = vsel %vm276, %v273, %v269
        %v280 = vsel %vm276, %v275, %v271
        %v281 = vsel %vm213, 1, 0
        %v282 = vsel %vm214, 1, 0
        %vm283 = vcmp.eq.s32.totalorder %v281, 1
        %vm284 = vcmp.eq.s32.totalorder %v282, 1
        %v285 = vsel %vm283, %v264, %v279
        %v286 = vsel %vm284, %v266, %v277
        %v287 = vsel %vm283, %v265, %v280
        %v288 = vsel %vm284, %v267, %v278
        %289 = vst [vmem:[#allocation2] sm:$0xff] %v285
        %290 = vst [vmem:[#allocation2 + $0x8] sm:$0xff] %v286
        %291 = vst [vmem:[#allocation2 + $0x10] sm:$0xff] %v287
        %292 = vst [vmem:[#allocation2 + $0x18] sm:$0xff] %v288
        %293 = vst [vmem:[#allocation2 + $0x20] sm:$0xff] %v217
        %294 = vst [vmem:[#allocation2 + $0x28] sm:$0xff] %v218
        %295 = vst [vmem:[#allocation2 + $0x30] sm:$0xff] %v219
        %296 = vst [vmem:[#allocation2 + $0x38] sm:$0xff] %v220
        %297 = vst [vmem:[#allocation2 + $0x40] sm:$0xff] %v251
        %298 = vst [vmem:[#allocation2 + $0x48] sm:$0xff] %v252
        %299 = vst [vmem:[#allocation2 + $0x50] sm:$0xff] %v253
        %300 = vst [vmem:[#allocation2 + $0x58] sm:$0xff] %v254
        %v301 = vld [vmem:[#allocation3] sm:$0xff]
        %v302 = vld [vmem:[#allocation3 + $0x8] sm:$0xff]
        %v303 = vld [vmem:[#allocation3 + $0x10] sm:$0xff]
        %v304 = vld [vmem:[#allocation3 + $0x18] sm:$0xff]
        %v305 = vld [vmem:[#allocation3 + $0x20] sm:$0xff]
        %v306 = vld [vmem:[#allocation3 + $0x28] sm:$0xff]
        %v307 = vld [vmem:[#allocation2] sm:$0xff]
        %v308 = vld [vmem:[#allocation2 + $0x8] sm:$0xff]
        %v309 = vld [vmem:[#allocation2 + $0x10] sm:$0xff]
        %v310 = vld [vmem:[#allocation2 + $0x18] sm:$0xff]
        %v311 = vld [vmem:[#allocation2 + $0x20] sm:$0xff]
        %v312 = vld [vmem:[#allocation2 + $0x28] sm:$0xff]
        %v313 = vld [vmem:[#allocation2 + $0x30] sm:$0xff]
        %v314 = vld [vmem:[#allocation2 + $0x38] sm:$0xff]
        %v315 = vld [vmem:[#allocation2 + $0x40] sm:$0xff]
        %v316 = vld [vmem:[#allocation2 + $0x48] sm:$0xff]
        %v317 = vld [vmem:[#allocation2 + $0x50] sm:$0xff]
        %v318 = vld [vmem:[#allocation2 + $0x58] sm:$0xff]
        %vm319 = vcmask 392192
        %v321 = vsel %vm319, %v301, 0
        %v324 = vsel %vm319, %v302, 0
        %v327 = vsel %vm319, %v303, 0
        %v330 = vsel %vm319, %v304, 0
        %v333 = vsel %vm319, %v305, 0
        %v336 = vsel %vm319, %v306, 0
        %338 = vmatpush.msra.mxu0 0.0
        %339 = vmatpush.msra.mxu0 0.0
        %340 = vmatpush.msra.mxu0 0.0
        %341 = vmatpush.msra.mxu0 0.0
        %342 = vmatpush.msra.mxu0 0.0
        %343 = vmatpush.msra.mxu0 0.0
        %344 = vmatpush.msra.mxu0 0.0
        %345 = vmatpush.msra.mxu0 0.0
        %346 = vmatpush.msra.mxu0 0.0
        %347 = vmatpush.msra.mxu0 0.0
        %348 = vmatpush.msra.mxu0 %v317
        %349 = vmatpush.msra.mxu0 %v315
        %350 = vmatpush.msra.mxu0 %v313
        %351 = vmatpush.msra.mxu0 %v311
        %352 = vmatpush.msra.mxu0 %v309
        %353 = vmatpush.msra.mxu0 %v307
        %354 = vmatmul.f32.gmra.mxu0 %v321
        %v355 = vpop.f32.mrf.mxu0
        %v356 = vadd.f32 0.0, %v355
        %357 = vmatmul.f32.gmra.mxu0 %v324
        %v358 = vpop.f32.mrf.mxu0
        %v359 = vadd.f32 0.0, %v358
        %360 = vmatmul.f32.gmra.mxu0 %v327
        %v361 = vpop.f32.mrf.mxu0
        %v362 = vadd.f32 0.0, %v361
        %363 = vmatmul.f32.gmra.mxu0 %v330
        %v364 = vpop.f32.mrf.mxu0
        %v365 = vadd.f32 0.0, %v364
        %366 = vmatmul.f32.gmra.mxu0 %v333
        %v367 = vpop.f32.mrf.mxu0
        %v368 = vadd.f32 0.0, %v367
        %369 = vmatmul.f32.gmra.mxu0 %v336
        %v370 = vpop.f32.mrf.mxu0
        %v371 = vadd.f32 0.0, %v370
        %372 = vdwg.mxu0
        %373 = vmatpush.msra.mxu0 0.0
        %374 = vmatpush.msra.mxu0 0.0
        %375 = vmatpush.msra.mxu0 0.0
        %376 = vmatpush.msra.mxu0 0.0
        %377 = vmatpush.msra.mxu0 0.0
        %378 = vmatpush.msra.mxu0 0.0
        %379 = vmatpush.msra.mxu0 0.0
        %380 = vmatpush.msra.mxu0 0.0
        %381 = vmatpush.msra.mxu0 0.0
        %382 = vmatpush.msra.mxu0 0.0
        %383 = vmatpush.msra.mxu0 %v318
        %384 = vmatpush.msra.mxu0 %v316
        %385 = vmatpush.msra.mxu0 %v314
        %386 = vmatpush.msra.mxu0 %v312
        %387 = vmatpush.msra.mxu0 %v310
        %388 = vmatpush.msra.mxu0 %v308
        %389 = vmatmul.f32.gmra.mxu0 %v321
        %v390 = vpop.f32.mrf.mxu0
        %v391 = vadd.f32 0.0, %v390
        %392 = vmatmul.f32.gmra.mxu0 %v324
        %v393 = vpop.f32.mrf.mxu0
        %v394 = vadd.f32 0.0, %v393
        %395 = vmatmul.f32.gmra.mxu0 %v327
        %v396 = vpop.f32.mrf.mxu0
        %v397 = vadd.f32 0.0, %v396
        %398 = vmatmul.f32.gmra.mxu0 %v330
        %v399 = vpop.f32.mrf.mxu0
        %v400 = vadd.f32 0.0, %v399
        %401 = vmatmul.f32.gmra.mxu0 %v333
        %v402 = vpop.f32.mrf.mxu0
        %v403 = vadd.f32 0.0, %v402
        %404 = vmatmul.f32.gmra.mxu0 %v336
        %v405 = vpop.f32.mrf.mxu0
        %v406 = vadd.f32 0.0, %v405
        %407 = vdwg.mxu0
        %408 = vrot.lane.b32.xlu0 %v356, 16
        %v409 = vpop.permute.xlu0 %408
        %410 = vrot.lane.b32.xlu0 %v359, 16
        %v411 = vpop.permute.xlu0 %410
        %412 = vrot.lane.b32.xlu0 %v391, 16
        %v413 = vpop.permute.xlu0 %412
        %414 = vrot.lane.b32.xlu0 %v394, 16
        %v415 = vpop.permute.xlu0 %414
        %vm416 = vcmp.lt.s32.totalorder %v187, 16
        %v417 = vsel %vm416, %v409, %v413
        %v418 = vsel %vm416, %v411, %v415
        %v419 = vsel %vm416, %v413, %v409
        %v420 = vsel %vm416, %v415, %v411
        %v421 = vadd.f32 %v362, %v419
        %v422 = vadd.f32 %v397, %v417
        %v423 = vadd.f32 %v365, %v420
        %v424 = vadd.f32 %v400, %v418
        %425 = vrot.lane.b32.xlu0 %v368, 112
        %v426 = vpop.permute.xlu0 %425
        %427 = vrot.lane.b32.xlu0 %v371, 112
        %v428 = vpop.permute.xlu0 %427
        %429 = vrot.lane.b32.xlu0 %v403, 112
        %v430 = vpop.permute.xlu0 %429
        %431 = vrot.lane.b32.xlu0 %v406, 112
        %v432 = vpop.permute.xlu0 %431
        %vm433 = vcmp.lt.s32.totalorder %v187, 112
        %v434 = vsel %vm433, %v426, %v430
        %v435 = vsel %vm433, %v428, %v432
        %v436 = vsel %vm433, %v430, %v426
        %v437 = vsel %vm433, %v432, %v428
        %v438 = vadd.f32 %v421, %v434
        %v439 = vadd.f32 %v422, %v436
        %v440 = vadd.f32 %v423, %v435
        %v441 = vadd.f32 %v424, %v437
        %v442 = vld [vmem:[%s2] sm:$0xff]
        %v443 = vld [vmem:[%s2 + $0x8] sm:$0xff]
        %445 = vset.pattern.permute.xlu0 0
        %446 = vperm.xlu0 %445, %v442
        %v447 = vpop.permute.xlu0 %446
        %450 = vset.pattern.permute.xlu0 0
        %451 = vperm.xlu0 %450, %v443
        %v452 = vpop.permute.xlu0 %451
        %v454 = vadd.f32 %v438, %v447
        %v455 = vadd.f32 %v439, %v447
        %v456 = vadd.f32 %v440, %v452
        %v457 = vadd.f32 %v441, %v452
        %v458 = vmul.f32 %v454, 0.5
        %v459 = vmul.f32 %v455, 0.5
        %v460 = vmul.f32 %v456, 0.5
        %v461 = vmul.f32 %v457, 0.5
        %v462 = vmul.f32 %v454, 0.70710677
        %v463 = vmul.f32 %v455, 0.70710677
        %v464 = vmul.f32 %v456, 0.70710677
        %v465 = vmul.f32 %v457, 0.70710677
        %v466 = vmul.f32 %v462, %v462
        %v467 = vmin.f32 16.0, %v466
        %v468 = vmul.f32 %v467, 2.1237322e-06
        %v469 = vadd.f32 %v468, 0.00028619796
        %v470 = vmul.f32 %v467, %v469
        %v471 = vadd.f32 %v470, 0.0036580483
        %v472 = vmul.f32 %v467, %v471
        %v473 = vadd.f32 %v472, 0.05243302
        %v474 = vmul.f32 %v467, %v473
        %v475 = vadd.f32 %v474, 0.18741608
        %v476 = vmul.f32 %v467, %v475
        %v477 = vadd.f32 %v476, 1.1283791
        %v478 = vmul.f32 %v462, %v477
        %v479 = vmul.f32 %v467, 3.8918573e-05
        %v480 = vadd.f32 %v479, 0.001143296
        %v481 = vmul.f32 %v467, %v480
        %v482 = vadd.f32 %v481, 0.014752088
        %v483 = vmul.f32 %v467, %v482
        %v484 = vadd.f32 %v483, 0.112945676
        %v485 = vmul.f32 %v467, %v484
        %v486 = vadd.f32 %v485, 0.4994258
        %v487 = vmul.f32 %v467, %v486
        %v488 = vadd.f32 %v487, 1.0
        %v489 = vrcp.pop %v488
        %v490 = vmul.f32 %v488, %v489
        %v491 = vsub.f32 1.0, %v490
        %v492 = vmul.f32 %v489, %v491
        %v493 = vadd.f32 %v489, %v492
        %vm494 = vweird.f32 %v488
        %vm495 = vweird.f32 %v489
        %vm496 = vmor %vm494, %vm495
        %v497 = vsel %vm496, %v489, %v493
        %v498 = vand.u32 2147483647, %v488
        %vm499 = vcmp.eq.f32.partialorder %v498, 8.507059e+37
        %v500 = vand.u32 %v488, 2147483648
        %v501 = vor.u32 1.1754944e-38, %v500
        %v502 = vsel %vm499, %v501, %v497
        %v503 = vmul.f32 %v478, %v502
        %v504 = vmin.f32 %v503, 1.0
        %v505 = vmax.f32 %v504, -1.0
        %v506 = vmul.f32 %v463, %v463
        %v507 = vmin.f32 16.0, %v506
        %v508 = vmul.f32 %v507, 2.1237322e-06
        %v509 = vadd.f32 %v508, 0.00028619796
        %v510 = vmul.f32 %v507, %v509
        %v511 = vadd.f32 %v510, 0.0036580483
        %v512 = vmul.f32 %v507, %v511
        %v513 = vadd.f32 %v512, 0.05243302
        %v514 = vmul.f32 %v507, %v513
        %v515 = vadd.f32 %v514, 0.18741608
        %v516 = vmul.f32 %v507, %v515
        %v517 = vadd.f32 %v516, 1.1283791
        %v518 = vmul.f32 %v463, %v517
        %v519 = vmul.f32 %v507, 3.8918573e-05
        %v520 = vadd.f32 %v519, 0.001143296
        %v521 = vmul.f32 %v507, %v520
        %v522 = vadd.f32 %v521, 0.014752088
        %v523 = vmul.f32 %v507, %v522
        %v524 = vadd.f32 %v523, 0.112945676
        %v525 = vmul.f32 %v507, %v524
        %v526 = vadd.f32 %v525, 0.4994258
        %v527 = vmul.f32 %v507, %v526
        %v528 = vadd.f32 %v527, 1.0
        %v529 = vrcp.pop %v528
        %v530 = vmul.f32 %v528, %v529
        %v531 = vsub.f32 1.0, %v530
        %v532 = vmul.f32 %v529, %v531
        %v533 = vadd.f32 %v529, %v532
        %vm534 = vweird.f32 %v528
        %vm535 = vweird.f32 %v529
        %vm536 = vmor %vm534, %vm535
        %v537 = vsel %vm536, %v529, %v533
        %v538 = vand.u32 2147483647, %v528
        %vm539 = vcmp.eq.f32.partialorder %v538, 8.507059e+37
        %v540 = vand.u32 %v528, 2147483648
        %v541 = vor.u32 1.1754944e-38, %v540
        %v542 = vsel %vm539, %v541, %v537
        %v543 = vmul.f32 %v518, %v542
        %v544 = vmin.f32 %v543, 1.0
        %v545 = vmax.f32 %v544, -1.0
        %v546 = vmul.f32 %v464, %v464
        %v547 = vmin.f32 16.0, %v546
        %v548 = vmul.f32 %v547, 2.1237322e-06
        %v549 = vadd.f32 %v548, 0.00028619796
        %v550 = vmul.f32 %v547, %v549
        %v551 = vadd.f32 %v550, 0.0036580483
        %v552 = vmul.f32 %v547, %v551
        %v553 = vadd.f32 %v552, 0.05243302
        %v554 = vmul.f32 %v547, %v553
        %v555 = vadd.f32 %v554, 0.18741608
        %v556 = vmul.f32 %v547, %v555
        %v557 = vadd.f32 %v556, 1.1283791
        %v558 = vmul.f32 %v464, %v557
        %v559 = vmul.f32 %v547, 3.8918573e-05
        %v560 = vadd.f32 %v559, 0.001143296
        %v561 = vmul.f32 %v547, %v560
        %v562 = vadd.f32 %v561, 0.014752088
        %v563 = vmul.f32 %v547, %v562
        %v564 = vadd.f32 %v563, 0.112945676
        %v565 = vmul.f32 %v547, %v564
        %v566 = vadd.f32 %v565, 0.4994258
        %v567 = vmul.f32 %v547, %v566
        %v568 = vadd.f32 %v567, 1.0
        %v569 = vrcp.pop %v568
        %v570 = vmul.f32 %v568, %v569
        %v571 = vsub.f32 1.0, %v570
        %v572 = vmul.f32 %v569, %v571
        %v573 = vadd.f32 %v569, %v572
        %vm574 = vweird.f32 %v568
        %vm575 = vweird.f32 %v569
        %vm576 = vmor %vm574, %vm575
        %v577 = vsel %vm576, %v569, %v573
        %v578 = vand.u32 2147483647, %v568
        %vm579 = vcmp.eq.f32.partialorder %v578, 8.507059e+37
        %v580 = vand.u32 %v568, 2147483648
        %v581 = vor.u32 1.1754944e-38, %v580
        %v582 = vsel %vm579, %v581, %v577
        %v583 = vmul.f32 %v558, %v582
        %v584 = vmin.f32 %v583, 1.0
        %v585 = vmax.f32 %v584, -1.0
        %v586 = vmul.f32 %v465, %v465
        %v587 = vmin.f32 16.0, %v586
        %v588 = vmul.f32 %v587, 2.1237322e-06
        %v589 = vadd.f32 %v588, 0.00028619796
        %v590 = vmul.f32 %v587, %v589
        %v591 = vadd.f32 %v590, 0.0036580483
        %v592 = vmul.f32 %v587, %v591
        %v593 = vadd.f32 %v592, 0.05243302
        %v594 = vmul.f32 %v587, %v593
        %v595 = vadd.f32 %v594, 0.18741608
        %v596 = vmul.f32 %v587, %v595
        %v597 = vadd.f32 %v596, 1.1283791
        %v598 = vmul.f32 %v465, %v597
        %v599 = vmul.f32 %v587, 3.8918573e-05
        %v600 = vadd.f32 %v599, 0.001143296
        %v601 = vmul.f32 %v587, %v600
        %v602 = vadd.f32 %v601, 0.014752088
        %v603 = vmul.f32 %v587, %v602
        %v604 = vadd.f32 %v603, 0.112945676
        %v605 = vmul.f32 %v587, %v604
        %v606 = vadd.f32 %v605, 0.4994258
        %v607 = vmul.f32 %v587, %v606
        %v608 = vadd.f32 %v607, 1.0
        %v609 = vrcp.pop %v608
        %v610 = vmul.f32 %v608, %v609
        %v611 = vsub.f32 1.0, %v610
        %v612 = vmul.f32 %v609, %v611
        %v613 = vadd.f32 %v609, %v612
        %vm614 = vweird.f32 %v608
        %vm615 = vweird.f32 %v609
        %vm616 = vmor %vm614, %vm615
        %v617 = vsel %vm616, %v609, %v613
        %v618 = vand.u32 2147483647, %v608
        %vm619 = vcmp.eq.f32.partialorder %v618, 8.507059e+37
        %v620 = vand.u32 %v608, 2147483648
        %v621 = vor.u32 1.1754944e-38, %v620
        %v622 = vsel %vm619, %v621, %v617
        %v623 = vmul.f32 %v598, %v622
        %v624 = vmin.f32 %v623, 1.0
        %v625 = vmax.f32 %v624, -1.0
        %v626 = vadd.f32 %v505, 1.0
        %v627 = vadd.f32 %v545, 1.0
        %v628 = vadd.f32 %v585, 1.0
        %v629 = vadd.f32 %v625, 1.0
        %v630 = vmul.f32 %v458, %v626
        %v631 = vmul.f32 %v459, %v627
        %v632 = vmul.f32 %v460, %v628
        %v633 = vmul.f32 %v461, %v629
        %634 = vrot.lane.b32.xlu0 %v630, 15
        %v635 = vpop.permute.xlu0 %634
        %636 = vrot.lane.b32.xlu0 %v632, 15
        %v637 = vpop.permute.xlu0 %636
        %638 = vrot.lane.b32.xlu0 %v631, 15
        %v639 = vpop.permute.xlu0 %638
        %640 = vrot.lane.b32.xlu0 %v633, 15
        %v641 = vpop.permute.xlu0 %640
        %v642 = vsel %vm229, %v635, %v639
        %v643 = vsel %vm229, %v637, %v641
        %v644 = vsel %vm229, %v639, %v635
        %v645 = vsel %vm229, %v641, %v637
        %646 = vrot.lane.b32.xlu0 %v630, 127
        %v647 = vpop.permute.xlu0 %646
        %648 = vrot.lane.b32.xlu0 %v632, 127
        %v649 = vpop.permute.xlu0 %648
        %650 = vrot.lane.b32.xlu0 %v631, 127
        %v651 = vpop.permute.xlu0 %650
        %652 = vrot.lane.b32.xlu0 %v633, 127
        %v653 = vpop.permute.xlu0 %652
        %v654 = vsel %vm242, %v647, %v651
        %v655 = vsel %vm242, %v649, %v653
        %v656 = vsel %vm242, %v651, %v647
        %v657 = vsel %vm242, %v653, %v649
        %v658 = vsel %vm249, %v644, %v654
        %v659 = vsel %vm250, %v642, %v656
        %v660 = vsel %vm249, %v645, %v655
        %v661 = vsel %vm250, %v643, %v657
        %662 = vrot.lane.b32.xlu0 %v630, 113
        %v663 = vpop.permute.xlu0 %662
        %664 = vrot.lane.b32.xlu0 %v632, 113
        %v665 = vpop.permute.xlu0 %664
        %666 = vrot.lane.b32.xlu0 %v631, 113
        %v667 = vpop.permute.xlu0 %666
        %668 = vrot.lane.b32.xlu0 %v633, 113
        %v669 = vpop.permute.xlu0 %668
        %v670 = vsel %vm263, %v663, %v667
        %v671 = vsel %vm263, %v665, %v669
        %v672 = vsel %vm263, %v667, %v663
        %v673 = vsel %vm263, %v669, %v665
        %674 = vrot.lane.b32.xlu0 %v630, 1
        %v675 = vpop.permute.xlu0 %674
        %676 = vrot.lane.b32.xlu0 %v632, 1
        %v677 = vpop.permute.xlu0 %676
        %678 = vrot.lane.b32.xlu0 %v631, 1
        %v679 = vpop.permute.xlu0 %678
        %680 = vrot.lane.b32.xlu0 %v633, 1
        %v681 = vpop.permute.xlu0 %680
        %v682 = vsel %vm276, %v675, %v679
        %v683 = vsel %vm276, %v677, %v681
        %v684 = vsel %vm276, %v679, %v675
        %v685 = vsel %vm276, %v681, %v677
        %v686 = vsel %vm283, %v670, %v684
        %v687 = vsel %vm284, %v672, %v682
        %v688 = vsel %vm283, %v671, %v685
        %v689 = vsel %vm284, %v673, %v683
        %690 = vst [vmem:[#allocation2] sm:$0xff] %v686
        %691 = vst [vmem:[#allocation2 + $0x8] sm:$0xff] %v687
        %692 = vst [vmem:[#allocation2 + $0x10] sm:$0xff] %v688
        %693 = vst [vmem:[#allocation2 + $0x18] sm:$0xff] %v689
        %694 = vst [vmem:[#allocation2 + $0x20] sm:$0xff] %v630
        %695 = vst [vmem:[#allocation2 + $0x28] sm:$0xff] %v631
        %696 = vst [vmem:[#allocation2 + $0x30] sm:$0xff] %v632
        %697 = vst [vmem:[#allocation2 + $0x38] sm:$0xff] %v633
        %698 = vst [vmem:[#allocation2 + $0x40] sm:$0xff] %v658
        %699 = vst [vmem:[#allocation2 + $0x48] sm:$0xff] %v659
        %700 = vst [vmem:[#allocation2 + $0x50] sm:$0xff] %v660
        %701 = vst [vmem:[#allocation2 + $0x58] sm:$0xff] %v661
        %s702 = scalar_lea.vmem [#allocation3], 48
        %v703 = vld [vmem:[%s702] sm:$0xff]
        %v704 = vld [vmem:[%s702 + $0x8] sm:$0xff]
        %v705 = vld [vmem:[%s702 + $0x10] sm:$0xff]
        %v706 = vld [vmem:[%s702 + $0x18] sm:$0xff]
        %v707 = vld [vmem:[%s702 + $0x20] sm:$0xff]
        %v708 = vld [vmem:[%s702 + $0x28] sm:$0xff]
        %v709 = vld [vmem:[#allocation2] sm:$0xff]
        %v710 = vld [vmem:[#allocation2 + $0x8] sm:$0xff]
        %v711 = vld [vmem:[#allocation2 + $0x10] sm:$0xff]
        %v712 = vld [vmem:[#allocation2 + $0x18] sm:$0xff]
        %v713 = vld [vmem:[#allocation2 + $0x20] sm:$0xff]
        %v714 = vld [vmem:[#allocation2 + $0x28] sm:$0xff]
        %v715 = vld [vmem:[#allocation2 + $0x30] sm:$0xff]
        %v716 = vld [vmem:[#allocation2 + $0x38] sm:$0xff]
        %v717 = vld [vmem:[#allocation2 + $0x40] sm:$0xff]
        %v718 = vld [vmem:[#allocation2 + $0x48] sm:$0xff]
        %v719 = vld [vmem:[#allocation2 + $0x50] sm:$0xff]
        %v720 = vld [vmem:[#allocation2 + $0x58] sm:$0xff]
        %v722 = vsel %vm319, %v703, 0
        %v725 = vsel %vm319, %v704, 0
        %v728 = vsel %vm319, %v705, 0
        %v731 = vsel %vm319, %v706, 0
        %v734 = vsel %vm319, %v707, 0
        %v737 = vsel %vm319, %v708, 0
        %739 = vmatpush.msra.mxu0 0.0
        %740 = vmatpush.msra.mxu0 0.0
        %741 = vmatpush.msra.mxu0 0.0
        %742 = vmatpush.msra.mxu0 0.0
        %743 = vmatpush.msra.mxu0 0.0
        %744 = vmatpush.msra.mxu0 0.0
        %745 = vmatpush.msra.mxu0 0.0
        %746 = vmatpush.msra.mxu0 0.0
        %747 = vmatpush.msra.mxu0 0.0
        %748 = vmatpush.msra.mxu0 0.0
        %749 = vmatpush.msra.mxu0 %v719
        %750 = vmatpush.msra.mxu0 %v717
        %751 = vmatpush.msra.mxu0 %v715
        %752 = vmatpush.msra.mxu0 %v713
        %753 = vmatpush.msra.mxu0 %v711
        %754 = vmatpush.msra.mxu0 %v709
        %755 = vmatmul.f32.gmra.mxu0 %v722
        %v756 = vpop.f32.mrf.mxu0
        %v757 = vadd.f32 0.0, %v756
        %758 = vmatmul.f32.gmra.mxu0 %v725
        %v759 = vpop.f32.mrf.mxu0
        %v760 = vadd.f32 0.0, %v759
        %761 = vmatmul.f32.gmra.mxu0 %v728
        %v762 = vpop.f32.mrf.mxu0
        %v763 = vadd.f32 0.0, %v762
        %764 = vmatmul.f32.gmra.mxu0 %v731
        %v765 = vpop.f32.mrf.mxu0
        %v766 = vadd.f32 0.0, %v765
        %767 = vmatmul.f32.gmra.mxu0 %v734
        %v768 = vpop.f32.mrf.mxu0
        %v769 = vadd.f32 0.0, %v768
        %770 = vmatmul.f32.gmra.mxu0 %v737
        %v771 = vpop.f32.mrf.mxu0
        %v772 = vadd.f32 0.0, %v771
        %773 = vdwg.mxu0
        %774 = vmatpush.msra.mxu0 0.0
        %775 = vmatpush.msra.mxu0 0.0
        %776 = vmatpush.msra.mxu0 0.0
        %777 = vmatpush.msra.mxu0 0.0
        %778 = vmatpush.msra.mxu0 0.0
        %779 = vmatpush.msra.mxu0 0.0
        %780 = vmatpush.msra.mxu0 0.0
        %781 = vmatpush.msra.mxu0 0.0
        %782 = vmatpush.msra.mxu0 0.0
        %783 = vmatpush.msra.mxu0 0.0
        %784 = vmatpush.msra.mxu0 %v720
        %785 = vmatpush.msra.mxu0 %v718
        %786 = vmatpush.msra.mxu0 %v716
        %787 = vmatpush.msra.mxu0 %v714
        %788 = vmatpush.msra.mxu0 %v712
        %789 = vmatpush.msra.mxu0 %v710
        %790 = vmatmul.f32.gmra.mxu0 %v722
        %v791 = vpop.f32.mrf.mxu0
        %v792 = vadd.f32 0.0, %v791
        %793 = vmatmul.f32.gmra.mxu0 %v725
        %v794 = vpop.f32.mrf.mxu0
        %v795 = vadd.f32 0.0, %v794
        %796 = vmatmul.f32.gmra.mxu0 %v728
        %v797 = vpop.f32.mrf.mxu0
        %v798 = vadd.f32 0.0, %v797
        %799 = vmatmul.f32.gmra.mxu0 %v731
        %v800 = vpop.f32.mrf.mxu0
        %v801 = vadd.f32 0.0, %v800
        %802 = vmatmul.f32.gmra.mxu0 %v734
        %v803 = vpop.f32.mrf.mxu0
        %v804 = vadd.f32 0.0, %v803
        %805 = vmatmul.f32.gmra.mxu0 %v737
        %v806 = vpop.f32.mrf.mxu0
        %v807 = vadd.f32 0.0, %v806
        %808 = vdwg.mxu0
        %809 = vrot.lane.b32.xlu0 %v757, 16
        %v810 = vpop.permute.xlu0 %809
        %811 = vrot.lane.b32.xlu0 %v760, 16
        %v812 = vpop.permute.xlu0 %811
        %813 = vrot.lane.b32.xlu0 %v792, 16
        %v814 = vpop.permute.xlu0 %813
        %815 = vrot.lane.b32.xlu0 %v795, 16
        %v816 = vpop.permute.xlu0 %815
        %v817 = vsel %vm416, %v810, %v814
        %v818 = vsel %vm416, %v812, %v816
        %v819 = vsel %vm416, %v814, %v810
        %v820 = vsel %vm416, %v816, %v812
        %v821 = vadd.f32 %v763, %v819
        %v822 = vadd.f32 %v798, %v817
        %v823 = vadd.f32 %v766, %v820
        %v824 = vadd.f32 %v801, %v818
        %825 = vrot.lane.b32.xlu0 %v769, 112
        %v826 = vpop.permute.xlu0 %825
        %827 = vrot.lane.b32.xlu0 %v772, 112
        %v828 = vpop.permute.xlu0 %827
        %829 = vrot.lane.b32.xlu0 %v804, 112
        %v830 = vpop.permute.xlu0 %829
        %831 = vrot.lane.b32.xlu0 %v807, 112
        %v832 = vpop.permute.xlu0 %831
        %v833 = vsel %vm433, %v826, %v830
        %v834 = vsel %vm433, %v828, %v832
        %v835 = vsel %vm433, %v830, %v826
        %v836 = vsel %vm433, %v832, %v828
        %v837 = vadd.f32 %v821, %v833
        %v838 = vadd.f32 %v822, %v835
        %v839 = vadd.f32 %v823, %v834
        %v840 = vadd.f32 %v824, %v836
        %s841 = scalar_lea.vmem %s2, 16
        %v842 = vld [vmem:[%s841] sm:$0xff]
        %v843 = vld [vmem:[%s841 + $0x8] sm:$0xff]
        %845 = vset.pattern.permute.xlu0 0
        %846 = vperm.xlu0 %845, %v842
        %v847 = vpop.permute.xlu0 %846
        %850 = vset.pattern.permute.xlu0 0
        %851 = vperm.xlu0 %850, %v843
        %v852 = vpop.permute.xlu0 %851
        %v854 = vadd.f32 %v837, %v847
        %v855 = vadd.f32 %v838, %v847
        %v856 = vadd.f32 %v839, %v852
        %v857 = vadd.f32 %v840, %v852
        %v858 = vmul.f32 %v854, 0.5
        %v859 = vmul.f32 %v855, 0.5
        %v860 = vmul.f32 %v856, 0.5
        %v861 = vmul.f32 %v857, 0.5
        %v862 = vmul.f32 %v854, 0.70710677
        %v863 = vmul.f32 %v855, 0.70710677
        %v864 = vmul.f32 %v856, 0.70710677
        %v865 = vmul.f32 %v857, 0.70710677
        %v866 = vmul.f32 %v862, %v862
        %v867 = vmin.f32 16.0, %v866
        %v868 = vmul.f32 %v867, 2.1237322e-06
        %v869 = vadd.f32 %v868, 0.00028619796
        %v870 = vmul.f32 %v867, %v869
        %v871 = vadd.f32 %v870, 0.0036580483
        %v872 = vmul.f32 %v867, %v871
        %v873 = vadd.f32 %v872, 0.05243302
        %v874 = vmul.f32 %v867, %v873
        %v875 = vadd.f32 %v874, 0.18741608
        %v876 = vmul.f32 %v867, %v875
        %v877 = vadd.f32 %v876, 1.1283791
        %v878 = vmul.f32 %v862, %v877
        %v879 = vmul.f32 %v867, 3.8918573e-05
        %v880 = vadd.f32 %v879, 0.001143296
        %v881 = vmul.f32 %v867, %v880
        %v882 = vadd.f32 %v881, 0.014752088
        %v883 = vmul.f32 %v867, %v882
        %v884 = vadd.f32 %v883, 0.112945676
        %v885 = vmul.f32 %v867, %v884
        %v886 = vadd.f32 %v885, 0.4994258
        %v887 = vmul.f32 %v867, %v886
        %v888 = vadd.f32 %v887, 1.0
        %v889 = vrcp.pop %v888
        %v890 = vmul.f32 %v888, %v889
        %v891 = vsub.f32 1.0, %v890
        %v892 = vmul.f32 %v889, %v891
        %v893 = vadd.f32 %v889, %v892
        %vm894 = vweird.f32 %v888
        %vm895 = vweird.f32 %v889
        %vm896 = vmor %vm894, %vm895
        %v897 = vsel %vm896, %v889, %v893
        %v898 = vand.u32 2147483647, %v888
        %vm899 = vcmp.eq.f32.partialorder %v898, 8.507059e+37
        %v900 = vand.u32 %v888, 2147483648
        %v901 = vor.u32 1.1754944e-38, %v900
        %v902 = vsel %vm899, %v901, %v897
        %v903 = vmul.f32 %v878, %v902
        %v904 = vmin.f32 %v903, 1.0
        %v905 = vmax.f32 %v904, -1.0
        %v906 = vmul.f32 %v863, %v863
        %v907 = vmin.f32 16.0, %v906
        %v908 = vmul.f32 %v907, 2.1237322e-06
        %v909 = vadd.f32 %v908, 0.00028619796
        %v910 = vmul.f32 %v907, %v909
        %v911 = vadd.f32 %v910, 0.0036580483
        %v912 = vmul.f32 %v907, %v911
        %v913 = vadd.f32 %v912, 0.05243302
        %v914 = vmul.f32 %v907, %v913
        %v915 = vadd.f32 %v914, 0.18741608
        %v916 = vmul.f32 %v907, %v915
        %v917 = vadd.f32 %v916, 1.1283791
        %v918 = vmul.f32 %v863, %v917
        %v919 = vmul.f32 %v907, 3.8918573e-05
        %v920 = vadd.f32 %v919, 0.001143296
        %v921 = vmul.f32 %v907, %v920
        %v922 = vadd.f32 %v921, 0.014752088
        %v923 = vmul.f32 %v907, %v922
        %v924 = vadd.f32 %v923, 0.112945676
        %v925 = vmul.f32 %v907, %v924
        %v926 = vadd.f32 %v925, 0.4994258
        %v927 = vmul.f32 %v907, %v926
        %v928 = vadd.f32 %v927, 1.0
        %v929 = vrcp.pop %v928
        %v930 = vmul.f32 %v928, %v929
        %v931 = vsub.f32 1.0, %v930
        %v932 = vmul.f32 %v929, %v931
        %v933 = vadd.f32 %v929, %v932
        %vm934 = vweird.f32 %v928
        %vm935 = vweird.f32 %v929
        %vm936 = vmor %vm934, %vm935
        %v937 = vsel %vm936, %v929, %v933
        %v938 = vand.u32 2147483647, %v928
        %vm939 = vcmp.eq.f32.partialorder %v938, 8.507059e+37
        %v940 = vand.u32 %v928, 2147483648
        %v941 = vor.u32 1.1754944e-38, %v940
        %v942 = vsel %vm939, %v941, %v937
        %v943 = vmul.f32 %v918, %v942
        %v944 = vmin.f32 %v943, 1.0
        %v945 = vmax.f32 %v944, -1.0
        %v946 = vmul.f32 %v864, %v864
        %v947 = vmin.f32 16.0, %v946
        %v948 = vmul.f32 %v947, 2.1237322e-06
        %v949 = vadd.f32 %v948, 0.00028619796
        %v950 = vmul.f32 %v947, %v949
        %v951 = vadd.f32 %v950, 0.0036580483
        %v952 = vmul.f32 %v947, %v951
        %v953 = vadd.f32 %v952, 0.05243302
        %v954 = vmul.f32 %v947, %v953
        %v955 = vadd.f32 %v954, 0.18741608
        %v956 = vmul.f32 %v947, %v955
        %v957 = vadd.f32 %v956, 1.1283791
        %v958 = vmul.f32 %v864, %v957
        %v959 = vmul.f32 %v947, 3.8918573e-05
        %v960 = vadd.f32 %v959, 0.001143296
        %v961 = vmul.f32 %v947, %v960
        %v962 = vadd.f32 %v961, 0.014752088
        %v963 = vmul.f32 %v947, %v962
        %v964 = vadd.f32 %v963, 0.112945676
        %v965 = vmul.f32 %v947, %v964
        %v966 = vadd.f32 %v965, 0.4994258
        %v967 = vmul.f32 %v947, %v966
        %v968 = vadd.f32 %v967, 1.0
        %v969 = vrcp.pop %v968
        %v970 = vmul.f32 %v968, %v969
        %v971 = vsub.f32 1.0, %v970
        %v972 = vmul.f32 %v969, %v971
        %v973 = vadd.f32 %v969, %v972
        %vm974 = vweird.f32 %v968
        %vm975 = vweird.f32 %v969
        %vm976 = vmor %vm974, %vm975
        %v977 = vsel %vm976, %v969, %v973
        %v978 = vand.u32 2147483647, %v968
        %vm979 = vcmp.eq.f32.partialorder %v978, 8.507059e+37
        %v980 = vand.u32 %v968, 2147483648
        %v981 = vor.u32 1.1754944e-38, %v980
        %v982 = vsel %vm979, %v981, %v977
        %v983 = vmul.f32 %v958, %v982
        %v984 = vmin.f32 %v983, 1.0
        %v985 = vmax.f32 %v984, -1.0
        %v986 = vmul.f32 %v865, %v865
        %v987 = vmin.f32 16.0, %v986
        %v988 = vmul.f32 %v987, 2.1237322e-06
        %v989 = vadd.f32 %v988, 0.00028619796
        %v990 = vmul.f32 %v987, %v989
        %v991 = vadd.f32 %v990, 0.0036580483
        %v992 = vmul.f32 %v987, %v991
        %v993 = vadd.f32 %v992, 0.05243302
        %v994 = vmul.f32 %v987, %v993
        %v995 = vadd.f32 %v994, 0.18741608
        %v996 = vmul.f32 %v987, %v995
        %v997 = vadd.f32 %v996, 1.1283791
        %v998 = vmul.f32 %v865, %v997
        %v999 = vmul.f32 %v987, 3.8918573e-05
        %v1000 = vadd.f32 %v999, 0.001143296
        %v1001 = vmul.f32 %v987, %v1000
        %v1002 = vadd.f32 %v1001, 0.014752088
        %v1003 = vmul.f32 %v987, %v1002
        %v1004 = vadd.f32 %v1003, 0.112945676
        %v1005 = vmul.f32 %v987, %v1004
        %v1006 = vadd.f32 %v1005, 0.4994258
        %v1007 = vmul.f32 %v987, %v1006
        %v1008 = vadd.f32 %v1007, 1.0
        %v1009 = vrcp.pop %v1008
        %v1010 = vmul.f32 %v1008, %v1009
        %v1011 = vsub.f32 1.0, %v1010
        %v1012 = vmul.f32 %v1009, %v1011
        %v1013 = vadd.f32 %v1009, %v1012
        %vm1014 = vweird.f32 %v1008
        %vm1015 = vweird.f32 %v1009
        %vm1016 = vmor %vm1014, %vm1015
        %v1017 = vsel %vm1016, %v1009, %v1013
        %v1018 = vand.u32 2147483647, %v1008
        %vm1019 = vcmp.eq.f32.partialorder %v1018, 8.507059e+37
        %v1020 = vand.u32 %v1008, 2147483648
        %v1021 = vor.u32 1.1754944e-38, %v1020
        %v1022 = vsel %vm1019, %v1021, %v1017
        %v1023 = vmul.f32 %v998, %v1022
        %v1024 = vmin.f32 %v1023, 1.0
        %v1025 = vmax.f32 %v1024, -1.0
        %v1026 = vadd.f32 %v905, 1.0
        %v1027 = vadd.f32 %v945, 1.0
        %v1028 = vadd.f32 %v985, 1.0
        %v1029 = vadd.f32 %v1025, 1.0
        %v1030 = vmul.f32 %v858, %v1026
        %v1031 = vmul.f32 %v859, %v1027
        %v1032 = vmul.f32 %v860, %v1028
        %v1033 = vmul.f32 %v861, %v1029
        %1034 = vrot.lane.b32.xlu0 %v1030, 15
        %v1035 = vpop.permute.xlu0 %1034
        %1036 = vrot.lane.b32.xlu0 %v1032, 15
        %v1037 = vpop.permute.xlu0 %1036
        %1038 = vrot.lane.b32.xlu0 %v1031, 15
        %v1039 = vpop.permute.xlu0 %1038
        %1040 = vrot.lane.b32.xlu0 %v1033, 15
        %v1041 = vpop.permute.xlu0 %1040
        %v1042 = vsel %vm229, %v1035, %v1039
        %v1043 = vsel %vm229, %v1037, %v1041
        %v1044 = vsel %vm229, %v1039, %v1035
        %v1045 = vsel %vm229, %v1041, %v1037
        %1046 = vrot.lane.b32.xlu0 %v1030, 127
        %v1047 = vpop.permute.xlu0 %1046
        %1048 = vrot.lane.b32.xlu0 %v1032, 127
        %v1049 = vpop.permute.xlu0 %1048
        %1050 = vrot.lane.b32.xlu0 %v1031, 127
        %v1051 = vpop.permute.xlu0 %1050
        %1052 = vrot.lane.b32.xlu0 %v1033, 127
        %v1053 = vpop.permute.xlu0 %1052
        %v1054 = vsel %vm242, %v1047, %v1051
        %v1055 = vsel %vm242, %v1049, %v1053
        %v1056 = vsel %vm242, %v1051, %v1047
        %v1057 = vsel %vm242, %v1053, %v1049
        %v1058 = vsel %vm249, %v1044, %v1054
        %v1059 = vsel %vm250, %v1042, %v1056
        %v1060 = vsel %vm249, %v1045, %v1055
        %v1061 = vsel %vm250, %v1043, %v1057
        %1062 = vrot.lane.b32.xlu0 %v1030, 113
        %v1063 = vpop.permute.xlu0 %1062
        %1064 = vrot.lane.b32.xlu0 %v1032, 113
        %v1065 = vpop.permute.xlu0 %1064
        %1066 = vrot.lane.b32.xlu0 %v1031, 113
        %v1067 = vpop.permute.xlu0 %1066
        %1068 = vrot.lane.b32.xlu0 %v1033, 113
        %v1069 = vpop.permute.xlu0 %1068
        %v1070 = vsel %vm263, %v1063, %v1067
        %v1071 = vsel %vm263, %v1065, %v1069
        %v1072 = vsel %vm263, %v1067, %v1063
        %v1073 = vsel %vm263, %v1069, %v1065
        %1074 = vrot.lane.b32.xlu0 %v1030, 1
        %v1075 = vpop.permute.xlu0 %1074
        %1076 = vrot.lane.b32.xlu0 %v1032, 1
        %v1077 = vpop.permute.xlu0 %1076
        %1078 = vrot.lane.b32.xlu0 %v1031, 1
        %v1079 = vpop.permute.xlu0 %1078
        %1080 = vrot.lane.b32.xlu0 %v1033, 1
        %v1081 = vpop.permute.xlu0 %1080
        %v1082 = vsel %vm276, %v1075, %v1079
        %v1083 = vsel %vm276, %v1077, %v1081
        %v1084 = vsel %vm276, %v1079, %v1075
        %v1085 = vsel %vm276, %v1081, %v1077
        %v1086 = vsel %vm283, %v1070, %v1084
        %v1087 = vsel %vm284, %v1072, %v1082
        %v1088 = vsel %vm283, %v1071, %v1085
        %v1089 = vsel %vm284, %v1073, %v1083
        %1090 = vst [vmem:[#allocation2] sm:$0xff] %v1086
        %1091 = vst [vmem:[#allocation2 + $0x8] sm:$0xff] %v1087
        %1092 = vst [vmem:[#allocation2 + $0x10] sm:$0xff] %v1088
        %1093 = vst [vmem:[#allocation2 + $0x18] sm:$0xff] %v1089
        %1094 = vst [vmem:[#allocation2 + $0x20] sm:$0xff] %v1030
        %1095 = vst [vmem:[#allocation2 + $0x28] sm:$0xff] %v1031
        %1096 = vst [vmem:[#allocation2 + $0x30] sm:$0xff] %v1032
        %1097 = vst [vmem:[#allocation2 + $0x38] sm:$0xff] %v1033
        %1098 = vst [vmem:[#allocation2 + $0x40] sm:$0xff] %v1058
        %1099 = vst [vmem:[#allocation2 + $0x48] sm:$0xff] %v1059
        %1100 = vst [vmem:[#allocation2 + $0x50] sm:$0xff] %v1060
        %1101 = vst [vmem:[#allocation2 + $0x58] sm:$0xff] %v1061
        %s1102 = scalar_lea.vmem [#allocation3], 96
        %v1103 = vld [vmem:[%s1102] sm:$0xff]
        %v1104 = vld [vmem:[%s1102 + $0x8] sm:$0xff]
        %v1105 = vld [vmem:[%s1102 + $0x10] sm:$0xff]
        %v1106 = vld [vmem:[%s1102 + $0x18] sm:$0xff]
        %v1107 = vld [vmem:[%s1102 + $0x20] sm:$0xff]
        %v1108 = vld [vmem:[%s1102 + $0x28] sm:$0xff]
        %v1109 = vld [vmem:[#allocation2] sm:$0xff]
        %v1110 = vld [vmem:[#allocation2 + $0x8] sm:$0xff]
        %v1111 = vld [vmem:[#allocation2 + $0x10] sm:$0xff]
        %v1112 = vld [vmem:[#allocation2 + $0x18] sm:$0xff]
        %v1113 = vld [vmem:[#allocation2 + $0x20] sm:$0xff]
        %v1114 = vld [vmem:[#allocation2 + $0x28] sm:$0xff]
        %v1115 = vld [vmem:[#allocation2 + $0x30] sm:$0xff]
        %v1116 = vld [vmem:[#allocation2 + $0x38] sm:$0xff]
        %v1117 = vld [vmem:[#allocation2 + $0x40] sm:$0xff]
        %v1118 = vld [vmem:[#allocation2 + $0x48] sm:$0xff]
        %v1119 = vld [vmem:[#allocation2 + $0x50] sm:$0xff]
        %v1120 = vld [vmem:[#allocation2 + $0x58] sm:$0xff]
        %v1122 = vsel %vm319, %v1103, 0
        %v1125 = vsel %vm319, %v1104, 0
        %v1128 = vsel %vm319, %v1105, 0
        %v1131 = vsel %vm319, %v1106, 0
        %v1134 = vsel %vm319, %v1107, 0
        %v1137 = vsel %vm319, %v1108, 0
        %1139 = vmatpush.msra.mxu0 0.0
        %1140 = vmatpush.msra.mxu0 0.0
        %1141 = vmatpush.msra.mxu0 0.0
        %1142 = vmatpush.msra.mxu0 0.0
        %1143 = vmatpush.msra.mxu0 0.0
        %1144 = vmatpush.msra.mxu0 0.0
        %1145 = vmatpush.msra.mxu0 0.0
        %1146 = vmatpush.msra.mxu0 0.0
        %1147 = vmatpush.msra.mxu0 0.0
        %1148 = vmatpush.msra.mxu0 0.0
        %1149 = vmatpush.msra.mxu0 %v1119
        %1150 = vmatpush.msra.mxu0 %v1117
        %1151 = vmatpush.msra.mxu0 %v1115
        %1152 = vmatpush.msra.mxu0 %v1113
        %1153 = vmatpush.msra.mxu0 %v1111
        %1154 = vmatpush.msra.mxu0 %v1109
        %1155 = vmatmul.f32.gmra.mxu0 %v1122
        %v1156 = vpop.f32.mrf.mxu0
        %v1157 = vadd.f32 0.0, %v1156
        %1158 = vmatmul.f32.gmra.mxu0 %v1125
        %v1159 = vpop.f32.mrf.mxu0
        %v1160 = vadd.f32 0.0, %v1159
        %1161 = vmatmul.f32.gmra.mxu0 %v1128
        %v1162 = vpop.f32.mrf.mxu0
        %v1163 = vadd.f32 0.0, %v1162
        %1164 = vmatmul.f32.gmra.mxu0 %v1131
        %v1165 = vpop.f32.mrf.mxu0
        %v1166 = vadd.f32 0.0, %v1165
        %1167 = vmatmul.f32.gmra.mxu0 %v1134
        %v1168 = vpop.f32.mrf.mxu0
        %v1169 = vadd.f32 0.0, %v1168
        %1170 = vmatmul.f32.gmra.mxu0 %v1137
        %v1171 = vpop.f32.mrf.mxu0
        %v1172 = vadd.f32 0.0, %v1171
        %1173 = vdwg.mxu0
        %1174 = vmatpush.msra.mxu0 0.0
        %1175 = vmatpush.msra.mxu0 0.0
        %1176 = vmatpush.msra.mxu0 0.0
        %1177 = vmatpush.msra.mxu0 0.0
        %1178 = vmatpush.msra.mxu0 0.0
        %1179 = vmatpush.msra.mxu0 0.0
        %1180 = vmatpush.msra.mxu0 0.0
        %1181 = vmatpush.msra.mxu0 0.0
        %1182 = vmatpush.msra.mxu0 0.0
        %1183 = vmatpush.msra.mxu0 0.0
        %1184 = vmatpush.msra.mxu0 %v1120
        %1185 = vmatpush.msra.mxu0 %v1118
        %1186 = vmatpush.msra.mxu0 %v1116
        %1187 = vmatpush.msra.mxu0 %v1114
        %1188 = vmatpush.msra.mxu0 %v1112
        %1189 = vmatpush.msra.mxu0 %v1110
        %1190 = vmatmul.f32.gmra.mxu0 %v1122
        %v1191 = vpop.f32.mrf.mxu0
        %v1192 = vadd.f32 0.0, %v1191
        %1193 = vmatmul.f32.gmra.mxu0 %v1125
        %v1194 = vpop.f32.mrf.mxu0
        %v1195 = vadd.f32 0.0, %v1194
        %1196 = vmatmul.f32.gmra.mxu0 %v1128
        %v1197 = vpop.f32.mrf.mxu0
        %v1198 = vadd.f32 0.0, %v1197
        %1199 = vmatmul.f32.gmra.mxu0 %v1131
        %v1200 = vpop.f32.mrf.mxu0
        %v1201 = vadd.f32 0.0, %v1200
        %1202 = vmatmul.f32.gmra.mxu0 %v1134
        %v1203 = vpop.f32.mrf.mxu0
        %v1204 = vadd.f32 0.0, %v1203
        %1205 = vmatmul.f32.gmra.mxu0 %v1137
        %v1206 = vpop.f32.mrf.mxu0
        %v1207 = vadd.f32 0.0, %v1206
        %1208 = vdwg.mxu0
        %1209 = vrot.lane.b32.xlu0 %v1157, 16
        %v1210 = vpop.permute.xlu0 %1209
        %1211 = vrot.lane.b32.xlu0 %v1160, 16
        %v1212 = vpop.permute.xlu0 %1211
        %1213 = vrot.lane.b32.xlu0 %v1192, 16
        %v1214 = vpop.permute.xlu0 %1213
        %1215 = vrot.lane.b32.xlu0 %v1195, 16
        %v1216 = vpop.permute.xlu0 %1215
        %v1217 = vsel %vm416, %v1210, %v1214
        %v1218 = vsel %vm416, %v1212, %v1216
        %v1219 = vsel %vm416, %v1214, %v1210
        %v1220 = vsel %vm416, %v1216, %v1212
        %v1221 = vadd.f32 %v1163, %v1219
        %v1222 = vadd.f32 %v1198, %v1217
        %v1223 = vadd.f32 %v1166, %v1220
        %v1224 = vadd.f32 %v1201, %v1218
        %1225 = vrot.lane.b32.xlu0 %v1169, 112
        %v1226 = vpop.permute.xlu0 %1225
        %1227 = vrot.lane.b32.xlu0 %v1172, 112
        %v1228 = vpop.permute.xlu0 %1227
        %1229 = vrot.lane.b32.xlu0 %v1204, 112
        %v1230 = vpop.permute.xlu0 %1229
        %1231 = vrot.lane.b32.xlu0 %v1207, 112
        %v1232 = vpop.permute.xlu0 %1231
        %v1233 = vsel %vm433, %v1226, %v1230
        %v1234 = vsel %vm433, %v1228, %v1232
        %v1235 = vsel %vm433, %v1230, %v1226
        %v1236 = vsel %vm433, %v1232, %v1228
        %v1237 = vadd.f32 %v1221, %v1233
        %v1238 = vadd.f32 %v1222, %v1235
        %v1239 = vadd.f32 %v1223, %v1234
        %v1240 = vadd.f32 %v1224, %v1236
        %s1241 = scalar_lea.vmem %s2, 32
        %v1242 = vld [vmem:[%s1241] sm:$0xff]
        %v1243 = vld [vmem:[%s1241 + $0x8] sm:$0xff]
        %1245 = vset.pattern.permute.xlu0 0
        %1246 = vperm.xlu0 %1245, %v1242
        %v1247 = vpop.permute.xlu0 %1246
        %1250 = vset.pattern.permute.xlu0 0
        %1251 = vperm.xlu0 %1250, %v1243
        %v1252 = vpop.permute.xlu0 %1251
        %v1254 = vadd.f32 %v1237, %v1247
        %v1255 = vadd.f32 %v1238, %v1247
        %v1256 = vadd.f32 %v1239, %v1252
        %v1257 = vadd.f32 %v1240, %v1252
        %v1258 = vadd.f32 %v1254, %v630
        %v1259 = vadd.f32 %v1255, %v631
        %v1260 = vadd.f32 %v1256, %v632
        %v1261 = vadd.f32 %v1257, %v633
        %v1262 = vmul.f32 %v1258, 0.5
        %v1263 = vmul.f32 %v1259, 0.5
        %v1264 = vmul.f32 %v1260, 0.5
        %v1265 = vmul.f32 %v1261, 0.5
        %v1266 = vmul.f32 %v1258, 0.70710677
        %v1267 = vmul.f32 %v1259, 0.70710677
        %v1268 = vmul.f32 %v1260, 0.70710677
        %v1269 = vmul.f32 %v1261, 0.70710677
        %v1270 = vmul.f32 %v1266, %v1266
        %v1271 = vmin.f32 16.0, %v1270
        %v1272 = vmul.f32 %v1271, 2.1237322e-06
        %v1273 = vadd.f32 %v1272, 0.00028619796
        %v1274 = vmul.f32 %v1271, %v1273
        %v1275 = vadd.f32 %v1274, 0.0036580483
        %v1276 = vmul.f32 %v1271, %v1275
        %v1277 = vadd.f32 %v1276, 0.05243302
        %v1278 = vmul.f32 %v1271, %v1277
        %v1279 = vadd.f32 %v1278, 0.18741608
        %v1280 = vmul.f32 %v1271, %v1279
        %v1281 = vadd.f32 %v1280, 1.1283791
        %v1282 = vmul.f32 %v1266, %v1281
        %v1283 = vmul.f32 %v1271, 3.8918573e-05
        %v1284 = vadd.f32 %v1283, 0.001143296
        %v1285 = vmul.f32 %v1271, %v1284
        %v1286 = vadd.f32 %v1285, 0.014752088
        %v1287 = vmul.f32 %v1271, %v1286
        %v1288 = vadd.f32 %v1287, 0.112945676
        %v1289 = vmul.f32 %v1271, %v1288
        %v1290 = vadd.f32 %v1289, 0.4994258
        %v1291 = vmul.f32 %v1271, %v1290
        %v1292 = vadd.f32 %v1291, 1.0
        %v1293 = vrcp.pop %v1292
        %v1294 = vmul.f32 %v1292, %v1293
        %v1295 = vsub.f32 1.0, %v1294
        %v1296 = vmul.f32 %v1293, %v1295
        %v1297 = vadd.f32 %v1293, %v1296
        %vm1298 = vweird.f32 %v1292
        %vm1299 = vweird.f32 %v1293
        %vm1300 = vmor %vm1298, %vm1299
        %v1301 = vsel %vm1300, %v1293, %v1297
        %v1302 = vand.u32 2147483647, %v1292
        %vm1303 = vcmp.eq.f32.partialorder %v1302, 8.507059e+37
        %v1304 = vand.u32 %v1292, 2147483648
        %v1305 = vor.u32 1.1754944e-38, %v1304
        %v1306 = vsel %vm1303, %v1305, %v1301
        %v1307 = vmul.f32 %v1282, %v1306
        %v1308 = vmin.f32 %v1307, 1.0
        %v1309 = vmax.f32 %v1308, -1.0
        %v1310 = vmul.f32 %v1267, %v1267
        %v1311 = vmin.f32 16.0, %v1310
        %v1312 = vmul.f32 %v1311, 2.1237322e-06
        %v1313 = vadd.f32 %v1312, 0.00028619796
        %v1314 = vmul.f32 %v1311, %v1313
        %v1315 = vadd.f32 %v1314, 0.0036580483
        %v1316 = vmul.f32 %v1311, %v1315
        %v1317 = vadd.f32 %v1316, 0.05243302
        %v1318 = vmul.f32 %v1311, %v1317
        %v1319 = vadd.f32 %v1318, 0.18741608
        %v1320 = vmul.f32 %v1311, %v1319
        %v1321 = vadd.f32 %v1320, 1.1283791
        %v1322 = vmul.f32 %v1267, %v1321
        %v1323 = vmul.f32 %v1311, 3.8918573e-05
        %v1324 = vadd.f32 %v1323, 0.001143296
        %v1325 = vmul.f32 %v1311, %v1324
        %v1326 = vadd.f32 %v1325, 0.014752088
        %v1327 = vmul.f32 %v1311, %v1326
        %v1328 = vadd.f32 %v1327, 0.112945676
        %v1329 = vmul.f32 %v1311, %v1328
        %v1330 = vadd.f32 %v1329, 0.4994258
        %v1331 = vmul.f32 %v1311, %v1330
        %v1332 = vadd.f32 %v1331, 1.0
        %v1333 = vrcp.pop %v1332
        %v1334 = vmul.f32 %v1332, %v1333
        %v1335 = vsub.f32 1.0, %v1334
        %v1336 = vmul.f32 %v1333, %v1335
        %v1337 = vadd.f32 %v1333, %v1336
        %vm1338 = vweird.f32 %v1332
        %vm1339 = vweird.f32 %v1333
        %vm1340 = vmor %vm1338, %vm1339
        %v1341 = vsel %vm1340, %v1333, %v1337
        %v1342 = vand.u32 2147483647, %v1332
        %vm1343 = vcmp.eq.f32.partialorder %v1342, 8.507059e+37
        %v1344 = vand.u32 %v1332, 2147483648
        %v1345 = vor.u32 1.1754944e-38, %v1344
        %v1346 = vsel %vm1343, %v1345, %v1341
        %v1347 = vmul.f32 %v1322, %v1346
        %v1348 = vmin.f32 %v1347, 1.0
        %v1349 = vmax.f32 %v1348, -1.0
        %v1350 = vmul.f32 %v1268, %v1268
        %v1351 = vmin.f32 16.0, %v1350
        %v1352 = vmul.f32 %v1351, 2.1237322e-06
        %v1353 = vadd.f32 %v1352, 0.00028619796
        %v1354 = vmul.f32 %v1351, %v1353
        %v1355 = vadd.f32 %v1354, 0.0036580483
        %v1356 = vmul.f32 %v1351, %v1355
        %v1357 = vadd.f32 %v1356, 0.05243302
        %v1358 = vmul.f32 %v1351, %v1357
        %v1359 = vadd.f32 %v1358, 0.18741608
        %v1360 = vmul.f32 %v1351, %v1359
        %v1361 = vadd.f32 %v1360, 1.1283791
        %v1362 = vmul.f32 %v1268, %v1361
        %v1363 = vmul.f32 %v1351, 3.8918573e-05
        %v1364 = vadd.f32 %v1363, 0.001143296
        %v1365 = vmul.f32 %v1351, %v1364
        %v1366 = vadd.f32 %v1365, 0.014752088
        %v1367 = vmul.f32 %v1351, %v1366
        %v1368 = vadd.f32 %v1367, 0.112945676
        %v1369 = vmul.f32 %v1351, %v1368
        %v1370 = vadd.f32 %v1369, 0.4994258
        %v1371 = vmul.f32 %v1351, %v1370
        %v1372 = vadd.f32 %v1371, 1.0
        %v1373 = vrcp.pop %v1372
        %v1374 = vmul.f32 %v1372, %v1373
        %v1375 = vsub.f32 1.0, %v1374
        %v1376 = vmul.f32 %v1373, %v1375
        %v1377 = vadd.f32 %v1373, %v1376
        %vm1378 = vweird.f32 %v1372
        %vm1379 = vweird.f32 %v1373
        %vm1380 = vmor %vm1378, %vm1379
        %v1381 = vsel %vm1380, %v1373, %v1377
        %v1382 = vand.u32 2147483647, %v1372
        %vm1383 = vcmp.eq.f32.partialorder %v1382, 8.507059e+37
        %v1384 = vand.u32 %v1372, 2147483648
        %v1385 = vor.u32 1.1754944e-38, %v1384
        %v1386 = vsel %vm1383, %v1385, %v1381
        %v1387 = vmul.f32 %v1362, %v1386
        %v1388 = vmin.f32 %v1387, 1.0
        %v1389 = vmax.f32 %v1388, -1.0
        %v1390 = vmul.f32 %v1269, %v1269
        %v1391 = vmin.f32 16.0, %v1390
        %v1392 = vmul.f32 %v1391, 2.1237322e-06
        %v1393 = vadd.f32 %v1392, 0.00028619796
        %v1394 = vmul.f32 %v1391, %v1393
        %v1395 = vadd.f32 %v1394, 0.0036580483
        %v1396 = vmul.f32 %v1391, %v1395
        %v1397 = vadd.f32 %v1396, 0.05243302
        %v1398 = vmul.f32 %v1391, %v1397
        %v1399 = vadd.f32 %v1398, 0.18741608
        %v1400 = vmul.f32 %v1391, %v1399
        %v1401 = vadd.f32 %v1400, 1.1283791
        %v1402 = vmul.f32 %v1269, %v1401
        %v1403 = vmul.f32 %v1391, 3.8918573e-05
        %v1404 = vadd.f32 %v1403, 0.001143296
        %v1405 = vmul.f32 %v1391, %v1404
        %v1406 = vadd.f32 %v1405, 0.014752088
        %v1407 = vmul.f32 %v1391, %v1406
        %v1408 = vadd.f32 %v1407, 0.112945676
        %v1409 = vmul.f32 %v1391, %v1408
        %v1410 = vadd.f32 %v1409, 0.4994258
        %v1411 = vmul.f32 %v1391, %v1410
        %v1412 = vadd.f32 %v1411, 1.0
        %v1413 = vrcp.pop %v1412
        %v1414 = vmul.f32 %v1412, %v1413
        %v1415 = vsub.f32 1.0, %v1414
        %v1416 = vmul.f32 %v1413, %v1415
        %v1417 = vadd.f32 %v1413, %v1416
        %vm1418 = vweird.f32 %v1412
        %vm1419 = vweird.f32 %v1413
        %vm1420 = vmor %vm1418, %vm1419
        %v1421 = vsel %vm1420, %v1413, %v1417
        %v1422 = vand.u32 2147483647, %v1412
        %vm1423 = vcmp.eq.f32.partialorder %v1422, 8.507059e+37
        %v1424 = vand.u32 %v1412, 2147483648
        %v1425 = vor.u32 1.1754944e-38, %v1424
        %v1426 = vsel %vm1423, %v1425, %v1421
        %v1427 = vmul.f32 %v1402, %v1426
        %v1428 = vmin.f32 %v1427, 1.0
        %v1429 = vmax.f32 %v1428, -1.0
        %v1430 = vadd.f32 %v1309, 1.0
        %v1431 = vadd.f32 %v1349, 1.0
        %v1432 = vadd.f32 %v1389, 1.0
        %v1433 = vadd.f32 %v1429, 1.0
        %v1434 = vmul.f32 %v1262, %v1430
        %v1435 = vmul.f32 %v1263, %v1431
        %v1436 = vmul.f32 %v1264, %v1432
        %v1437 = vmul.f32 %v1265, %v1433
        %1438 = vrot.lane.b32.xlu0 %v1434, 15
        %v1439 = vpop.permute.xlu0 %1438
        %1440 = vrot.lane.b32.xlu0 %v1436, 15
        %v1441 = vpop.permute.xlu0 %1440
        %1442 = vrot.lane.b32.xlu0 %v1435, 15
        %v1443 = vpop.permute.xlu0 %1442
        %1444 = vrot.lane.b32.xlu0 %v1437, 15
        %v1445 = vpop.permute.xlu0 %1444
        %v1446 = vsel %vm229, %v1439, %v1443
        %v1447 = vsel %vm229, %v1441, %v1445
        %v1448 = vsel %vm229, %v1443, %v1439
        %v1449 = vsel %vm229, %v1445, %v1441
        %1450 = vrot.lane.b32.xlu0 %v1434, 127
        %v1451 = vpop.permute.xlu0 %1450
        %1452 = vrot.lane.b32.xlu0 %v1436, 127
        %v1453 = vpop.permute.xlu0 %1452
        %1454 = vrot.lane.b32.xlu0 %v1435, 127
        %v1455 = vpop.permute.xlu0 %1454
        %1456 = vrot.lane.b32.xlu0 %v1437, 127
        %v1457 = vpop.permute.xlu0 %1456
        %v1458 = vsel %vm242, %v1451, %v1455
        %v1459 = vsel %vm242, %v1453, %v1457
        %v1460 = vsel %vm242, %v1455, %v1451
        %v1461 = vsel %vm242, %v1457, %v1453
        %v1462 = vsel %vm249, %v1448, %v1458
        %v1463 = vsel %vm250, %v1446, %v1460
        %v1464 = vsel %vm249, %v1449, %v1459
        %v1465 = vsel %vm250, %v1447, %v1461
        %1466 = vrot.lane.b32.xlu0 %v1434, 113
        %v1467 = vpop.permute.xlu0 %1466
        %1468 = vrot.lane.b32.xlu0 %v1436, 113
        %v1469 = vpop.permute.xlu0 %1468
        %1470 = vrot.lane.b32.xlu0 %v1435, 113
        %v1471 = vpop.permute.xlu0 %1470
        %1472 = vrot.lane.b32.xlu0 %v1437, 113
        %v1473 = vpop.permute.xlu0 %1472
        %v1474 = vsel %vm263, %v1467, %v1471
        %v1475 = vsel %vm263, %v1469, %v1473
        %v1476 = vsel %vm263, %v1471, %v1467
        %v1477 = vsel %vm263, %v1473, %v1469
        %1478 = vrot.lane.b32.xlu0 %v1434, 1
        %v1479 = vpop.permute.xlu0 %1478
        %1480 = vrot.lane.b32.xlu0 %v1436, 1
        %v1481 = vpop.permute.xlu0 %1480
        %1482 = vrot.lane.b32.xlu0 %v1435, 1
        %v1483 = vpop.permute.xlu0 %1482
        %1484 = vrot.lane.b32.xlu0 %v1437, 1
        %v1485 = vpop.permute.xlu0 %1484
        %v1486 = vsel %vm276, %v1479, %v1483
        %v1487 = vsel %vm276, %v1481, %v1485
        %v1488 = vsel %vm276, %v1483, %v1479
        %v1489 = vsel %vm276, %v1485, %v1481
        %v1490 = vsel %vm283, %v1474, %v1488
        %v1491 = vsel %vm284, %v1476, %v1486
        %v1492 = vsel %vm283, %v1475, %v1489
        %v1493 = vsel %vm284, %v1477, %v1487
        %1494 = vst [vmem:[#allocation2] sm:$0xff] %v1490
        %1495 = vst [vmem:[#allocation2 + $0x8] sm:$0xff] %v1491
        %1496 = vst [vmem:[#allocation2 + $0x10] sm:$0xff] %v1492
        %1497 = vst [vmem:[#allocation2 + $0x18] sm:$0xff] %v1493
        %1498 = vst [vmem:[#allocation2 + $0x20] sm:$0xff] %v1434
        %1499 = vst [vmem:[#allocation2 + $0x28] sm:$0xff] %v1435
        %1500 = vst [vmem:[#allocation2 + $0x30] sm:$0xff] %v1436
        %1501 = vst [vmem:[#allocation2 + $0x38] sm:$0xff] %v1437
        %1502 = vst [vmem:[#allocation2 + $0x40] sm:$0xff] %v1462
        %1503 = vst [vmem:[#allocation2 + $0x48] sm:$0xff] %v1463
        %1504 = vst [vmem:[#allocation2 + $0x50] sm:$0xff] %v1464
        %1505 = vst [vmem:[#allocation2 + $0x58] sm:$0xff] %v1465
        %s1506 = scalar_lea.vmem [#allocation3], 144
        %v1507 = vld [vmem:[%s1506] sm:$0xff]
        %v1508 = vld [vmem:[%s1506 + $0x8] sm:$0xff]
        %v1509 = vld [vmem:[%s1506 + $0x10] sm:$0xff]
        %v1510 = vld [vmem:[%s1506 + $0x18] sm:$0xff]
        %v1511 = vld [vmem:[%s1506 + $0x20] sm:$0xff]
        %v1512 = vld [vmem:[%s1506 + $0x28] sm:$0xff]
        %v1513 = vld [vmem:[#allocation2] sm:$0xff]
        %v1514 = vld [vmem:[#allocation2 + $0x8] sm:$0xff]
        %v1515 = vld [vmem:[#allocation2 + $0x10] sm:$0xff]
        %v1516 = vld [vmem:[#allocation2 + $0x18] sm:$0xff]
        %v1517 = vld [vmem:[#allocation2 + $0x20] sm:$0xff]
        %v1518 = vld [vmem:[#allocation2 + $0x28] sm:$0xff]
        %v1519 = vld [vmem:[#allocation2 + $0x30] sm:$0xff]
        %v1520 = vld [vmem:[#allocation2 + $0x38] sm:$0xff]
        %v1521 = vld [vmem:[#allocation2 + $0x40] sm:$0xff]
        %v1522 = vld [vmem:[#allocation2 + $0x48] sm:$0xff]
        %v1523 = vld [vmem:[#allocation2 + $0x50] sm:$0xff]
        %v1524 = vld [vmem:[#allocation2 + $0x58] sm:$0xff]
        %v1526 = vsel %vm319, %v1507, 0
        %v1529 = vsel %vm319, %v1508, 0
        %v1532 = vsel %vm319, %v1509, 0
        %v1535 = vsel %vm319, %v1510, 0
        %v1538 = vsel %vm319, %v1511, 0
        %v1541 = vsel %vm319, %v1512, 0
        %1543 = vmatpush.msra.mxu0 0.0
        %1544 = vmatpush.msra.mxu0 0.0
        %1545 = vmatpush.msra.mxu0 0.0
        %1546 = vmatpush.msra.mxu0 0.0
        %1547 = vmatpush.msra.mxu0 0.0
        %1548 = vmatpush.msra.mxu0 0.0
        %1549 = vmatpush.msra.mxu0 0.0
        %1550 = vmatpush.msra.mxu0 0.0
        %1551 = vmatpush.msra.mxu0 0.0
        %1552 = vmatpush.msra.mxu0 0.0
        %1553 = vmatpush.msra.mxu0 %v1523
        %1554 = vmatpush.msra.mxu0 %v1521
        %1555 = vmatpush.msra.mxu0 %v1519
        %1556 = vmatpush.msra.mxu0 %v1517
        %1557 = vmatpush.msra.mxu0 %v1515
        %1558 = vmatpush.msra.mxu0 %v1513
        %1559 = vmatmul.f32.gmra.mxu0 %v1526
        %v1560 = vpop.f32.mrf.mxu0
        %v1561 = vadd.f32 0.0, %v1560
        %1562 = vmatmul.f32.gmra.mxu0 %v1529
        %v1563 = vpop.f32.mrf.mxu0
        %v1564 = vadd.f32 0.0, %v1563
        %1565 = vmatmul.f32.gmra.mxu0 %v1532
        %v1566 = vpop.f32.mrf.mxu0
        %v1567 = vadd.f32 0.0, %v1566
        %1568 = vmatmul.f32.gmra.mxu0 %v1535
        %v1569 = vpop.f32.mrf.mxu0
        %v1570 = vadd.f32 0.0, %v1569
        %1571 = vmatmul.f32.gmra.mxu0 %v1538
        %v1572 = vpop.f32.mrf.mxu0
        %v1573 = vadd.f32 0.0, %v1572
        %1574 = vmatmul.f32.gmra.mxu0 %v1541
        %v1575 = vpop.f32.mrf.mxu0
        %v1576 = vadd.f32 0.0, %v1575
        %1577 = vdwg.mxu0
        %1578 = vmatpush.msra.mxu0 0.0
        %1579 = vmatpush.msra.mxu0 0.0
        %1580 = vmatpush.msra.mxu0 0.0
        %1581 = vmatpush.msra.mxu0 0.0
        %1582 = vmatpush.msra.mxu0 0.0
        %1583 = vmatpush.msra.mxu0 0.0
        %1584 = vmatpush.msra.mxu0 0.0
        %1585 = vmatpush.msra.mxu0 0.0
        %1586 = vmatpush.msra.mxu0 0.0
        %1587 = vmatpush.msra.mxu0 0.0
        %1588 = vmatpush.msra.mxu0 %v1524
        %1589 = vmatpush.msra.mxu0 %v1522
        %1590 = vmatpush.msra.mxu0 %v1520
        %1591 = vmatpush.msra.mxu0 %v1518
        %1592 = vmatpush.msra.mxu0 %v1516
        %1593 = vmatpush.msra.mxu0 %v1514
        %1594 = vmatmul.f32.gmra.mxu0 %v1526
        %v1595 = vpop.f32.mrf.mxu0
        %v1596 = vadd.f32 0.0, %v1595
        %1597 = vmatmul.f32.gmra.mxu0 %v1529
        %v1598 = vpop.f32.mrf.mxu0
        %v1599 = vadd.f32 0.0, %v1598
        %1600 = vmatmul.f32.gmra.mxu0 %v1532
        %v1601 = vpop.f32.mrf.mxu0
        %v1602 = vadd.f32 0.0, %v1601
        %1603 = vmatmul.f32.gmra.mxu0 %v1535
        %v1604 = vpop.f32.mrf.mxu0
        %v1605 = vadd.f32 0.0, %v1604
        %1606 = vmatmul.f32.gmra.mxu0 %v1538
        %v1607 = vpop.f32.mrf.mxu0
        %v1608 = vadd.f32 0.0, %v1607
        %1609 = vmatmul.f32.gmra.mxu0 %v1541
        %v1610 = vpop.f32.mrf.mxu0
        %v1611 = vadd.f32 0.0, %v1610
        %1612 = vdwg.mxu0
        %1613 = vrot.lane.b32.xlu0 %v1561, 16
        %v1614 = vpop.permute.xlu0 %1613
        %1615 = vrot.lane.b32.xlu0 %v1564, 16
        %v1616 = vpop.permute.xlu0 %1615
        %1617 = vrot.lane.b32.xlu0 %v1596, 16
        %v1618 = vpop.permute.xlu0 %1617
        %1619 = vrot.lane.b32.xlu0 %v1599, 16
        %v1620 = vpop.permute.xlu0 %1619
        %v1621 = vsel %vm416, %v1614, %v1618
        %v1622 = vsel %vm416, %v1616, %v1620
        %v1623 = vsel %vm416, %v1618, %v1614
        %v1624 = vsel %vm416, %v1620, %v1616
        %v1625 = vadd.f32 %v1567, %v1623
        %v1626 = vadd.f32 %v1602, %v1621
        %v1627 = vadd.f32 %v1570, %v1624
        %v1628 = vadd.f32 %v1605, %v1622
        %1629 = vrot.lane.b32.xlu0 %v1573, 112
        %v1630 = vpop.permute.xlu0 %1629
        %1631 = vrot.lane.b32.xlu0 %v1576, 112
        %v1632 = vpop.permute.xlu0 %1631
        %1633 = vrot.lane.b32.xlu0 %v1608, 112
        %v1634 = vpop.permute.xlu0 %1633
        %1635 = vrot.lane.b32.xlu0 %v1611, 112
        %v1636 = vpop.permute.xlu0 %1635
        %v1637 = vsel %vm433, %v1630, %v1634
        %v1638 = vsel %vm433, %v1632, %v1636
        %v1639 = vsel %vm433, %v1634, %v1630
        %v1640 = vsel %vm433, %v1636, %v1632
        %v1641 = vadd.f32 %v1625, %v1637
        %v1642 = vadd.f32 %v1626, %v1639
        %v1643 = vadd.f32 %v1627, %v1638
        %v1644 = vadd.f32 %v1628, %v1640
        %s1645 = scalar_lea.vmem %s2, 48
        %v1646 = vld [vmem:[%s1645] sm:$0xff]
        %v1647 = vld [vmem:[%s1645 + $0x8] sm:$0xff]
        %1649 = vset.pattern.permute.xlu0 0
        %1650 = vperm.xlu0 %1649, %v1646
        %v1651 = vpop.permute.xlu0 %1650
        %1654 = vset.pattern.permute.xlu0 0
        %1655 = vperm.xlu0 %1654, %v1647
        %v1656 = vpop.permute.xlu0 %1655
        %v1658 = vadd.f32 %v1641, %v1651
        %v1659 = vadd.f32 %v1642, %v1651
        %v1660 = vadd.f32 %v1643, %v1656
        %v1661 = vadd.f32 %v1644, %v1656
        %v1662 = vmul.f32 %v1658, 0.5
        %v1663 = vmul.f32 %v1659, 0.5
        %v1664 = vmul.f32 %v1660, 0.5
        %v1665 = vmul.f32 %v1661, 0.5
        %v1666 = vmul.f32 %v1658, 0.70710677
        %v1667 = vmul.f32 %v1659, 0.70710677
        %v1668 = vmul.f32 %v1660, 0.70710677
        %v1669 = vmul.f32 %v1661, 0.70710677
        %v1670 = vmul.f32 %v1666, %v1666
        %v1671 = vmin.f32 16.0, %v1670
        %v1672 = vmul.f32 %v1671, 2.1237322e-06
        %v1673 = vadd.f32 %v1672, 0.00028619796
        %v1674 = vmul.f32 %v1671, %v1673
        %v1675 = vadd.f32 %v1674, 0.0036580483
        %v1676 = vmul.f32 %v1671, %v1675
        %v1677 = vadd.f32 %v1676, 0.05243302
        %v1678 = vmul.f32 %v1671, %v1677
        %v1679 = vadd.f32 %v1678, 0.18741608
        %v1680 = vmul.f32 %v1671, %v1679
        %v1681 = vadd.f32 %v1680, 1.1283791
        %v1682 = vmul.f32 %v1666, %v1681
        %v1683 = vmul.f32 %v1671, 3.8918573e-05
        %v1684 = vadd.f32 %v1683, 0.001143296
        %v1685 = vmul.f32 %v1671, %v1684
        %v1686 = vadd.f32 %v1685, 0.014752088
        %v1687 = vmul.f32 %v1671, %v1686
        %v1688 = vadd.f32 %v1687, 0.112945676
        %v1689 = vmul.f32 %v1671, %v1688
        %v1690 = vadd.f32 %v1689, 0.4994258
        %v1691 = vmul.f32 %v1671, %v1690
        %v1692 = vadd.f32 %v1691, 1.0
        %v1693 = vrcp.pop %v1692
        %v1694 = vmul.f32 %v1692, %v1693
        %v1695 = vsub.f32 1.0, %v1694
        %v1696 = vmul.f32 %v1693, %v1695
        %v1697 = vadd.f32 %v1693, %v1696
        %vm1698 = vweird.f32 %v1692
        %vm1699 = vweird.f32 %v1693
        %vm1700 = vmor %vm1698, %vm1699
        %v1701 = vsel %vm1700, %v1693, %v1697
        %v1702 = vand.u32 2147483647, %v1692
        %vm1703 = vcmp.eq.f32.partialorder %v1702, 8.507059e+37
        %v1704 = vand.u32 %v1692, 2147483648
        %v1705 = vor.u32 1.1754944e-38, %v1704
        %v1706 = vsel %vm1703, %v1705, %v1701
        %v1707 = vmul.f32 %v1682, %v1706
        %v1708 = vmin.f32 %v1707, 1.0
        %v1709 = vmax.f32 %v1708, -1.0
        %v1710 = vmul.f32 %v1667, %v1667
        %v1711 = vmin.f32 16.0, %v1710
        %v1712 = vmul.f32 %v1711, 2.1237322e-06
        %v1713 = vadd.f32 %v1712, 0.00028619796
        %v1714 = vmul.f32 %v1711, %v1713
        %v1715 = vadd.f32 %v1714, 0.0036580483
        %v1716 = vmul.f32 %v1711, %v1715
        %v1717 = vadd.f32 %v1716, 0.05243302
        %v1718 = vmul.f32 %v1711, %v1717
        %v1719 = vadd.f32 %v1718, 0.18741608
        %v1720 = vmul.f32 %v1711, %v1719
        %v1721 = vadd.f32 %v1720, 1.1283791
        %v1722 = vmul.f32 %v1667, %v1721
        %v1723 = vmul.f32 %v1711, 3.8918573e-05
        %v1724 = vadd.f32 %v1723, 0.001143296
        %v1725 = vmul.f32 %v1711, %v1724
        %v1726 = vadd.f32 %v1725, 0.014752088
        %v1727 = vmul.f32 %v1711, %v1726
        %v1728 = vadd.f32 %v1727, 0.112945676
        %v1729 = vmul.f32 %v1711, %v1728
        %v1730 = vadd.f32 %v1729, 0.4994258
        %v1731 = vmul.f32 %v1711, %v1730
        %v1732 = vadd.f32 %v1731, 1.0
        %v1733 = vrcp.pop %v1732
        %v1734 = vmul.f32 %v1732, %v1733
        %v1735 = vsub.f32 1.0, %v1734
        %v1736 = vmul.f32 %v1733, %v1735
        %v1737 = vadd.f32 %v1733, %v1736
        %vm1738 = vweird.f32 %v1732
        %vm1739 = vweird.f32 %v1733
        %vm1740 = vmor %vm1738, %vm1739
        %v1741 = vsel %vm1740, %v1733, %v1737
        %v1742 = vand.u32 2147483647, %v1732
        %vm1743 = vcmp.eq.f32.partialorder %v1742, 8.507059e+37
        %v1744 = vand.u32 %v1732, 2147483648
        %v1745 = vor.u32 1.1754944e-38, %v1744
        %v1746 = vsel %vm1743, %v1745, %v1741
        %v1747 = vmul.f32 %v1722, %v1746
        %v1748 = vmin.f32 %v1747, 1.0
        %v1749 = vmax.f32 %v1748, -1.0
        %v1750 = vmul.f32 %v1668, %v1668
        %v1751 = vmin.f32 16.0, %v1750
        %v1752 = vmul.f32 %v1751, 2.1237322e-06
        %v1753 = vadd.f32 %v1752, 0.00028619796
        %v1754 = vmul.f32 %v1751, %v1753
        %v1755 = vadd.f32 %v1754, 0.0036580483
        %v1756 = vmul.f32 %v1751, %v1755
        %v1757 = vadd.f32 %v1756, 0.05243302
        %v1758 = vmul.f32 %v1751, %v1757
        %v1759 = vadd.f32 %v1758, 0.18741608
        %v1760 = vmul.f32 %v1751, %v1759
        %v1761 = vadd.f32 %v1760, 1.1283791
        %v1762 = vmul.f32 %v1668, %v1761
        %v1763 = vmul.f32 %v1751, 3.8918573e-05
        %v1764 = vadd.f32 %v1763, 0.001143296
        %v1765 = vmul.f32 %v1751, %v1764
        %v1766 = vadd.f32 %v1765, 0.014752088
        %v1767 = vmul.f32 %v1751, %v1766
        %v1768 = vadd.f32 %v1767, 0.112945676
        %v1769 = vmul.f32 %v1751, %v1768
        %v1770 = vadd.f32 %v1769, 0.4994258
        %v1771 = vmul.f32 %v1751, %v1770
        %v1772 = vadd.f32 %v1771, 1.0
        %v1773 = vrcp.pop %v1772
        %v1774 = vmul.f32 %v1772, %v1773
        %v1775 = vsub.f32 1.0, %v1774
        %v1776 = vmul.f32 %v1773, %v1775
        %v1777 = vadd.f32 %v1773, %v1776
        %vm1778 = vweird.f32 %v1772
        %vm1779 = vweird.f32 %v1773
        %vm1780 = vmor %vm1778, %vm1779
        %v1781 = vsel %vm1780, %v1773, %v1777
        %v1782 = vand.u32 2147483647, %v1772
        %vm1783 = vcmp.eq.f32.partialorder %v1782, 8.507059e+37
        %v1784 = vand.u32 %v1772, 2147483648
        %v1785 = vor.u32 1.1754944e-38, %v1784
        %v1786 = vsel %vm1783, %v1785, %v1781
        %v1787 = vmul.f32 %v1762, %v1786
        %v1788 = vmin.f32 %v1787, 1.0
        %v1789 = vmax.f32 %v1788, -1.0
        %v1790 = vmul.f32 %v1669, %v1669
        %v1791 = vmin.f32 16.0, %v1790
        %v1792 = vmul.f32 %v1791, 2.1237322e-06
        %v1793 = vadd.f32 %v1792, 0.00028619796
        %v1794 = vmul.f32 %v1791, %v1793
        %v1795 = vadd.f32 %v1794, 0.0036580483
        %v1796 = vmul.f32 %v1791, %v1795
        %v1797 = vadd.f32 %v1796, 0.05243302
        %v1798 = vmul.f32 %v1791, %v1797
        %v1799 = vadd.f32 %v1798, 0.18741608
        %v1800 = vmul.f32 %v1791, %v1799
        %v1801 = vadd.f32 %v1800, 1.1283791
        %v1802 = vmul.f32 %v1669, %v1801
        %v1803 = vmul.f32 %v1791, 3.8918573e-05
        %v1804 = vadd.f32 %v1803, 0.001143296
        %v1805 = vmul.f32 %v1791, %v1804
        %v1806 = vadd.f32 %v1805, 0.014752088
        %v1807 = vmul.f32 %v1791, %v1806
        %v1808 = vadd.f32 %v1807, 0.112945676
        %v1809 = vmul.f32 %v1791, %v1808
        %v1810 = vadd.f32 %v1809, 0.4994258
        %v1811 = vmul.f32 %v1791, %v1810
        %v1812 = vadd.f32 %v1811, 1.0
        %v1813 = vrcp.pop %v1812
        %v1814 = vmul.f32 %v1812, %v1813
        %v1815 = vsub.f32 1.0, %v1814
        %v1816 = vmul.f32 %v1813, %v1815
        %v1817 = vadd.f32 %v1813, %v1816
        %vm1818 = vweird.f32 %v1812
        %vm1819 = vweird.f32 %v1813
        %vm1820 = vmor %vm1818, %vm1819
        %v1821 = vsel %vm1820, %v1813, %v1817
        %v1822 = vand.u32 2147483647, %v1812
        %vm1823 = vcmp.eq.f32.partialorder %v1822, 8.507059e+37
        %v1824 = vand.u32 %v1812, 2147483648
        %v1825 = vor.u32 1.1754944e-38, %v1824
        %v1826 = vsel %vm1823, %v1825, %v1821
        %v1827 = vmul.f32 %v1802, %v1826
        %v1828 = vmin.f32 %v1827, 1.0
        %v1829 = vmax.f32 %v1828, -1.0
        %v1830 = vadd.f32 %v1709, 1.0
        %v1831 = vadd.f32 %v1749, 1.0
        %v1832 = vadd.f32 %v1789, 1.0
        %v1833 = vadd.f32 %v1829, 1.0
        %v1834 = vmul.f32 %v1662, %v1830
        %v1835 = vmul.f32 %v1663, %v1831
        %v1836 = vmul.f32 %v1664, %v1832
        %v1837 = vmul.f32 %v1665, %v1833
        %1838 = vrot.lane.b32.xlu0 %v1834, 15
        %v1839 = vpop.permute.xlu0 %1838
        %1840 = vrot.lane.b32.xlu0 %v1836, 15
        %v1841 = vpop.permute.xlu0 %1840
        %1842 = vrot.lane.b32.xlu0 %v1835, 15
        %v1843 = vpop.permute.xlu0 %1842
        %1844 = vrot.lane.b32.xlu0 %v1837, 15
        %v1845 = vpop.permute.xlu0 %1844
        %v1846 = vsel %vm229, %v1839, %v1843
        %v1847 = vsel %vm229, %v1841, %v1845
        %v1848 = vsel %vm229, %v1843, %v1839
        %v1849 = vsel %vm229, %v1845, %v1841
        %1850 = vrot.lane.b32.xlu0 %v1834, 127
        %v1851 = vpop.permute.xlu0 %1850
        %1852 = vrot.lane.b32.xlu0 %v1836, 127
        %v1853 = vpop.permute.xlu0 %1852
        %1854 = vrot.lane.b32.xlu0 %v1835, 127
        %v1855 = vpop.permute.xlu0 %1854
        %1856 = vrot.lane.b32.xlu0 %v1837, 127
        %v1857 = vpop.permute.xlu0 %1856
        %v1858 = vsel %vm242, %v1851, %v1855
        %v1859 = vsel %vm242, %v1853, %v1857
        %v1860 = vsel %vm242, %v1855, %v1851
        %v1861 = vsel %vm242, %v1857, %v1853
        %v1862 = vsel %vm249, %v1848, %v1858
        %v1863 = vsel %vm250, %v1846, %v1860
        %v1864 = vsel %vm249, %v1849, %v1859
        %v1865 = vsel %vm250, %v1847, %v1861
        %1866 = vrot.lane.b32.xlu0 %v1834, 113
        %v1867 = vpop.permute.xlu0 %1866
        %1868 = vrot.lane.b32.xlu0 %v1836, 113
        %v1869 = vpop.permute.xlu0 %1868
        %1870 = vrot.lane.b32.xlu0 %v1835, 113
        %v1871 = vpop.permute.xlu0 %1870
        %1872 = vrot.lane.b32.xlu0 %v1837, 113
        %v1873 = vpop.permute.xlu0 %1872
        %v1874 = vsel %vm263, %v1867, %v1871
        %v1875 = vsel %vm263, %v1869, %v1873
        %v1876 = vsel %vm263, %v1871, %v1867
        %v1877 = vsel %vm263, %v1873, %v1869
        %1878 = vrot.lane.b32.xlu0 %v1834, 1
        %v1879 = vpop.permute.xlu0 %1878
        %1880 = vrot.lane.b32.xlu0 %v1836, 1
        %v1881 = vpop.permute.xlu0 %1880
        %1882 = vrot.lane.b32.xlu0 %v1835, 1
        %v1883 = vpop.permute.xlu0 %1882
        %1884 = vrot.lane.b32.xlu0 %v1837, 1
        %v1885 = vpop.permute.xlu0 %1884
        %v1886 = vsel %vm276, %v1879, %v1883
        %v1887 = vsel %vm276, %v1881, %v1885
        %v1888 = vsel %vm276, %v1883, %v1879
        %v1889 = vsel %vm276, %v1885, %v1881
        %v1890 = vsel %vm283, %v1874, %v1888
        %v1891 = vsel %vm284, %v1876, %v1886
        %v1892 = vsel %vm283, %v1875, %v1889
        %v1893 = vsel %vm284, %v1877, %v1887
        %1894 = vst [vmem:[#allocation2] sm:$0xff] %v1890
        %1895 = vst [vmem:[#allocation2 + $0x8] sm:$0xff] %v1891
        %1896 = vst [vmem:[#allocation2 + $0x10] sm:$0xff] %v1892
        %1897 = vst [vmem:[#allocation2 + $0x18] sm:$0xff] %v1893
        %1898 = vst [vmem:[#allocation2 + $0x20] sm:$0xff] %v1834
        %1899 = vst [vmem:[#allocation2 + $0x28] sm:$0xff] %v1835
        %1900 = vst [vmem:[#allocation2 + $0x30] sm:$0xff] %v1836
        %1901 = vst [vmem:[#allocation2 + $0x38] sm:$0xff] %v1837
        %1902 = vst [vmem:[#allocation2 + $0x40] sm:$0xff] %v1862
        %1903 = vst [vmem:[#allocation2 + $0x48] sm:$0xff] %v1863
        %1904 = vst [vmem:[#allocation2 + $0x50] sm:$0xff] %v1864
        %1905 = vst [vmem:[#allocation2 + $0x58] sm:$0xff] %v1865
        %s1906 = scalar_lea.vmem [#allocation3], 192
        %v1907 = vld [vmem:[%s1906] sm:$0xff]
        %v1908 = vld [vmem:[%s1906 + $0x8] sm:$0xff]
        %v1909 = vld [vmem:[%s1906 + $0x10] sm:$0xff]
        %v1910 = vld [vmem:[%s1906 + $0x18] sm:$0xff]
        %v1911 = vld [vmem:[%s1906 + $0x20] sm:$0xff]
        %v1912 = vld [vmem:[%s1906 + $0x28] sm:$0xff]
        %v1913 = vld [vmem:[#allocation2] sm:$0xff]
        %v1914 = vld [vmem:[#allocation2 + $0x8] sm:$0xff]
        %v1915 = vld [vmem:[#allocation2 + $0x10] sm:$0xff]
        %v1916 = vld [vmem:[#allocation2 + $0x18] sm:$0xff]
        %v1917 = vld [vmem:[#allocation2 + $0x20] sm:$0xff]
        %v1918 = vld [vmem:[#allocation2 + $0x28] sm:$0xff]
        %v1919 = vld [vmem:[#allocation2 + $0x30] sm:$0xff]
        %v1920 = vld [vmem:[#allocation2 + $0x38] sm:$0xff]
        %v1921 = vld [vmem:[#allocation2 + $0x40] sm:$0xff]
        %v1922 = vld [vmem:[#allocation2 + $0x48] sm:$0xff]
        %v1923 = vld [vmem:[#allocation2 + $0x50] sm:$0xff]
        %v1924 = vld [vmem:[#allocation2 + $0x58] sm:$0xff]
        %v1926 = vsel %vm319, %v1907, 0
        %v1929 = vsel %vm319, %v1908, 0
        %v1932 = vsel %vm319, %v1909, 0
        %v1935 = vsel %vm319, %v1910, 0
        %v1938 = vsel %vm319, %v1911, 0
        %v1941 = vsel %vm319, %v1912, 0
        %1943 = vmatpush.msra.mxu0 0.0
        %1944 = vmatpush.msra.mxu0 0.0
        %1945 = vmatpush.msra.mxu0 0.0
        %1946 = vmatpush.msra.mxu0 0.0
        %1947 = vmatpush.msra.mxu0 0.0
        %1948 = vmatpush.msra.mxu0 0.0
        %1949 = vmatpush.msra.mxu0 0.0
        %1950 = vmatpush.msra.mxu0 0.0
        %1951 = vmatpush.msra.mxu0 0.0
        %1952 = vmatpush.msra.mxu0 0.0
        %1953 = vmatpush.msra.mxu0 %v1923
        %1954 = vmatpush.msra.mxu0 %v1921
        %1955 = vmatpush.msra.mxu0 %v1919
        %1956 = vmatpush.msra.mxu0 %v1917
        %1957 = vmatpush.msra.mxu0 %v1915
        %1958 = vmatpush.msra.mxu0 %v1913
        %1959 = vmatmul.f32.gmra.mxu0 %v1926
        %v1960 = vpop.f32.mrf.mxu0
        %v1961 = vadd.f32 0.0, %v1960
        %1962 = vmatmul.f32.gmra.mxu0 %v1929
        %v1963 = vpop.f32.mrf.mxu0
        %v1964 = vadd.f32 0.0, %v1963
        %1965 = vmatmul.f32.gmra.mxu0 %v1932
        %v1966 = vpop.f32.mrf.mxu0
        %v1967 = vadd.f32 0.0, %v1966
        %1968 = vmatmul.f32.gmra.mxu0 %v1935
        %v1969 = vpop.f32.mrf.mxu0
        %v1970 = vadd.f32 0.0, %v1969
        %1971 = vmatmul.f32.gmra.mxu0 %v1938
        %v1972 = vpop.f32.mrf.mxu0
        %v1973 = vadd.f32 0.0, %v1972
        %1974 = vmatmul.f32.gmra.mxu0 %v1941
        %v1975 = vpop.f32.mrf.mxu0
        %v1976 = vadd.f32 0.0, %v1975
        %1977 = vdwg.mxu0
        %1978 = vmatpush.msra.mxu0 0.0
        %1979 = vmatpush.msra.mxu0 0.0
        %1980 = vmatpush.msra.mxu0 0.0
        %1981 = vmatpush.msra.mxu0 0.0
        %1982 = vmatpush.msra.mxu0 0.0
        %1983 = vmatpush.msra.mxu0 0.0
        %1984 = vmatpush.msra.mxu0 0.0
        %1985 = vmatpush.msra.mxu0 0.0
        %1986 = vmatpush.msra.mxu0 0.0
        %1987 = vmatpush.msra.mxu0 0.0
        %1988 = vmatpush.msra.mxu0 %v1924
        %1989 = vmatpush.msra.mxu0 %v1922
        %1990 = vmatpush.msra.mxu0 %v1920
        %1991 = vmatpush.msra.mxu0 %v1918
        %1992 = vmatpush.msra.mxu0 %v1916
        %1993 = vmatpush.msra.mxu0 %v1914
        %1994 = vmatmul.f32.gmra.mxu0 %v1926
        %v1995 = vpop.f32.mrf.mxu0
        %v1996 = vadd.f32 0.0, %v1995
        %1997 = vmatmul.f32.gmra.mxu0 %v1929
        %v1998 = vpop.f32.mrf.mxu0
        %v1999 = vadd.f32 0.0, %v1998
        %2000 = vmatmul.f32.gmra.mxu0 %v1932
        %v2001 = vpop.f32.mrf.mxu0
        %v2002 = vadd.f32 0.0, %v2001
        %2003 = vmatmul.f32.gmra.mxu0 %v1935
        %v2004 = vpop.f32.mrf.mxu0
        %v2005 = vadd.f32 0.0, %v2004
        %2006 = vmatmul.f32.gmra.mxu0 %v1938
        %v2007 = vpop.f32.mrf.mxu0
        %v2008 = vadd.f32 0.0, %v2007
        %2009 = vmatmul.f32.gmra.mxu0 %v1941
        %v2010 = vpop.f32.mrf.mxu0
        %v2011 = vadd.f32 0.0, %v2010
        %2012 = vdwg.mxu0
        %2013 = vrot.lane.b32.xlu0 %v1961, 16
        %v2014 = vpop.permute.xlu0 %2013
        %2015 = vrot.lane.b32.xlu0 %v1964, 16
        %v2016 = vpop.permute.xlu0 %2015
        %2017 = vrot.lane.b32.xlu0 %v1996, 16
        %v2018 = vpop.permute.xlu0 %2017
        %2019 = vrot.lane.b32.xlu0 %v1999, 16
        %v2020 = vpop.permute.xlu0 %2019
        %v2021 = vsel %vm416, %v2014, %v2018
        %v2022 = vsel %vm416, %v2016, %v2020
        %v2023 = vsel %vm416, %v2018, %v2014
        %v2024 = vsel %vm416, %v2020, %v2016
        %v2025 = vadd.f32 %v1967, %v2023
        %v2026 = vadd.f32 %v2002, %v2021
        %v2027 = vadd.f32 %v1970, %v2024
        %v2028 = vadd.f32 %v2005, %v2022
        %2029 = vrot.lane.b32.xlu0 %v1973, 112
        %v2030 = vpop.permute.xlu0 %2029
        %2031 = vrot.lane.b32.xlu0 %v1976, 112
        %v2032 = vpop.permute.xlu0 %2031
        %2033 = vrot.lane.b32.xlu0 %v2008, 112
        %v2034 = vpop.permute.xlu0 %2033
        %2035 = vrot.lane.b32.xlu0 %v2011, 112
        %v2036 = vpop.permute.xlu0 %2035
        %v2037 = vsel %vm433, %v2030, %v2034
        %v2038 = vsel %vm433, %v2032, %v2036
        %v2039 = vsel %vm433, %v2034, %v2030
        %v2040 = vsel %vm433, %v2036, %v2032
        %v2041 = vadd.f32 %v2025, %v2037
        %v2042 = vadd.f32 %v2026, %v2039
        %v2043 = vadd.f32 %v2027, %v2038
        %v2044 = vadd.f32 %v2028, %v2040
        %s2045 = scalar_lea.vmem %s2, 64
        %v2046 = vld [vmem:[%s2045] sm:$0xff]
        %v2047 = vld [vmem:[%s2045 + $0x8] sm:$0xff]
        %2049 = vset.pattern.permute.xlu0 0
        %2050 = vperm.xlu0 %2049, %v2046
        %v2051 = vpop.permute.xlu0 %2050
        %2054 = vset.pattern.permute.xlu0 0
        %2055 = vperm.xlu0 %2054, %v2047
        %v2056 = vpop.permute.xlu0 %2055
        %v2058 = vadd.f32 %v2041, %v2051
        %v2059 = vadd.f32 %v2042, %v2051
        %v2060 = vadd.f32 %v2043, %v2056
        %v2061 = vadd.f32 %v2044, %v2056
        %v2062 = vadd.f32 %v2058, %v1434
        %v2063 = vadd.f32 %v2059, %v1435
        %v2064 = vadd.f32 %v2060, %v1436
        %v2065 = vadd.f32 %v2061, %v1437
        %v2066 = vmul.f32 %v2062, 0.5
        %v2067 = vmul.f32 %v2063, 0.5
        %v2068 = vmul.f32 %v2064, 0.5
        %v2069 = vmul.f32 %v2065, 0.5
        %v2070 = vmul.f32 %v2062, 0.70710677
        %v2071 = vmul.f32 %v2063, 0.70710677
        %v2072 = vmul.f32 %v2064, 0.70710677
        %v2073 = vmul.f32 %v2065, 0.70710677
        %v2074 = vmul.f32 %v2070, %v2070
        %v2075 = vmin.f32 16.0, %v2074
        %v2076 = vmul.f32 %v2075, 2.1237322e-06
        %v2077 = vadd.f32 %v2076, 0.00028619796
        %v2078 = vmul.f32 %v2075, %v2077
        %v2079 = vadd.f32 %v2078, 0.0036580483
        %v2080 = vmul.f32 %v2075, %v2079
        %v2081 = vadd.f32 %v2080, 0.05243302
        %v2082 = vmul.f32 %v2075, %v2081
        %v2083 = vadd.f32 %v2082, 0.18741608
        %v2084 = vmul.f32 %v2075, %v2083
        %v2085 = vadd.f32 %v2084, 1.1283791
        %v2086 = vmul.f32 %v2070, %v2085
        %v2087 = vmul.f32 %v2075, 3.8918573e-05
        %v2088 = vadd.f32 %v2087, 0.001143296
        %v2089 = vmul.f32 %v2075, %v2088
        %v2090 = vadd.f32 %v2089, 0.014752088
        %v2091 = vmul.f32 %v2075, %v2090
        %v2092 = vadd.f32 %v2091, 0.112945676
        %v2093 = vmul.f32 %v2075, %v2092
        %v2094 = vadd.f32 %v2093, 0.4994258
        %v2095 = vmul.f32 %v2075, %v2094
        %v2096 = vadd.f32 %v2095, 1.0
        %v2097 = vrcp.pop %v2096
        %v2098 = vmul.f32 %v2096, %v2097
        %v2099 = vsub.f32 1.0, %v2098
        %v2100 = vmul.f32 %v2097, %v2099
        %v2101 = vadd.f32 %v2097, %v2100
        %vm2102 = vweird.f32 %v2096
        %vm2103 = vweird.f32 %v2097
        %vm2104 = vmor %vm2102, %vm2103
        %v2105 = vsel %vm2104, %v2097, %v2101
        %v2106 = vand.u32 2147483647, %v2096
        %vm2107 = vcmp.eq.f32.partialorder %v2106, 8.507059e+37
        %v2108 = vand.u32 %v2096, 2147483648
        %v2109 = vor.u32 1.1754944e-38, %v2108
        %v2110 = vsel %vm2107, %v2109, %v2105
        %v2111 = vmul.f32 %v2086, %v2110
        %v2112 = vmin.f32 %v2111, 1.0
        %v2113 = vmax.f32 %v2112, -1.0
        %v2114 = vmul.f32 %v2071, %v2071
        %v2115 = vmin.f32 16.0, %v2114
        %v2116 = vmul.f32 %v2115, 2.1237322e-06
        %v2117 = vadd.f32 %v2116, 0.00028619796
        %v2118 = vmul.f32 %v2115, %v2117
        %v2119 = vadd.f32 %v2118, 0.0036580483
        %v2120 = vmul.f32 %v2115, %v2119
        %v2121 = vadd.f32 %v2120, 0.05243302
        %v2122 = vmul.f32 %v2115, %v2121
        %v2123 = vadd.f32 %v2122, 0.18741608
        %v2124 = vmul.f32 %v2115, %v2123
        %v2125 = vadd.f32 %v2124, 1.1283791
        %v2126 = vmul.f32 %v2071, %v2125
        %v2127 = vmul.f32 %v2115, 3.8918573e-05
        %v2128 = vadd.f32 %v2127, 0.001143296
        %v2129 = vmul.f32 %v2115, %v2128
        %v2130 = vadd.f32 %v2129, 0.014752088
        %v2131 = vmul.f32 %v2115, %v2130
        %v2132 = vadd.f32 %v2131, 0.112945676
        %v2133 = vmul.f32 %v2115, %v2132
        %v2134 = vadd.f32 %v2133, 0.4994258
        %v2135 = vmul.f32 %v2115, %v2134
        %v2136 = vadd.f32 %v2135, 1.0
        %v2137 = vrcp.pop %v2136
        %v2138 = vmul.f32 %v2136, %v2137
        %v2139 = vsub.f32 1.0, %v2138
        %v2140 = vmul.f32 %v2137, %v2139
        %v2141 = vadd.f32 %v2137, %v2140
        %vm2142 = vweird.f32 %v2136
        %vm2143 = vweird.f32 %v2137
        %vm2144 = vmor %vm2142, %vm2143
        %v2145 = vsel %vm2144, %v2137, %v2141
        %v2146 = vand.u32 2147483647, %v2136
        %vm2147 = vcmp.eq.f32.partialorder %v2146, 8.507059e+37
        %v2148 = vand.u32 %v2136, 2147483648
        %v2149 = vor.u32 1.1754944e-38, %v2148
        %v2150 = vsel %vm2147, %v2149, %v2145
        %v2151 = vmul.f32 %v2126, %v2150
        %v2152 = vmin.f32 %v2151, 1.0
        %v2153 = vmax.f32 %v2152, -1.0
        %v2154 = vmul.f32 %v2072, %v2072
        %v2155 = vmin.f32 16.0, %v2154
        %v2156 = vmul.f32 %v2155, 2.1237322e-06
        %v2157 = vadd.f32 %v2156, 0.00028619796
        %v2158 = vmul.f32 %v2155, %v2157
        %v2159 = vadd.f32 %v2158, 0.0036580483
        %v2160 = vmul.f32 %v2155, %v2159
        %v2161 = vadd.f32 %v2160, 0.05243302
        %v2162 = vmul.f32 %v2155, %v2161
        %v2163 = vadd.f32 %v2162, 0.18741608
        %v2164 = vmul.f32 %v2155, %v2163
        %v2165 = vadd.f32 %v2164, 1.1283791
        %v2166 = vmul.f32 %v2072, %v2165
        %v2167 = vmul.f32 %v2155, 3.8918573e-05
        %v2168 = vadd.f32 %v2167, 0.001143296
        %v2169 = vmul.f32 %v2155, %v2168
        %v2170 = vadd.f32 %v2169, 0.014752088
        %v2171 = vmul.f32 %v2155, %v2170
        %v2172 = vadd.f32 %v2171, 0.112945676
        %v2173 = vmul.f32 %v2155, %v2172
        %v2174 = vadd.f32 %v2173, 0.4994258
        %v2175 = vmul.f32 %v2155, %v2174
        %v2176 = vadd.f32 %v2175, 1.0
        %v2177 = vrcp.pop %v2176
        %v2178 = vmul.f32 %v2176, %v2177
        %v2179 = vsub.f32 1.0, %v2178
        %v2180 = vmul.f32 %v2177, %v2179
        %v2181 = vadd.f32 %v2177, %v2180
        %vm2182 = vweird.f32 %v2176
        %vm2183 = vweird.f32 %v2177
        %vm2184 = vmor %vm2182, %vm2183
        %v2185 = vsel %vm2184, %v2177, %v2181
        %v2186 = vand.u32 2147483647, %v2176
        %vm2187 = vcmp.eq.f32.partialorder %v2186, 8.507059e+37
        %v2188 = vand.u32 %v2176, 2147483648
        %v2189 = vor.u32 1.1754944e-38, %v2188
        %v2190 = vsel %vm2187, %v2189, %v2185
        %v2191 = vmul.f32 %v2166, %v2190
        %v2192 = vmin.f32 %v2191, 1.0
        %v2193 = vmax.f32 %v2192, -1.0
        %v2194 = vmul.f32 %v2073, %v2073
        %v2195 = vmin.f32 16.0, %v2194
        %v2196 = vmul.f32 %v2195, 2.1237322e-06
        %v2197 = vadd.f32 %v2196, 0.00028619796
        %v2198 = vmul.f32 %v2195, %v2197
        %v2199 = vadd.f32 %v2198, 0.0036580483
        %v2200 = vmul.f32 %v2195, %v2199
        %v2201 = vadd.f32 %v2200, 0.05243302
        %v2202 = vmul.f32 %v2195, %v2201
        %v2203 = vadd.f32 %v2202, 0.18741608
        %v2204 = vmul.f32 %v2195, %v2203
        %v2205 = vadd.f32 %v2204, 1.1283791
        %v2206 = vmul.f32 %v2073, %v2205
        %v2207 = vmul.f32 %v2195, 3.8918573e-05
        %v2208 = vadd.f32 %v2207, 0.001143296
        %v2209 = vmul.f32 %v2195, %v2208
        %v2210 = vadd.f32 %v2209, 0.014752088
        %v2211 = vmul.f32 %v2195, %v2210
        %v2212 = vadd.f32 %v2211, 0.112945676
        %v2213 = vmul.f32 %v2195, %v2212
        %v2214 = vadd.f32 %v2213, 0.4994258
        %v2215 = vmul.f32 %v2195, %v2214
        %v2216 = vadd.f32 %v2215, 1.0
        %v2217 = vrcp.pop %v2216
        %v2218 = vmul.f32 %v2216, %v2217
        %v2219 = vsub.f32 1.0, %v2218
        %v2220 = vmul.f32 %v2217, %v2219
        %v2221 = vadd.f32 %v2217, %v2220
        %vm2222 = vweird.f32 %v2216
        %vm2223 = vweird.f32 %v2217
        %vm2224 = vmor %vm2222, %vm2223
        %v2225 = vsel %vm2224, %v2217, %v2221
        %v2226 = vand.u32 2147483647, %v2216
        %vm2227 = vcmp.eq.f32.partialorder %v2226, 8.507059e+37
        %v2228 = vand.u32 %v2216, 2147483648
        %v2229 = vor.u32 1.1754944e-38, %v2228
        %v2230 = vsel %vm2227, %v2229, %v2225
        %v2231 = vmul.f32 %v2206, %v2230
        %v2232 = vmin.f32 %v2231, 1.0
        %v2233 = vmax.f32 %v2232, -1.0
        %v2234 = vadd.f32 %v2113, 1.0
        %v2235 = vadd.f32 %v2153, 1.0
        %v2236 = vadd.f32 %v2193, 1.0
        %v2237 = vadd.f32 %v2233, 1.0
        %v2238 = vmul.f32 %v2066, %v2234
        %v2239 = vmul.f32 %v2067, %v2235
        %v2240 = vmul.f32 %v2068, %v2236
        %v2241 = vmul.f32 %v2069, %v2237
        %2242 = vrot.lane.b32.xlu0 %v2238, 15
        %v2243 = vpop.permute.xlu0 %2242
        %2244 = vrot.lane.b32.xlu0 %v2240, 15
        %v2245 = vpop.permute.xlu0 %2244
        %2246 = vrot.lane.b32.xlu0 %v2239, 15
        %v2247 = vpop.permute.xlu0 %2246
        %2248 = vrot.lane.b32.xlu0 %v2241, 15
        %v2249 = vpop.permute.xlu0 %2248
        %v2250 = vsel %vm229, %v2243, %v2247
        %v2251 = vsel %vm229, %v2245, %v2249
        %v2252 = vsel %vm229, %v2247, %v2243
        %v2253 = vsel %vm229, %v2249, %v2245
        %2254 = vrot.lane.b32.xlu0 %v2238, 127
        %v2255 = vpop.permute.xlu0 %2254
        %2256 = vrot.lane.b32.xlu0 %v2240, 127
        %v2257 = vpop.permute.xlu0 %2256
        %2258 = vrot.lane.b32.xlu0 %v2239, 127
        %v2259 = vpop.permute.xlu0 %2258
        %2260 = vrot.lane.b32.xlu0 %v2241, 127
        %v2261 = vpop.permute.xlu0 %2260
        %v2262 = vsel %vm242, %v2255, %v2259
        %v2263 = vsel %vm242, %v2257, %v2261
        %v2264 = vsel %vm242, %v2259, %v2255
        %v2265 = vsel %vm242, %v2261, %v2257
        %v2266 = vsel %vm249, %v2252, %v2262
        %v2267 = vsel %vm250, %v2250, %v2264
        %v2268 = vsel %vm249, %v2253, %v2263
        %v2269 = vsel %vm250, %v2251, %v2265
        %2270 = vrot.lane.b32.xlu0 %v2238, 113
        %v2271 = vpop.permute.xlu0 %2270
        %2272 = vrot.lane.b32.xlu0 %v2240, 113
        %v2273 = vpop.permute.xlu0 %2272
        %2274 = vrot.lane.b32.xlu0 %v2239, 113
        %v2275 = vpop.permute.xlu0 %2274
        %2276 = vrot.lane.b32.xlu0 %v2241, 113
        %v2277 = vpop.permute.xlu0 %2276
        %v2278 = vsel %vm263, %v2271, %v2275
        %v2279 = vsel %vm263, %v2273, %v2277
        %v2280 = vsel %vm263, %v2275, %v2271
        %v2281 = vsel %vm263, %v2277, %v2273
        %2282 = vrot.lane.b32.xlu0 %v2238, 1
        %v2283 = vpop.permute.xlu0 %2282
        %2284 = vrot.lane.b32.xlu0 %v2240, 1
        %v2285 = vpop.permute.xlu0 %2284
        %2286 = vrot.lane.b32.xlu0 %v2239, 1
        %v2287 = vpop.permute.xlu0 %2286
        %2288 = vrot.lane.b32.xlu0 %v2241, 1
        %v2289 = vpop.permute.xlu0 %2288
        %v2290 = vsel %vm276, %v2283, %v2287
        %v2291 = vsel %vm276, %v2285, %v2289
        %v2292 = vsel %vm276, %v2287, %v2283
        %v2293 = vsel %vm276, %v2289, %v2285
        %v2294 = vsel %vm283, %v2278, %v2292
        %v2295 = vsel %vm284, %v2280, %v2290
        %v2296 = vsel %vm283, %v2279, %v2293
        %v2297 = vsel %vm284, %v2281, %v2291
        %2298 = vst [vmem:[#allocation2] sm:$0xff] %v2294
        %2299 = vst [vmem:[#allocation2 + $0x8] sm:$0xff] %v2295
        %2300 = vst [vmem:[#allocation2 + $0x10] sm:$0xff] %v2296
        %2301 = vst [vmem:[#allocation2 + $0x18] sm:$0xff] %v2297
        %2302 = vst [vmem:[#allocation2 + $0x20] sm:$0xff] %v2238
        %2303 = vst [vmem:[#allocation2 + $0x28] sm:$0xff] %v2239
        %2304 = vst [vmem:[#allocation2 + $0x30] sm:$0xff] %v2240
        %2305 = vst [vmem:[#allocation2 + $0x38] sm:$0xff] %v2241
        %2306 = vst [vmem:[#allocation2 + $0x40] sm:$0xff] %v2266
        %2307 = vst [vmem:[#allocation2 + $0x48] sm:$0xff] %v2267
        %2308 = vst [vmem:[#allocation2 + $0x50] sm:$0xff] %v2268
        %2309 = vst [vmem:[#allocation2 + $0x58] sm:$0xff] %v2269
        %s2310 = scalar_lea.vmem [#allocation3], 240
        %v2311 = vld [vmem:[%s2310] sm:$0xff]
        %v2312 = vld [vmem:[%s2310 + $0x8] sm:$0xff]
        %v2313 = vld [vmem:[%s2310 + $0x10] sm:$0xff]
        %v2314 = vld [vmem:[%s2310 + $0x18] sm:$0xff]
        %v2315 = vld [vmem:[%s2310 + $0x20] sm:$0xff]
        %v2316 = vld [vmem:[%s2310 + $0x28] sm:$0xff]
        %v2317 = vld [vmem:[#allocation2] sm:$0xff]
        %v2318 = vld [vmem:[#allocation2 + $0x8] sm:$0xff]
        %v2319 = vld [vmem:[#allocation2 + $0x10] sm:$0xff]
        %v2320 = vld [vmem:[#allocation2 + $0x18] sm:$0xff]
        %v2321 = vld [vmem:[#allocation2 + $0x20] sm:$0xff]
        %v2322 = vld [vmem:[#allocation2 + $0x28] sm:$0xff]
        %v2323 = vld [vmem:[#allocation2 + $0x30] sm:$0xff]
        %v2324 = vld [vmem:[#allocation2 + $0x38] sm:$0xff]
        %v2325 = vld [vmem:[#allocation2 + $0x40] sm:$0xff]
        %v2326 = vld [vmem:[#allocation2 + $0x48] sm:$0xff]
        %v2327 = vld [vmem:[#allocation2 + $0x50] sm:$0xff]
        %v2328 = vld [vmem:[#allocation2 + $0x58] sm:$0xff]
        %v2330 = vsel %vm319, %v2311, 0
        %v2333 = vsel %vm319, %v2312, 0
        %v2336 = vsel %vm319, %v2313, 0
        %v2339 = vsel %vm319, %v2314, 0
        %v2342 = vsel %vm319, %v2315, 0
        %v2345 = vsel %vm319, %v2316, 0
        %2347 = vmatpush.msra.mxu0 0.0
        %2348 = vmatpush.msra.mxu0 0.0
        %2349 = vmatpush.msra.mxu0 0.0
        %2350 = vmatpush.msra.mxu0 0.0
        %2351 = vmatpush.msra.mxu0 0.0
        %2352 = vmatpush.msra.mxu0 0.0
        %2353 = vmatpush.msra.mxu0 0.0
        %2354 = vmatpush.msra.mxu0 0.0
        %2355 = vmatpush.msra.mxu0 0.0
        %2356 = vmatpush.msra.mxu0 0.0
        %2357 = vmatpush.msra.mxu0 %v2327
        %2358 = vmatpush.msra.mxu0 %v2325
        %2359 = vmatpush.msra.mxu0 %v2323
        %2360 = vmatpush.msra.mxu0 %v2321
        %2361 = vmatpush.msra.mxu0 %v2319
        %2362 = vmatpush.msra.mxu0 %v2317
        %2363 = vmatmul.f32.gmra.mxu0 %v2330
        %v2364 = vpop.f32.mrf.mxu0
        %v2365 = vadd.f32 0.0, %v2364
        %2366 = vmatmul.f32.gmra.mxu0 %v2333
        %v2367 = vpop.f32.mrf.mxu0
        %v2368 = vadd.f32 0.0, %v2367
        %2369 = vmatmul.f32.gmra.mxu0 %v2336
        %v2370 = vpop.f32.mrf.mxu0
        %v2371 = vadd.f32 0.0, %v2370
        %2372 = vmatmul.f32.gmra.mxu0 %v2339
        %v2373 = vpop.f32.mrf.mxu0
        %v2374 = vadd.f32 0.0, %v2373
        %2375 = vmatmul.f32.gmra.mxu0 %v2342
        %v2376 = vpop.f32.mrf.mxu0
        %v2377 = vadd.f32 0.0, %v2376
        %2378 = vmatmul.f32.gmra.mxu0 %v2345
        %v2379 = vpop.f32.mrf.mxu0
        %v2380 = vadd.f32 0.0, %v2379
        %2381 = vdwg.mxu0
        %2382 = vmatpush.msra.mxu0 0.0
        %2383 = vmatpush.msra.mxu0 0.0
        %2384 = vmatpush.msra.mxu0 0.0
        %2385 = vmatpush.msra.mxu0 0.0
        %2386 = vmatpush.msra.mxu0 0.0
        %2387 = vmatpush.msra.mxu0 0.0
        %2388 = vmatpush.msra.mxu0 0.0
        %2389 = vmatpush.msra.mxu0 0.0
        %2390 = vmatpush.msra.mxu0 0.0
        %2391 = vmatpush.msra.mxu0 0.0
        %2392 = vmatpush.msra.mxu0 %v2328
        %2393 = vmatpush.msra.mxu0 %v2326
        %2394 = vmatpush.msra.mxu0 %v2324
        %2395 = vmatpush.msra.mxu0 %v2322
        %2396 = vmatpush.msra.mxu0 %v2320
        %2397 = vmatpush.msra.mxu0 %v2318
        %2398 = vmatmul.f32.gmra.mxu0 %v2330
        %v2399 = vpop.f32.mrf.mxu0
        %v2400 = vadd.f32 0.0, %v2399
        %2401 = vmatmul.f32.gmra.mxu0 %v2333
        %v2402 = vpop.f32.mrf.mxu0
        %v2403 = vadd.f32 0.0, %v2402
        %2404 = vmatmul.f32.gmra.mxu0 %v2336
        %v2405 = vpop.f32.mrf.mxu0
        %v2406 = vadd.f32 0.0, %v2405
        %2407 = vmatmul.f32.gmra.mxu0 %v2339
        %v2408 = vpop.f32.mrf.mxu0
        %v2409 = vadd.f32 0.0, %v2408
        %2410 = vmatmul.f32.gmra.mxu0 %v2342
        %v2411 = vpop.f32.mrf.mxu0
        %v2412 = vadd.f32 0.0, %v2411
        %2413 = vmatmul.f32.gmra.mxu0 %v2345
        %v2414 = vpop.f32.mrf.mxu0
        %v2415 = vadd.f32 0.0, %v2414
        %2416 = vdwg.mxu0
        %2417 = vrot.lane.b32.xlu0 %v2365, 16
        %v2418 = vpop.permute.xlu0 %2417
        %2419 = vrot.lane.b32.xlu0 %v2368, 16
        %v2420 = vpop.permute.xlu0 %2419
        %2421 = vrot.lane.b32.xlu0 %v2400, 16
        %v2422 = vpop.permute.xlu0 %2421
        %2423 = vrot.lane.b32.xlu0 %v2403, 16
        %v2424 = vpop.permute.xlu0 %2423
        %v2425 = vsel %vm416, %v2418, %v2422
        %v2426 = vsel %vm416, %v2420, %v2424
        %v2427 = vsel %vm416, %v2422, %v2418
        %v2428 = vsel %vm416, %v2424, %v2420
        %v2429 = vadd.f32 %v2371, %v2427
        %v2430 = vadd.f32 %v2406, %v2425
        %v2431 = vadd.f32 %v2374, %v2428
        %v2432 = vadd.f32 %v2409, %v2426
        %2433 = vrot.lane.b32.xlu0 %v2377, 112
        %v2434 = vpop.permute.xlu0 %2433
        %2435 = vrot.lane.b32.xlu0 %v2380, 112
        %v2436 = vpop.permute.xlu0 %2435
        %2437 = vrot.lane.b32.xlu0 %v2412, 112
        %v2438 = vpop.permute.xlu0 %2437
        %2439 = vrot.lane.b32.xlu0 %v2415, 112
        %v2440 = vpop.permute.xlu0 %2439
        %v2441 = vsel %vm433, %v2434, %v2438
        %v2442 = vsel %vm433, %v2436, %v2440
        %v2443 = vsel %vm433, %v2438, %v2434
        %v2444 = vsel %vm433, %v2440, %v2436
        %v2445 = vadd.f32 %v2429, %v2441
        %v2446 = vadd.f32 %v2430, %v2443
        %v2447 = vadd.f32 %v2431, %v2442
        %v2448 = vadd.f32 %v2432, %v2444
        %s2449 = scalar_lea.vmem %s2, 80
        %v2450 = vld [vmem:[%s2449] sm:$0xff]
        %v2451 = vld [vmem:[%s2449 + $0x8] sm:$0xff]
        %2453 = vset.pattern.permute.xlu0 0
        %2454 = vperm.xlu0 %2453, %v2450
        %v2455 = vpop.permute.xlu0 %2454
        %2458 = vset.pattern.permute.xlu0 0
        %2459 = vperm.xlu0 %2458, %v2451
        %v2460 = vpop.permute.xlu0 %2459
        %v2462 = vadd.f32 %v2445, %v2455
        %v2463 = vadd.f32 %v2446, %v2455
        %v2464 = vadd.f32 %v2447, %v2460
        %v2465 = vadd.f32 %v2448, %v2460
        %v2466 = vmul.f32 %v2462, 0.5
        %v2467 = vmul.f32 %v2463, 0.5
        %v2468 = vmul.f32 %v2464, 0.5
        %v2469 = vmul.f32 %v2465, 0.5
        %v2470 = vmul.f32 %v2462, 0.70710677
        %v2471 = vmul.f32 %v2463, 0.70710677
        %v2472 = vmul.f32 %v2464, 0.70710677
        %v2473 = vmul.f32 %v2465, 0.70710677
        %v2474 = vmul.f32 %v2470, %v2470
        %v2475 = vmin.f32 16.0, %v2474
        %v2476 = vmul.f32 %v2475, 2.1237322e-06
        %v2477 = vadd.f32 %v2476, 0.00028619796
        %v2478 = vmul.f32 %v2475, %v2477
        %v2479 = vadd.f32 %v2478, 0.0036580483
        %v2480 = vmul.f32 %v2475, %v2479
        %v2481 = vadd.f32 %v2480, 0.05243302
        %v2482 = vmul.f32 %v2475, %v2481
        %v2483 = vadd.f32 %v2482, 0.18741608
        %v2484 = vmul.f32 %v2475, %v2483
        %v2485 = vadd.f32 %v2484, 1.1283791
        %v2486 = vmul.f32 %v2470, %v2485
        %v2487 = vmul.f32 %v2475, 3.8918573e-05
        %v2488 = vadd.f32 %v2487, 0.001143296
        %v2489 = vmul.f32 %v2475, %v2488
        %v2490 = vadd.f32 %v2489, 0.014752088
        %v2491 = vmul.f32 %v2475, %v2490
        %v2492 = vadd.f32 %v2491, 0.112945676
        %v2493 = vmul.f32 %v2475, %v2492
        %v2494 = vadd.f32 %v2493, 0.4994258
        %v2495 = vmul.f32 %v2475, %v2494
        %v2496 = vadd.f32 %v2495, 1.0
        %v2497 = vrcp.pop %v2496
        %v2498 = vmul.f32 %v2496, %v2497
        %v2499 = vsub.f32 1.0, %v2498
        %v2500 = vmul.f32 %v2497, %v2499
        %v2501 = vadd.f32 %v2497, %v2500
        %vm2502 = vweird.f32 %v2496
        %vm2503 = vweird.f32 %v2497
        %vm2504 = vmor %vm2502, %vm2503
        %v2505 = vsel %vm2504, %v2497, %v2501
        %v2506 = vand.u32 2147483647, %v2496
        %vm2507 = vcmp.eq.f32.partialorder %v2506, 8.507059e+37
        %v2508 = vand.u32 %v2496, 2147483648
        %v2509 = vor.u32 1.1754944e-38, %v2508
        %v2510 = vsel %vm2507, %v2509, %v2505
        %v2511 = vmul.f32 %v2486, %v2510
        %v2512 = vmin.f32 %v2511, 1.0
        %v2513 = vmax.f32 %v2512, -1.0
        %v2514 = vmul.f32 %v2471, %v2471
        %v2515 = vmin.f32 16.0, %v2514
        %v2516 = vmul.f32 %v2515, 2.1237322e-06
        %v2517 = vadd.f32 %v2516, 0.00028619796
        %v2518 = vmul.f32 %v2515, %v2517
        %v2519 = vadd.f32 %v2518, 0.0036580483
        %v2520 = vmul.f32 %v2515, %v2519
        %v2521 = vadd.f32 %v2520, 0.05243302
        %v2522 = vmul.f32 %v2515, %v2521
        %v2523 = vadd.f32 %v2522, 0.18741608
        %v2524 = vmul.f32 %v2515, %v2523
        %v2525 = vadd.f32 %v2524, 1.1283791
        %v2526 = vmul.f32 %v2471, %v2525
        %v2527 = vmul.f32 %v2515, 3.8918573e-05
        %v2528 = vadd.f32 %v2527, 0.001143296
        %v2529 = vmul.f32 %v2515, %v2528
        %v2530 = vadd.f32 %v2529, 0.014752088
        %v2531 = vmul.f32 %v2515, %v2530
        %v2532 = vadd.f32 %v2531, 0.112945676
        %v2533 = vmul.f32 %v2515, %v2532
        %v2534 = vadd.f32 %v2533, 0.4994258
        %v2535 = vmul.f32 %v2515, %v2534
        %v2536 = vadd.f32 %v2535, 1.0
        %v2537 = vrcp.pop %v2536
        %v2538 = vmul.f32 %v2536, %v2537
        %v2539 = vsub.f32 1.0, %v2538
        %v2540 = vmul.f32 %v2537, %v2539
        %v2541 = vadd.f32 %v2537, %v2540
        %vm2542 = vweird.f32 %v2536
        %vm2543 = vweird.f32 %v2537
        %vm2544 = vmor %vm2542, %vm2543
        %v2545 = vsel %vm2544, %v2537, %v2541
        %v2546 = vand.u32 2147483647, %v2536
        %vm2547 = vcmp.eq.f32.partialorder %v2546, 8.507059e+37
        %v2548 = vand.u32 %v2536, 2147483648
        %v2549 = vor.u32 1.1754944e-38, %v2548
        %v2550 = vsel %vm2547, %v2549, %v2545
        %v2551 = vmul.f32 %v2526, %v2550
        %v2552 = vmin.f32 %v2551, 1.0
        %v2553 = vmax.f32 %v2552, -1.0
        %v2554 = vmul.f32 %v2472, %v2472
        %v2555 = vmin.f32 16.0, %v2554
        %v2556 = vmul.f32 %v2555, 2.1237322e-06
        %v2557 = vadd.f32 %v2556, 0.00028619796
        %v2558 = vmul.f32 %v2555, %v2557
        %v2559 = vadd.f32 %v2558, 0.0036580483
        %v2560 = vmul.f32 %v2555, %v2559
        %v2561 = vadd.f32 %v2560, 0.05243302
        %v2562 = vmul.f32 %v2555, %v2561
        %v2563 = vadd.f32 %v2562, 0.18741608
        %v2564 = vmul.f32 %v2555, %v2563
        %v2565 = vadd.f32 %v2564, 1.1283791
        %v2566 = vmul.f32 %v2472, %v2565
        %v2567 = vmul.f32 %v2555, 3.8918573e-05
        %v2568 = vadd.f32 %v2567, 0.001143296
        %v2569 = vmul.f32 %v2555, %v2568
        %v2570 = vadd.f32 %v2569, 0.014752088
        %v2571 = vmul.f32 %v2555, %v2570
        %v2572 = vadd.f32 %v2571, 0.112945676
        %v2573 = vmul.f32 %v2555, %v2572
        %v2574 = vadd.f32 %v2573, 0.4994258
        %v2575 = vmul.f32 %v2555, %v2574
        %v2576 = vadd.f32 %v2575, 1.0
        %v2577 = vrcp.pop %v2576
        %v2578 = vmul.f32 %v2576, %v2577
        %v2579 = vsub.f32 1.0, %v2578
        %v2580 = vmul.f32 %v2577, %v2579
        %v2581 = vadd.f32 %v2577, %v2580
        %vm2582 = vweird.f32 %v2576
        %vm2583 = vweird.f32 %v2577
        %vm2584 = vmor %vm2582, %vm2583
        %v2585 = vsel %vm2584, %v2577, %v2581
        %v2586 = vand.u32 2147483647, %v2576
        %vm2587 = vcmp.eq.f32.partialorder %v2586, 8.507059e+37
        %v2588 = vand.u32 %v2576, 2147483648
        %v2589 = vor.u32 1.1754944e-38, %v2588
        %v2590 = vsel %vm2587, %v2589, %v2585
        %v2591 = vmul.f32 %v2566, %v2590
        %v2592 = vmin.f32 %v2591, 1.0
        %v2593 = vmax.f32 %v2592, -1.0
        %v2594 = vmul.f32 %v2473, %v2473
        %v2595 = vmin.f32 16.0, %v2594
        %v2596 = vmul.f32 %v2595, 2.1237322e-06
        %v2597 = vadd.f32 %v2596, 0.00028619796
        %v2598 = vmul.f32 %v2595, %v2597
        %v2599 = vadd.f32 %v2598, 0.0036580483
        %v2600 = vmul.f32 %v2595, %v2599
        %v2601 = vadd.f32 %v2600, 0.05243302
        %v2602 = vmul.f32 %v2595, %v2601
        %v2603 = vadd.f32 %v2602, 0.18741608
        %v2604 = vmul.f32 %v2595, %v2603
        %v2605 = vadd.f32 %v2604, 1.1283791
        %v2606 = vmul.f32 %v2473, %v2605
        %v2607 = vmul.f32 %v2595, 3.8918573e-05
        %v2608 = vadd.f32 %v2607, 0.001143296
        %v2609 = vmul.f32 %v2595, %v2608
        %v2610 = vadd.f32 %v2609, 0.014752088
        %v2611 = vmul.f32 %v2595, %v2610
        %v2612 = vadd.f32 %v2611, 0.112945676
        %v2613 = vmul.f32 %v2595, %v2612
        %v2614 = vadd.f32 %v2613, 0.4994258
        %v2615 = vmul.f32 %v2595, %v2614
        %v2616 = vadd.f32 %v2615, 1.0
        %v2617 = vrcp.pop %v2616
        %v2618 = vmul.f32 %v2616, %v2617
        %v2619 = vsub.f32 1.0, %v2618
        %v2620 = vmul.f32 %v2617, %v2619
        %v2621 = vadd.f32 %v2617, %v2620
        %vm2622 = vweird.f32 %v2616
        %vm2623 = vweird.f32 %v2617
        %vm2624 = vmor %vm2622, %vm2623
        %v2625 = vsel %vm2624, %v2617, %v2621
        %v2626 = vand.u32 2147483647, %v2616
        %vm2627 = vcmp.eq.f32.partialorder %v2626, 8.507059e+37
        %v2628 = vand.u32 %v2616, 2147483648
        %v2629 = vor.u32 1.1754944e-38, %v2628
        %v2630 = vsel %vm2627, %v2629, %v2625
        %v2631 = vmul.f32 %v2606, %v2630
        %v2632 = vmin.f32 %v2631, 1.0
        %v2633 = vmax.f32 %v2632, -1.0
        %v2634 = vadd.f32 %v2513, 1.0
        %v2635 = vadd.f32 %v2553, 1.0
        %v2636 = vadd.f32 %v2593, 1.0
        %v2637 = vadd.f32 %v2633, 1.0
        %v2638 = vmul.f32 %v2466, %v2634
        %v2639 = vmul.f32 %v2467, %v2635
        %v2640 = vmul.f32 %v2468, %v2636
        %v2641 = vmul.f32 %v2469, %v2637
        %2642 = vrot.lane.b32.xlu0 %v2638, 15
        %v2643 = vpop.permute.xlu0 %2642
        %2644 = vrot.lane.b32.xlu0 %v2640, 15
        %v2645 = vpop.permute.xlu0 %2644
        %2646 = vrot.lane.b32.xlu0 %v2639, 15
        %v2647 = vpop.permute.xlu0 %2646
        %2648 = vrot.lane.b32.xlu0 %v2641, 15
        %v2649 = vpop.permute.xlu0 %2648
        %v2650 = vsel %vm229, %v2643, %v2647
        %v2651 = vsel %vm229, %v2645, %v2649
        %v2652 = vsel %vm229, %v2647, %v2643
        %v2653 = vsel %vm229, %v2649, %v2645
        %2654 = vrot.lane.b32.xlu0 %v2638, 127
        %v2655 = vpop.permute.xlu0 %2654
        %2656 = vrot.lane.b32.xlu0 %v2640, 127
        %v2657 = vpop.permute.xlu0 %2656
        %2658 = vrot.lane.b32.xlu0 %v2639, 127
        %v2659 = vpop.permute.xlu0 %2658
        %2660 = vrot.lane.b32.xlu0 %v2641, 127
        %v2661 = vpop.permute.xlu0 %2660
        %v2662 = vsel %vm242, %v2655, %v2659
        %v2663 = vsel %vm242, %v2657, %v2661
        %v2664 = vsel %vm242, %v2659, %v2655
        %v2665 = vsel %vm242, %v2661, %v2657
        %v2666 = vsel %vm249, %v2652, %v2662
        %v2667 = vsel %vm250, %v2650, %v2664
        %v2668 = vsel %vm249, %v2653, %v2663
        %v2669 = vsel %vm250, %v2651, %v2665
        %2670 = vrot.lane.b32.xlu0 %v2638, 113
        %v2671 = vpop.permute.xlu0 %2670
        %2672 = vrot.lane.b32.xlu0 %v2640, 113
        %v2673 = vpop.permute.xlu0 %2672
        %2674 = vrot.lane.b32.xlu0 %v2639, 113
        %v2675 = vpop.permute.xlu0 %2674
        %2676 = vrot.lane.b32.xlu0 %v2641, 113
        %v2677 = vpop.permute.xlu0 %2676
        %v2678 = vsel %vm263, %v2671, %v2675
        %v2679 = vsel %vm263, %v2673, %v2677
        %v2680 = vsel %vm263, %v2675, %v2671
        %v2681 = vsel %vm263, %v2677, %v2673
        %2682 = vrot.lane.b32.xlu0 %v2638, 1
        %v2683 = vpop.permute.xlu0 %2682
        %2684 = vrot.lane.b32.xlu0 %v2640, 1
        %v2685 = vpop.permute.xlu0 %2684
        %2686 = vrot.lane.b32.xlu0 %v2639, 1
        %v2687 = vpop.permute.xlu0 %2686
        %2688 = vrot.lane.b32.xlu0 %v2641, 1
        %v2689 = vpop.permute.xlu0 %2688
        %v2690 = vsel %vm276, %v2683, %v2687
        %v2691 = vsel %vm276, %v2685, %v2689
        %v2692 = vsel %vm276, %v2687, %v2683
        %v2693 = vsel %vm276, %v2689, %v2685
        %v2694 = vsel %vm283, %v2678, %v2692
        %v2695 = vsel %vm284, %v2680, %v2690
        %v2696 = vsel %vm283, %v2679, %v2693
        %v2697 = vsel %vm284, %v2681, %v2691
        %2698 = vst [vmem:[#allocation2] sm:$0xff] %v2694
        %2699 = vst [vmem:[#allocation2 + $0x8] sm:$0xff] %v2695
        %2700 = vst [vmem:[#allocation2 + $0x10] sm:$0xff] %v2696
        %2701 = vst [vmem:[#allocation2 + $0x18] sm:$0xff] %v2697
        %2702 = vst [vmem:[#allocation2 + $0x20] sm:$0xff] %v2638
        %2703 = vst [vmem:[#allocation2 + $0x28] sm:$0xff] %v2639
        %2704 = vst [vmem:[#allocation2 + $0x30] sm:$0xff] %v2640
        %2705 = vst [vmem:[#allocation2 + $0x38] sm:$0xff] %v2641
        %2706 = vst [vmem:[#allocation2 + $0x40] sm:$0xff] %v2666
        %2707 = vst [vmem:[#allocation2 + $0x48] sm:$0xff] %v2667
        %2708 = vst [vmem:[#allocation2 + $0x50] sm:$0xff] %v2668
        %2709 = vst [vmem:[#allocation2 + $0x58] sm:$0xff] %v2669
        %s2710 = scalar_lea.vmem [#allocation3], 288
        %v2711 = vld [vmem:[%s2710] sm:$0xff]
        %v2712 = vld [vmem:[%s2710 + $0x8] sm:$0xff]
        %v2713 = vld [vmem:[%s2710 + $0x10] sm:$0xff]
        %v2714 = vld [vmem:[%s2710 + $0x18] sm:$0xff]
        %v2715 = vld [vmem:[%s2710 + $0x20] sm:$0xff]
        %v2716 = vld [vmem:[%s2710 + $0x28] sm:$0xff]
        %v2717 = vld [vmem:[#allocation2] sm:$0xff]
        %v2718 = vld [vmem:[#allocation2 + $0x8] sm:$0xff]
        %v2719 = vld [vmem:[#allocation2 + $0x10] sm:$0xff]
        %v2720 = vld [vmem:[#allocation2 + $0x18] sm:$0xff]
        %v2721 = vld [vmem:[#allocation2 + $0x20] sm:$0xff]
        %v2722 = vld [vmem:[#allocation2 + $0x28] sm:$0xff]
        %v2723 = vld [vmem:[#allocation2 + $0x30] sm:$0xff]
        %v2724 = vld [vmem:[#allocation2 + $0x38] sm:$0xff]
        %v2725 = vld [vmem:[#allocation2 + $0x40] sm:$0xff]
        %v2726 = vld [vmem:[#allocation2 + $0x48] sm:$0xff]
        %v2727 = vld [vmem:[#allocation2 + $0x50] sm:$0xff]
        %v2728 = vld [vmem:[#allocation2 + $0x58] sm:$0xff]
        %v2730 = vsel %vm319, %v2711, 0
        %v2733 = vsel %vm319, %v2712, 0
        %v2736 = vsel %vm319, %v2713, 0
        %v2739 = vsel %vm319, %v2714, 0
        %v2742 = vsel %vm319, %v2715, 0
        %v2745 = vsel %vm319, %v2716, 0
        %2747 = vmatpush.msra.mxu0 0.0
        %2748 = vmatpush.msra.mxu0 0.0
        %2749 = vmatpush.msra.mxu0 0.0
        %2750 = vmatpush.msra.mxu0 0.0
        %2751 = vmatpush.msra.mxu0 0.0
        %2752 = vmatpush.msra.mxu0 0.0
        %2753 = vmatpush.msra.mxu0 0.0
        %2754 = vmatpush.msra.mxu0 0.0
        %2755 = vmatpush.msra.mxu0 0.0
        %2756 = vmatpush.msra.mxu0 0.0
        %2757 = vmatpush.msra.mxu0 %v2727
        %2758 = vmatpush.msra.mxu0 %v2725
        %2759 = vmatpush.msra.mxu0 %v2723
        %2760 = vmatpush.msra.mxu0 %v2721
        %2761 = vmatpush.msra.mxu0 %v2719
        %2762 = vmatpush.msra.mxu0 %v2717
        %2763 = vmatmul.f32.gmra.mxu0 %v2730
        %v2764 = vpop.f32.mrf.mxu0
        %v2765 = vadd.f32 0.0, %v2764
        %2766 = vmatmul.f32.gmra.mxu0 %v2733
        %v2767 = vpop.f32.mrf.mxu0
        %v2768 = vadd.f32 0.0, %v2767
        %2769 = vmatmul.f32.gmra.mxu0 %v2736
        %v2770 = vpop.f32.mrf.mxu0
        %v2771 = vadd.f32 0.0, %v2770
        %2772 = vmatmul.f32.gmra.mxu0 %v2739
        %v2773 = vpop.f32.mrf.mxu0
        %v2774 = vadd.f32 0.0, %v2773
        %2775 = vmatmul.f32.gmra.mxu0 %v2742
        %v2776 = vpop.f32.mrf.mxu0
        %v2777 = vadd.f32 0.0, %v2776
        %2778 = vmatmul.f32.gmra.mxu0 %v2745
        %v2779 = vpop.f32.mrf.mxu0
        %v2780 = vadd.f32 0.0, %v2779
        %2781 = vdwg.mxu0
        %2782 = vmatpush.msra.mxu0 0.0
        %2783 = vmatpush.msra.mxu0 0.0
        %2784 = vmatpush.msra.mxu0 0.0
        %2785 = vmatpush.msra.mxu0 0.0
        %2786 = vmatpush.msra.mxu0 0.0
        %2787 = vmatpush.msra.mxu0 0.0
        %2788 = vmatpush.msra.mxu0 0.0
        %2789 = vmatpush.msra.mxu0 0.0
        %2790 = vmatpush.msra.mxu0 0.0
        %2791 = vmatpush.msra.mxu0 0.0
        %2792 = vmatpush.msra.mxu0 %v2728
        %2793 = vmatpush.msra.mxu0 %v2726
        %2794 = vmatpush.msra.mxu0 %v2724
        %2795 = vmatpush.msra.mxu0 %v2722
        %2796 = vmatpush.msra.mxu0 %v2720
        %2797 = vmatpush.msra.mxu0 %v2718
        %2798 = vmatmul.f32.gmra.mxu0 %v2730
        %v2799 = vpop.f32.mrf.mxu0
        %v2800 = vadd.f32 0.0, %v2799
        %2801 = vmatmul.f32.gmra.mxu0 %v2733
        %v2802 = vpop.f32.mrf.mxu0
        %v2803 = vadd.f32 0.0, %v2802
        %2804 = vmatmul.f32.gmra.mxu0 %v2736
        %v2805 = vpop.f32.mrf.mxu0
        %v2806 = vadd.f32 0.0, %v2805
        %2807 = vmatmul.f32.gmra.mxu0 %v2739
        %v2808 = vpop.f32.mrf.mxu0
        %v2809 = vadd.f32 0.0, %v2808
        %2810 = vmatmul.f32.gmra.mxu0 %v2742
        %v2811 = vpop.f32.mrf.mxu0
        %v2812 = vadd.f32 0.0, %v2811
        %2813 = vmatmul.f32.gmra.mxu0 %v2745
        %v2814 = vpop.f32.mrf.mxu0
        %v2815 = vadd.f32 0.0, %v2814
        %2816 = vdwg.mxu0
        %2817 = vrot.lane.b32.xlu0 %v2765, 16
        %v2818 = vpop.permute.xlu0 %2817
        %2819 = vrot.lane.b32.xlu0 %v2768, 16
        %v2820 = vpop.permute.xlu0 %2819
        %2821 = vrot.lane.b32.xlu0 %v2800, 16
        %v2822 = vpop.permute.xlu0 %2821
        %2823 = vrot.lane.b32.xlu0 %v2803, 16
        %v2824 = vpop.permute.xlu0 %2823
        %v2825 = vsel %vm416, %v2818, %v2822
        %v2826 = vsel %vm416, %v2820, %v2824
        %v2827 = vsel %vm416, %v2822, %v2818
        %v2828 = vsel %vm416, %v2824, %v2820
        %v2829 = vadd.f32 %v2771, %v2827
        %v2830 = vadd.f32 %v2806, %v2825
        %v2831 = vadd.f32 %v2774, %v2828
        %v2832 = vadd.f32 %v2809, %v2826
        %2833 = vrot.lane.b32.xlu0 %v2777, 112
        %v2834 = vpop.permute.xlu0 %2833
        %2835 = vrot.lane.b32.xlu0 %v2780, 112
        %v2836 = vpop.permute.xlu0 %2835
        %2837 = vrot.lane.b32.xlu0 %v2812, 112
        %v2838 = vpop.permute.xlu0 %2837
        %2839 = vrot.lane.b32.xlu0 %v2815, 112
        %v2840 = vpop.permute.xlu0 %2839
        %v2841 = vsel %vm433, %v2834, %v2838
        %v2842 = vsel %vm433, %v2836, %v2840
        %v2843 = vsel %vm433, %v2838, %v2834
        %v2844 = vsel %vm433, %v2840, %v2836
        %v2845 = vadd.f32 %v2829, %v2841
        %v2846 = vadd.f32 %v2830, %v2843
        %v2847 = vadd.f32 %v2831, %v2842
        %v2848 = vadd.f32 %v2832, %v2844
        %s2849 = scalar_lea.vmem %s2, 96
        %v2850 = vld [vmem:[%s2849] sm:$0xff]
        %v2851 = vld [vmem:[%s2849 + $0x8] sm:$0xff]
        %2853 = vset.pattern.permute.xlu0 0
        %2854 = vperm.xlu0 %2853, %v2850
        %v2855 = vpop.permute.xlu0 %2854
        %2858 = vset.pattern.permute.xlu0 0
        %2859 = vperm.xlu0 %2858, %v2851
        %v2860 = vpop.permute.xlu0 %2859
        %v2862 = vadd.f32 %v2845, %v2855
        %v2863 = vadd.f32 %v2846, %v2855
        %v2864 = vadd.f32 %v2847, %v2860
        %v2865 = vadd.f32 %v2848, %v2860
        %v2866 = vadd.f32 %v2862, %v2238
        %v2867 = vadd.f32 %v2863, %v2239
        %v2868 = vadd.f32 %v2864, %v2240
        %v2869 = vadd.f32 %v2865, %v2241
        %v2870 = vmul.f32 %v2866, 0.5
        %v2871 = vmul.f32 %v2867, 0.5
        %v2872 = vmul.f32 %v2868, 0.5
        %v2873 = vmul.f32 %v2869, 0.5
        %v2874 = vmul.f32 %v2866, 0.70710677
        %v2875 = vmul.f32 %v2867, 0.70710677
        %v2876 = vmul.f32 %v2868, 0.70710677
        %v2877 = vmul.f32 %v2869, 0.70710677
        %v2878 = vmul.f32 %v2874, %v2874
        %v2879 = vmin.f32 16.0, %v2878
        %v2880 = vmul.f32 %v2879, 2.1237322e-06
        %v2881 = vadd.f32 %v2880, 0.00028619796
        %v2882 = vmul.f32 %v2879, %v2881
        %v2883 = vadd.f32 %v2882, 0.0036580483
        %v2884 = vmul.f32 %v2879, %v2883
        %v2885 = vadd.f32 %v2884, 0.05243302
        %v2886 = vmul.f32 %v2879, %v2885
        %v2887 = vadd.f32 %v2886, 0.18741608
        %v2888 = vmul.f32 %v2879, %v2887
        %v2889 = vadd.f32 %v2888, 1.1283791
        %v2890 = vmul.f32 %v2874, %v2889
        %v2891 = vmul.f32 %v2879, 3.8918573e-05
        %v2892 = vadd.f32 %v2891, 0.001143296
        %v2893 = vmul.f32 %v2879, %v2892
        %v2894 = vadd.f32 %v2893, 0.014752088
        %v2895 = vmul.f32 %v2879, %v2894
        %v2896 = vadd.f32 %v2895, 0.112945676
        %v2897 = vmul.f32 %v2879, %v2896
        %v2898 = vadd.f32 %v2897, 0.4994258
        %v2899 = vmul.f32 %v2879, %v2898
        %v2900 = vadd.f32 %v2899, 1.0
        %v2901 = vrcp.pop %v2900
        %v2902 = vmul.f32 %v2900, %v2901
        %v2903 = vsub.f32 1.0, %v2902
        %v2904 = vmul.f32 %v2901, %v2903
        %v2905 = vadd.f32 %v2901, %v2904
        %vm2906 = vweird.f32 %v2900
        %vm2907 = vweird.f32 %v2901
        %vm2908 = vmor %vm2906, %vm2907
        %v2909 = vsel %vm2908, %v2901, %v2905
        %v2910 = vand.u32 2147483647, %v2900
        %vm2911 = vcmp.eq.f32.partialorder %v2910, 8.507059e+37
        %v2912 = vand.u32 %v2900, 2147483648
        %v2913 = vor.u32 1.1754944e-38, %v2912
        %v2914 = vsel %vm2911, %v2913, %v2909
        %v2915 = vmul.f32 %v2890, %v2914
        %v2916 = vmin.f32 %v2915, 1.0
        %v2917 = vmax.f32 %v2916, -1.0
        %v2918 = vmul.f32 %v2875, %v2875
        %v2919 = vmin.f32 16.0, %v2918
        %v2920 = vmul.f32 %v2919, 2.1237322e-06
        %v2921 = vadd.f32 %v2920, 0.00028619796
        %v2922 = vmul.f32 %v2919, %v2921
        %v2923 = vadd.f32 %v2922, 0.0036580483
        %v2924 = vmul.f32 %v2919, %v2923
        %v2925 = vadd.f32 %v2924, 0.05243302
        %v2926 = vmul.f32 %v2919, %v2925
        %v2927 = vadd.f32 %v2926, 0.18741608
        %v2928 = vmul.f32 %v2919, %v2927
        %v2929 = vadd.f32 %v2928, 1.1283791
        %v2930 = vmul.f32 %v2875, %v2929
        %v2931 = vmul.f32 %v2919, 3.8918573e-05
        %v2932 = vadd.f32 %v2931, 0.001143296
        %v2933 = vmul.f32 %v2919, %v2932
        %v2934 = vadd.f32 %v2933, 0.014752088
        %v2935 = vmul.f32 %v2919, %v2934
        %v2936 = vadd.f32 %v2935, 0.112945676
        %v2937 = vmul.f32 %v2919, %v2936
        %v2938 = vadd.f32 %v2937, 0.4994258
        %v2939 = vmul.f32 %v2919, %v2938
        %v2940 = vadd.f32 %v2939, 1.0
        %v2941 = vrcp.pop %v2940
        %v2942 = vmul.f32 %v2940, %v2941
        %v2943 = vsub.f32 1.0, %v2942
        %v2944 = vmul.f32 %v2941, %v2943
        %v2945 = vadd.f32 %v2941, %v2944
        %vm2946 = vweird.f32 %v2940
        %vm2947 = vweird.f32 %v2941
        %vm2948 = vmor %vm2946, %vm2947
        %v2949 = vsel %vm2948, %v2941, %v2945
        %v2950 = vand.u32 2147483647, %v2940
        %vm2951 = vcmp.eq.f32.partialorder %v2950, 8.507059e+37
        %v2952 = vand.u32 %v2940, 2147483648
        %v2953 = vor.u32 1.1754944e-38, %v2952
        %v2954 = vsel %vm2951, %v2953, %v2949
        %v2955 = vmul.f32 %v2930, %v2954
        %v2956 = vmin.f32 %v2955, 1.0
        %v2957 = vmax.f32 %v2956, -1.0
        %v2958 = vmul.f32 %v2876, %v2876
        %v2959 = vmin.f32 16.0, %v2958
        %v2960 = vmul.f32 %v2959, 2.1237322e-06
        %v2961 = vadd.f32 %v2960, 0.00028619796
        %v2962 = vmul.f32 %v2959, %v2961
        %v2963 = vadd.f32 %v2962, 0.0036580483
        %v2964 = vmul.f32 %v2959, %v2963
        %v2965 = vadd.f32 %v2964, 0.05243302
        %v2966 = vmul.f32 %v2959, %v2965
        %v2967 = vadd.f32 %v2966, 0.18741608
        %v2968 = vmul.f32 %v2959, %v2967
        %v2969 = vadd.f32 %v2968, 1.1283791
        %v2970 = vmul.f32 %v2876, %v2969
        %v2971 = vmul.f32 %v2959, 3.8918573e-05
        %v2972 = vadd.f32 %v2971, 0.001143296
        %v2973 = vmul.f32 %v2959, %v2972
        %v2974 = vadd.f32 %v2973, 0.014752088
        %v2975 = vmul.f32 %v2959, %v2974
        %v2976 = vadd.f32 %v2975, 0.112945676
        %v2977 = vmul.f32 %v2959, %v2976
        %v2978 = vadd.f32 %v2977, 0.4994258
        %v2979 = vmul.f32 %v2959, %v2978
        %v2980 = vadd.f32 %v2979, 1.0
        %v2981 = vrcp.pop %v2980
        %v2982 = vmul.f32 %v2980, %v2981
        %v2983 = vsub.f32 1.0, %v2982
        %v2984 = vmul.f32 %v2981, %v2983
        %v2985 = vadd.f32 %v2981, %v2984
        %vm2986 = vweird.f32 %v2980
        %vm2987 = vweird.f32 %v2981
        %vm2988 = vmor %vm2986, %vm2987
        %v2989 = vsel %vm2988, %v2981, %v2985
        %v2990 = vand.u32 2147483647, %v2980
        %vm2991 = vcmp.eq.f32.partialorder %v2990, 8.507059e+37
        %v2992 = vand.u32 %v2980, 2147483648
        %v2993 = vor.u32 1.1754944e-38, %v2992
        %v2994 = vsel %vm2991, %v2993, %v2989
        %v2995 = vmul.f32 %v2970, %v2994
        %v2996 = vmin.f32 %v2995, 1.0
        %v2997 = vmax.f32 %v2996, -1.0
        %v2998 = vmul.f32 %v2877, %v2877
        %v2999 = vmin.f32 16.0, %v2998
        %v3000 = vmul.f32 %v2999, 2.1237322e-06
        %v3001 = vadd.f32 %v3000, 0.00028619796
        %v3002 = vmul.f32 %v2999, %v3001
        %v3003 = vadd.f32 %v3002, 0.0036580483
        %v3004 = vmul.f32 %v2999, %v3003
        %v3005 = vadd.f32 %v3004, 0.05243302
        %v3006 = vmul.f32 %v2999, %v3005
        %v3007 = vadd.f32 %v3006, 0.18741608
        %v3008 = vmul.f32 %v2999, %v3007
        %v3009 = vadd.f32 %v3008, 1.1283791
        %v3010 = vmul.f32 %v2877, %v3009
        %v3011 = vmul.f32 %v2999, 3.8918573e-05
        %v3012 = vadd.f32 %v3011, 0.001143296
        %v3013 = vmul.f32 %v2999, %v3012
        %v3014 = vadd.f32 %v3013, 0.014752088
        %v3015 = vmul.f32 %v2999, %v3014
        %v3016 = vadd.f32 %v3015, 0.112945676
        %v3017 = vmul.f32 %v2999, %v3016
        %v3018 = vadd.f32 %v3017, 0.4994258
        %v3019 = vmul.f32 %v2999, %v3018
        %v3020 = vadd.f32 %v3019, 1.0
        %v3021 = vrcp.pop %v3020
        %v3022 = vmul.f32 %v3020, %v3021
        %v3023 = vsub.f32 1.0, %v3022
        %v3024 = vmul.f32 %v3021, %v3023
        %v3025 = vadd.f32 %v3021, %v3024
        %vm3026 = vweird.f32 %v3020
        %vm3027 = vweird.f32 %v3021
        %vm3028 = vmor %vm3026, %vm3027
        %v3029 = vsel %vm3028, %v3021, %v3025
        %v3030 = vand.u32 2147483647, %v3020
        %vm3031 = vcmp.eq.f32.partialorder %v3030, 8.507059e+37
        %v3032 = vand.u32 %v3020, 2147483648
        %v3033 = vor.u32 1.1754944e-38, %v3032
        %v3034 = vsel %vm3031, %v3033, %v3029
        %v3035 = vmul.f32 %v3010, %v3034
        %v3036 = vmin.f32 %v3035, 1.0
        %v3037 = vmax.f32 %v3036, -1.0
        %v3038 = vadd.f32 %v2917, 1.0
        %v3039 = vadd.f32 %v2957, 1.0
        %v3040 = vadd.f32 %v2997, 1.0
        %v3041 = vadd.f32 %v3037, 1.0
        %v3042 = vmul.f32 %v2870, %v3038
        %v3043 = vmul.f32 %v2871, %v3039
        %v3044 = vmul.f32 %v2872, %v3040
        %v3045 = vmul.f32 %v2873, %v3041
        %3046 = vrot.lane.b32.xlu0 %v3042, 15
        %v3047 = vpop.permute.xlu0 %3046
        %3048 = vrot.lane.b32.xlu0 %v3044, 15
        %v3049 = vpop.permute.xlu0 %3048
        %3050 = vrot.lane.b32.xlu0 %v3043, 15
        %v3051 = vpop.permute.xlu0 %3050
        %3052 = vrot.lane.b32.xlu0 %v3045, 15
        %v3053 = vpop.permute.xlu0 %3052
        %v3054 = vsel %vm229, %v3047, %v3051
        %v3055 = vsel %vm229, %v3049, %v3053
        %v3056 = vsel %vm229, %v3051, %v3047
        %v3057 = vsel %vm229, %v3053, %v3049
        %3058 = vrot.lane.b32.xlu0 %v3042, 127
        %v3059 = vpop.permute.xlu0 %3058
        %3060 = vrot.lane.b32.xlu0 %v3044, 127
        %v3061 = vpop.permute.xlu0 %3060
        %3062 = vrot.lane.b32.xlu0 %v3043, 127
        %v3063 = vpop.permute.xlu0 %3062
        %3064 = vrot.lane.b32.xlu0 %v3045, 127
        %v3065 = vpop.permute.xlu0 %3064
        %v3066 = vsel %vm242, %v3059, %v3063
        %v3067 = vsel %vm242, %v3061, %v3065
        %v3068 = vsel %vm242, %v3063, %v3059
        %v3069 = vsel %vm242, %v3065, %v3061
        %v3070 = vsel %vm249, %v3056, %v3066
        %v3071 = vsel %vm250, %v3054, %v3068
        %v3072 = vsel %vm249, %v3057, %v3067
        %v3073 = vsel %vm250, %v3055, %v3069
        %3074 = vrot.lane.b32.xlu0 %v3042, 113
        %v3075 = vpop.permute.xlu0 %3074
        %3076 = vrot.lane.b32.xlu0 %v3044, 113
        %v3077 = vpop.permute.xlu0 %3076
        %3078 = vrot.lane.b32.xlu0 %v3043, 113
        %v3079 = vpop.permute.xlu0 %3078
        %3080 = vrot.lane.b32.xlu0 %v3045, 113
        %v3081 = vpop.permute.xlu0 %3080
        %v3082 = vsel %vm263, %v3075, %v3079
        %v3083 = vsel %vm263, %v3077, %v3081
        %v3084 = vsel %vm263, %v3079, %v3075
        %v3085 = vsel %vm263, %v3081, %v3077
        %3086 = vrot.lane.b32.xlu0 %v3042, 1
        %v3087 = vpop.permute.xlu0 %3086
        %3088 = vrot.lane.b32.xlu0 %v3044, 1
        %v3089 = vpop.permute.xlu0 %3088
        %3090 = vrot.lane.b32.xlu0 %v3043, 1
        %v3091 = vpop.permute.xlu0 %3090
        %3092 = vrot.lane.b32.xlu0 %v3045, 1
        %v3093 = vpop.permute.xlu0 %3092
        %v3094 = vsel %vm276, %v3087, %v3091
        %v3095 = vsel %vm276, %v3089, %v3093
        %v3096 = vsel %vm276, %v3091, %v3087
        %v3097 = vsel %vm276, %v3093, %v3089
        %v3098 = vsel %vm283, %v3082, %v3096
        %v3099 = vsel %vm284, %v3084, %v3094
        %v3100 = vsel %vm283, %v3083, %v3097
        %v3101 = vsel %vm284, %v3085, %v3095
        %3102 = vst [vmem:[#allocation2] sm:$0xff] %v3098
        %3103 = vst [vmem:[#allocation2 + $0x8] sm:$0xff] %v3099
        %3104 = vst [vmem:[#allocation2 + $0x10] sm:$0xff] %v3100
        %3105 = vst [vmem:[#allocation2 + $0x18] sm:$0xff] %v3101
        %3106 = vst [vmem:[#allocation2 + $0x20] sm:$0xff] %v3042
        %3107 = vst [vmem:[#allocation2 + $0x28] sm:$0xff] %v3043
        %3108 = vst [vmem:[#allocation2 + $0x30] sm:$0xff] %v3044
        %3109 = vst [vmem:[#allocation2 + $0x38] sm:$0xff] %v3045
        %3110 = vst [vmem:[#allocation2 + $0x40] sm:$0xff] %v3070
        %3111 = vst [vmem:[#allocation2 + $0x48] sm:$0xff] %v3071
        %3112 = vst [vmem:[#allocation2 + $0x50] sm:$0xff] %v3072
        %3113 = vst [vmem:[#allocation2 + $0x58] sm:$0xff] %v3073
        %s3114 = scalar_lea.vmem [#allocation3], 336
        %v3115 = vld [vmem:[%s3114] sm:$0xff]
        %v3116 = vld [vmem:[%s3114 + $0x8] sm:$0xff]
        %v3117 = vld [vmem:[%s3114 + $0x10] sm:$0xff]
        %v3118 = vld [vmem:[%s3114 + $0x18] sm:$0xff]
        %v3119 = vld [vmem:[%s3114 + $0x20] sm:$0xff]
        %v3120 = vld [vmem:[%s3114 + $0x28] sm:$0xff]
        %v3121 = vld [vmem:[#allocation2] sm:$0xff]
        %v3122 = vld [vmem:[#allocation2 + $0x8] sm:$0xff]
        %v3123 = vld [vmem:[#allocation2 + $0x10] sm:$0xff]
        %v3124 = vld [vmem:[#allocation2 + $0x18] sm:$0xff]
        %v3125 = vld [vmem:[#allocation2 + $0x20] sm:$0xff]
        %v3126 = vld [vmem:[#allocation2 + $0x28] sm:$0xff]
        %v3127 = vld [vmem:[#allocation2 + $0x30] sm:$0xff]
        %v3128 = vld [vmem:[#allocation2 + $0x38] sm:$0xff]
        %v3129 = vld [vmem:[#allocation2 + $0x40] sm:$0xff]
        %v3130 = vld [vmem:[#allocation2 + $0x48] sm:$0xff]
        %v3131 = vld [vmem:[#allocation2 + $0x50] sm:$0xff]
        %v3132 = vld [vmem:[#allocation2 + $0x58] sm:$0xff]
        %v3134 = vsel %vm319, %v3115, 0
        %v3137 = vsel %vm319, %v3116, 0
        %v3140 = vsel %vm319, %v3117, 0
        %v3143 = vsel %vm319, %v3118, 0
        %v3146 = vsel %vm319, %v3119, 0
        %v3149 = vsel %vm319, %v3120, 0
        %3151 = vmatpush.msra.mxu0 0.0
        %3152 = vmatpush.msra.mxu0 0.0
        %3153 = vmatpush.msra.mxu0 0.0
        %3154 = vmatpush.msra.mxu0 0.0
        %3155 = vmatpush.msra.mxu0 0.0
        %3156 = vmatpush.msra.mxu0 0.0
        %3157 = vmatpush.msra.mxu0 0.0
        %3158 = vmatpush.msra.mxu0 0.0
        %3159 = vmatpush.msra.mxu0 0.0
        %3160 = vmatpush.msra.mxu0 0.0
        %3161 = vmatpush.msra.mxu0 %v3131
        %3162 = vmatpush.msra.mxu0 %v3129
        %3163 = vmatpush.msra.mxu0 %v3127
        %3164 = vmatpush.msra.mxu0 %v3125
        %3165 = vmatpush.msra.mxu0 %v3123
        %3166 = vmatpush.msra.mxu0 %v3121
        %3167 = vmatmul.f32.gmra.mxu0 %v3134
        %v3168 = vpop.f32.mrf.mxu0
        %v3169 = vadd.f32 0.0, %v3168
        %3170 = vmatmul.f32.gmra.mxu0 %v3137
        %v3171 = vpop.f32.mrf.mxu0
        %v3172 = vadd.f32 0.0, %v3171
        %3173 = vmatmul.f32.gmra.mxu0 %v3140
        %v3174 = vpop.f32.mrf.mxu0
        %v3175 = vadd.f32 0.0, %v3174
        %3176 = vmatmul.f32.gmra.mxu0 %v3143
        %v3177 = vpop.f32.mrf.mxu0
        %v3178 = vadd.f32 0.0, %v3177
        %3179 = vmatmul.f32.gmra.mxu0 %v3146
        %v3180 = vpop.f32.mrf.mxu0
        %v3181 = vadd.f32 0.0, %v3180
        %3182 = vmatmul.f32.gmra.mxu0 %v3149
        %v3183 = vpop.f32.mrf.mxu0
        %v3184 = vadd.f32 0.0, %v3183
        %3185 = vdwg.mxu0
        %3186 = vmatpush.msra.mxu0 0.0
        %3187 = vmatpush.msra.mxu0 0.0
        %3188 = vmatpush.msra.mxu0 0.0
        %3189 = vmatpush.msra.mxu0 0.0
        %3190 = vmatpush.msra.mxu0 0.0
        %3191 = vmatpush.msra.mxu0 0.0
        %3192 = vmatpush.msra.mxu0 0.0
        %3193 = vmatpush.msra.mxu0 0.0
        %3194 = vmatpush.msra.mxu0 0.0
        %3195 = vmatpush.msra.mxu0 0.0
        %3196 = vmatpush.msra.mxu0 %v3132
        %3197 = vmatpush.msra.mxu0 %v3130
        %3198 = vmatpush.msra.mxu0 %v3128
        %3199 = vmatpush.msra.mxu0 %v3126
        %3200 = vmatpush.msra.mxu0 %v3124
        %3201 = vmatpush.msra.mxu0 %v3122
        %3202 = vmatmul.f32.gmra.mxu0 %v3134
        %v3203 = vpop.f32.mrf.mxu0
        %v3204 = vadd.f32 0.0, %v3203
        %3205 = vmatmul.f32.gmra.mxu0 %v3137
        %v3206 = vpop.f32.mrf.mxu0
        %v3207 = vadd.f32 0.0, %v3206
        %3208 = vmatmul.f32.gmra.mxu0 %v3140
        %v3209 = vpop.f32.mrf.mxu0
        %v3210 = vadd.f32 0.0, %v3209
        %3211 = vmatmul.f32.gmra.mxu0 %v3143
        %v3212 = vpop.f32.mrf.mxu0
        %v3213 = vadd.f32 0.0, %v3212
        %3214 = vmatmul.f32.gmra.mxu0 %v3146
        %v3215 = vpop.f32.mrf.mxu0
        %v3216 = vadd.f32 0.0, %v3215
        %3217 = vmatmul.f32.gmra.mxu0 %v3149
        %v3218 = vpop.f32.mrf.mxu0
        %v3219 = vadd.f32 0.0, %v3218
        %3220 = vdwg.mxu0
        %3221 = vrot.lane.b32.xlu0 %v3169, 16
        %v3222 = vpop.permute.xlu0 %3221
        %3223 = vrot.lane.b32.xlu0 %v3172, 16
        %v3224 = vpop.permute.xlu0 %3223
        %3225 = vrot.lane.b32.xlu0 %v3204, 16
        %v3226 = vpop.permute.xlu0 %3225
        %3227 = vrot.lane.b32.xlu0 %v3207, 16
        %v3228 = vpop.permute.xlu0 %3227
        %v3229 = vsel %vm416, %v3222, %v3226
        %v3230 = vsel %vm416, %v3224, %v3228
        %v3231 = vsel %vm416, %v3226, %v3222
        %v3232 = vsel %vm416, %v3228, %v3224
        %v3233 = vadd.f32 %v3175, %v3231
        %v3234 = vadd.f32 %v3210, %v3229
        %v3235 = vadd.f32 %v3178, %v3232
        %v3236 = vadd.f32 %v3213, %v3230
        %3237 = vrot.lane.b32.xlu0 %v3181, 112
        %v3238 = vpop.permute.xlu0 %3237
        %3239 = vrot.lane.b32.xlu0 %v3184, 112
        %v3240 = vpop.permute.xlu0 %3239
        %3241 = vrot.lane.b32.xlu0 %v3216, 112
        %v3242 = vpop.permute.xlu0 %3241
        %3243 = vrot.lane.b32.xlu0 %v3219, 112
        %v3244 = vpop.permute.xlu0 %3243
        %v3245 = vsel %vm433, %v3238, %v3242
        %v3246 = vsel %vm433, %v3240, %v3244
        %v3247 = vsel %vm433, %v3242, %v3238
        %v3248 = vsel %vm433, %v3244, %v3240
        %v3249 = vadd.f32 %v3233, %v3245
        %v3250 = vadd.f32 %v3234, %v3247
        %v3251 = vadd.f32 %v3235, %v3246
        %v3252 = vadd.f32 %v3236, %v3248
        %s3253 = scalar_lea.vmem %s2, 112
        %v3254 = vld [vmem:[%s3253] sm:$0xff]
        %v3255 = vld [vmem:[%s3253 + $0x8] sm:$0xff]
        %3257 = vset.pattern.permute.xlu0 0
        %3258 = vperm.xlu0 %3257, %v3254
        %v3259 = vpop.permute.xlu0 %3258
        %3262 = vset.pattern.permute.xlu0 0
        %3263 = vperm.xlu0 %3262, %v3255
        %v3264 = vpop.permute.xlu0 %3263
        %v3266 = vadd.f32 %v3249, %v3259
        %v3267 = vadd.f32 %v3250, %v3259
        %v3268 = vadd.f32 %v3251, %v3264
        %v3269 = vadd.f32 %v3252, %v3264
        %v3270 = vmul.f32 %v3266, 0.5
        %v3271 = vmul.f32 %v3267, 0.5
        %v3272 = vmul.f32 %v3268, 0.5
        %v3273 = vmul.f32 %v3269, 0.5
        %v3274 = vmul.f32 %v3266, 0.70710677
        %v3275 = vmul.f32 %v3267, 0.70710677
        %v3276 = vmul.f32 %v3268, 0.70710677
        %v3277 = vmul.f32 %v3269, 0.70710677
        %v3278 = vmul.f32 %v3274, %v3274
        %v3279 = vmin.f32 16.0, %v3278
        %v3280 = vmul.f32 %v3279, 2.1237322e-06
        %v3281 = vadd.f32 %v3280, 0.00028619796
        %v3282 = vmul.f32 %v3279, %v3281
        %v3283 = vadd.f32 %v3282, 0.0036580483
        %v3284 = vmul.f32 %v3279, %v3283
        %v3285 = vadd.f32 %v3284, 0.05243302
        %v3286 = vmul.f32 %v3279, %v3285
        %v3287 = vadd.f32 %v3286, 0.18741608
        %v3288 = vmul.f32 %v3279, %v3287
        %v3289 = vadd.f32 %v3288, 1.1283791
        %v3290 = vmul.f32 %v3274, %v3289
        %v3291 = vmul.f32 %v3279, 3.8918573e-05
        %v3292 = vadd.f32 %v3291, 0.001143296
        %v3293 = vmul.f32 %v3279, %v3292
        %v3294 = vadd.f32 %v3293, 0.014752088
        %v3295 = vmul.f32 %v3279, %v3294
        %v3296 = vadd.f32 %v3295, 0.112945676
        %v3297 = vmul.f32 %v3279, %v3296
        %v3298 = vadd.f32 %v3297, 0.4994258
        %v3299 = vmul.f32 %v3279, %v3298
        %v3300 = vadd.f32 %v3299, 1.0
        %v3301 = vrcp.pop %v3300
        %v3302 = vmul.f32 %v3300, %v3301
        %v3303 = vsub.f32 1.0, %v3302
        %v3304 = vmul.f32 %v3301, %v3303
        %v3305 = vadd.f32 %v3301, %v3304
        %vm3306 = vweird.f32 %v3300
        %vm3307 = vweird.f32 %v3301
        %vm3308 = vmor %vm3306, %vm3307
        %v3309 = vsel %vm3308, %v3301, %v3305
        %v3310 = vand.u32 2147483647, %v3300
        %vm3311 = vcmp.eq.f32.partialorder %v3310, 8.507059e+37
        %v3312 = vand.u32 %v3300, 2147483648
        %v3313 = vor.u32 1.1754944e-38, %v3312
        %v3314 = vsel %vm3311, %v3313, %v3309
        %v3315 = vmul.f32 %v3290, %v3314
        %v3316 = vmin.f32 %v3315, 1.0
        %v3317 = vmax.f32 %v3316, -1.0
        %v3318 = vmul.f32 %v3275, %v3275
        %v3319 = vmin.f32 16.0, %v3318
        %v3320 = vmul.f32 %v3319, 2.1237322e-06
        %v3321 = vadd.f32 %v3320, 0.00028619796
        %v3322 = vmul.f32 %v3319, %v3321
        %v3323 = vadd.f32 %v3322, 0.0036580483
        %v3324 = vmul.f32 %v3319, %v3323
        %v3325 = vadd.f32 %v3324, 0.05243302
        %v3326 = vmul.f32 %v3319, %v3325
        %v3327 = vadd.f32 %v3326, 0.18741608
        %v3328 = vmul.f32 %v3319, %v3327
        %v3329 = vadd.f32 %v3328, 1.1283791
        %v3330 = vmul.f32 %v3275, %v3329
        %v3331 = vmul.f32 %v3319, 3.8918573e-05
        %v3332 = vadd.f32 %v3331, 0.001143296
        %v3333 = vmul.f32 %v3319, %v3332
        %v3334 = vadd.f32 %v3333, 0.014752088
        %v3335 = vmul.f32 %v3319, %v3334
        %v3336 = vadd.f32 %v3335, 0.112945676
        %v3337 = vmul.f32 %v3319, %v3336
        %v3338 = vadd.f32 %v3337, 0.4994258
        %v3339 = vmul.f32 %v3319, %v3338
        %v3340 = vadd.f32 %v3339, 1.0
        %v3341 = vrcp.pop %v3340
        %v3342 = vmul.f32 %v3340, %v3341
        %v3343 = vsub.f32 1.0, %v3342
        %v3344 = vmul.f32 %v3341, %v3343
        %v3345 = vadd.f32 %v3341, %v3344
        %vm3346 = vweird.f32 %v3340
        %vm3347 = vweird.f32 %v3341
        %vm3348 = vmor %vm3346, %vm3347
        %v3349 = vsel %vm3348, %v3341, %v3345
        %v3350 = vand.u32 2147483647, %v3340
        %vm3351 = vcmp.eq.f32.partialorder %v3350, 8.507059e+37
        %v3352 = vand.u32 %v3340, 2147483648
        %v3353 = vor.u32 1.1754944e-38, %v3352
        %v3354 = vsel %vm3351, %v3353, %v3349
        %v3355 = vmul.f32 %v3330, %v3354
        %v3356 = vmin.f32 %v3355, 1.0
        %v3357 = vmax.f32 %v3356, -1.0
        %v3358 = vmul.f32 %v3276, %v3276
        %v3359 = vmin.f32 16.0, %v3358
        %v3360 = vmul.f32 %v3359, 2.1237322e-06
        %v3361 = vadd.f32 %v3360, 0.00028619796
        %v3362 = vmul.f32 %v3359, %v3361
        %v3363 = vadd.f32 %v3362, 0.0036580483
        %v3364 = vmul.f32 %v3359, %v3363
        %v3365 = vadd.f32 %v3364, 0.05243302
        %v3366 = vmul.f32 %v3359, %v3365
        %v3367 = vadd.f32 %v3366, 0.18741608
        %v3368 = vmul.f32 %v3359, %v3367
        %v3369 = vadd.f32 %v3368, 1.1283791
        %v3370 = vmul.f32 %v3276, %v3369
        %v3371 = vmul.f32 %v3359, 3.8918573e-05
        %v3372 = vadd.f32 %v3371, 0.001143296
        %v3373 = vmul.f32 %v3359, %v3372
        %v3374 = vadd.f32 %v3373, 0.014752088
        %v3375 = vmul.f32 %v3359, %v3374
        %v3376 = vadd.f32 %v3375, 0.112945676
        %v3377 = vmul.f32 %v3359, %v3376
        %v3378 = vadd.f32 %v3377, 0.4994258
        %v3379 = vmul.f32 %v3359, %v3378
        %v3380 = vadd.f32 %v3379, 1.0
        %v3381 = vrcp.pop %v3380
        %v3382 = vmul.f32 %v3380, %v3381
        %v3383 = vsub.f32 1.0, %v3382
        %v3384 = vmul.f32 %v3381, %v3383
        %v3385 = vadd.f32 %v3381, %v3384
        %vm3386 = vweird.f32 %v3380
        %vm3387 = vweird.f32 %v3381
        %vm3388 = vmor %vm3386, %vm3387
        %v3389 = vsel %vm3388, %v3381, %v3385
        %v3390 = vand.u32 2147483647, %v3380
        %vm3391 = vcmp.eq.f32.partialorder %v3390, 8.507059e+37
        %v3392 = vand.u32 %v3380, 2147483648
        %v3393 = vor.u32 1.1754944e-38, %v3392
        %v3394 = vsel %vm3391, %v3393, %v3389
        %v3395 = vmul.f32 %v3370, %v3394
        %v3396 = vmin.f32 %v3395, 1.0
        %v3397 = vmax.f32 %v3396, -1.0
        %v3398 = vmul.f32 %v3277, %v3277
        %v3399 = vmin.f32 16.0, %v3398
        %v3400 = vmul.f32 %v3399, 2.1237322e-06
        %v3401 = vadd.f32 %v3400, 0.00028619796
        %v3402 = vmul.f32 %v3399, %v3401
        %v3403 = vadd.f32 %v3402, 0.0036580483
        %v3404 = vmul.f32 %v3399, %v3403
        %v3405 = vadd.f32 %v3404, 0.05243302
        %v3406 = vmul.f32 %v3399, %v3405
        %v3407 = vadd.f32 %v3406, 0.18741608
        %v3408 = vmul.f32 %v3399, %v3407
        %v3409 = vadd.f32 %v3408, 1.1283791
        %v3410 = vmul.f32 %v3277, %v3409
        %v3411 = vmul.f32 %v3399, 3.8918573e-05
        %v3412 = vadd.f32 %v3411, 0.001143296
        %v3413 = vmul.f32 %v3399, %v3412
        %v3414 = vadd.f32 %v3413, 0.014752088
        %v3415 = vmul.f32 %v3399, %v3414
        %v3416 = vadd.f32 %v3415, 0.112945676
        %v3417 = vmul.f32 %v3399, %v3416
        %v3418 = vadd.f32 %v3417, 0.4994258
        %v3419 = vmul.f32 %v3399, %v3418
        %v3420 = vadd.f32 %v3419, 1.0
        %v3421 = vrcp.pop %v3420
        %v3422 = vmul.f32 %v3420, %v3421
        %v3423 = vsub.f32 1.0, %v3422
        %v3424 = vmul.f32 %v3421, %v3423
        %v3425 = vadd.f32 %v3421, %v3424
        %vm3426 = vweird.f32 %v3420
        %vm3427 = vweird.f32 %v3421
        %vm3428 = vmor %vm3426, %vm3427
        %v3429 = vsel %vm3428, %v3421, %v3425
        %v3430 = vand.u32 2147483647, %v3420
        %vm3431 = vcmp.eq.f32.partialorder %v3430, 8.507059e+37
        %v3432 = vand.u32 %v3420, 2147483648
        %v3433 = vor.u32 1.1754944e-38, %v3432
        %v3434 = vsel %vm3431, %v3433, %v3429
        %v3435 = vmul.f32 %v3410, %v3434
        %v3436 = vmin.f32 %v3435, 1.0
        %v3437 = vmax.f32 %v3436, -1.0
        %v3438 = vadd.f32 %v3317, 1.0
        %v3439 = vadd.f32 %v3357, 1.0
        %v3440 = vadd.f32 %v3397, 1.0
        %v3441 = vadd.f32 %v3437, 1.0
        %v3442 = vmul.f32 %v3270, %v3438
        %v3443 = vmul.f32 %v3271, %v3439
        %v3444 = vmul.f32 %v3272, %v3440
        %v3445 = vmul.f32 %v3273, %v3441
        %v3446 = vand.u32 2147483647, %v3442
        %v3447 = vand.u32 2147483647, %v3443
        %v3448 = vand.u32 2147483647, %v3444
        %v3449 = vand.u32 2147483647, %v3445
        %vm3450 = vcmp.gt.f32.partialorder %v3446, 2.4142137
        %vm3451 = vcmp.gt.f32.partialorder %v3447, 2.4142137
        %vm3452 = vcmp.gt.f32.partialorder %v3448, 2.4142137
        %vm3453 = vcmp.gt.f32.partialorder %v3449, 2.4142137
        %vm3454 = vcmp.gt.f32.partialorder %v3446, 0.41421357
        %vm3455 = vcmp.gt.f32.partialorder %v3447, 0.41421357
        %vm3456 = vcmp.gt.f32.partialorder %v3448, 0.41421357
        %vm3457 = vcmp.gt.f32.partialorder %v3449, 0.41421357
        %v3458 = vrcp.pop %v3446
        %v3459 = vmul.f32 %v3446, %v3458
        %v3460 = vsub.f32 1.0, %v3459
        %v3461 = vmul.f32 %v3458, %v3460
        %v3462 = vadd.f32 %v3458, %v3461
        %vm3463 = vweird.f32 %v3446
        %vm3464 = vweird.f32 %v3458
        %vm3465 = vmor %vm3463, %vm3464
        %v3466 = vsel %vm3465, %v3458, %v3462
        %v3467 = vand.u32 2147483647, %v3446
        %vm3468 = vcmp.eq.f32.partialorder %v3467, 8.507059e+37
        %v3469 = vand.u32 %v3446, 2147483648
        %v3470 = vor.u32 1.1754944e-38, %v3469
        %v3471 = vsel %vm3468, %v3470, %v3466
        %v3472 = vrcp.pop %v3447
        %v3473 = vmul.f32 %v3447, %v3472
        %v3474 = vsub.f32 1.0, %v3473
        %v3475 = vmul.f32 %v3472, %v3474
        %v3476 = vadd.f32 %v3472, %v3475
        %vm3477 = vweird.f32 %v3447
        %vm3478 = vweird.f32 %v3472
        %vm3479 = vmor %vm3477, %vm3478
        %v3480 = vsel %vm3479, %v3472, %v3476
        %v3481 = vand.u32 2147483647, %v3447
        %vm3482 = vcmp.eq.f32.partialorder %v3481, 8.507059e+37
        %v3483 = vand.u32 %v3447, 2147483648
        %v3484 = vor.u32 1.1754944e-38, %v3483
        %v3485 = vsel %vm3482, %v3484, %v3480
        %v3486 = vrcp.pop %v3448
        %v3487 = vmul.f32 %v3448, %v3486
        %v3488 = vsub.f32 1.0, %v3487
        %v3489 = vmul.f32 %v3486, %v3488
        %v3490 = vadd.f32 %v3486, %v3489
        %vm3491 = vweird.f32 %v3448
        %vm3492 = vweird.f32 %v3486
        %vm3493 = vmor %vm3491, %vm3492
        %v3494 = vsel %vm3493, %v3486, %v3490
        %v3495 = vand.u32 2147483647, %v3448
        %vm3496 = vcmp.eq.f32.partialorder %v3495, 8.507059e+37
        %v3497 = vand.u32 %v3448, 2147483648
        %v3498 = vor.u32 1.1754944e-38, %v3497
        %v3499 = vsel %vm3496, %v3498, %v3494
        %v3500 = vrcp.pop %v3449
        %v3501 = vmul.f32 %v3449, %v3500
        %v3502 = vsub.f32 1.0, %v3501
        %v3503 = vmul.f32 %v3500, %v3502
        %v3504 = vadd.f32 %v3500, %v3503
        %vm3505 = vweird.f32 %v3449
        %vm3506 = vweird.f32 %v3500
        %vm3507 = vmor %vm3505, %vm3506
        %v3508 = vsel %vm3507, %v3500, %v3504
        %v3509 = vand.u32 2147483647, %v3449
        %vm3510 = vcmp.eq.f32.partialorder %v3509, 8.507059e+37
        %v3511 = vand.u32 %v3449, 2147483648
        %v3512 = vor.u32 1.1754944e-38, %v3511
        %v3513 = vsel %vm3510, %v3512, %v3508
        %v3514 = vadd.f32 %v3446, 1.0
        %v3515 = vadd.f32 %v3447, 1.0
        %v3516 = vadd.f32 %v3448, 1.0
        %v3517 = vadd.f32 %v3449, 1.0
        %v3518 = vrcp.pop %v3514
        %v3519 = vmul.f32 %v3514, %v3518
        %v3520 = vsub.f32 1.0, %v3519
        %v3521 = vmul.f32 %v3518, %v3520
        %v3522 = vadd.f32 %v3518, %v3521
        %vm3523 = vweird.f32 %v3514
        %vm3524 = vweird.f32 %v3518
        %vm3525 = vmor %vm3523, %vm3524
        %v3526 = vsel %vm3525, %v3518, %v3522
        %v3527 = vand.u32 2147483647, %v3514
        %vm3528 = vcmp.eq.f32.partialorder %v3527, 8.507059e+37
        %v3529 = vand.u32 %v3514, 2147483648
        %v3530 = vor.u32 1.1754944e-38, %v3529
        %v3531 = vsel %vm3528, %v3530, %v3526
        %v3532 = vrcp.pop %v3515
        %v3533 = vmul.f32 %v3515, %v3532
        %v3534 = vsub.f32 1.0, %v3533
        %v3535 = vmul.f32 %v3532, %v3534
        %v3536 = vadd.f32 %v3532, %v3535
        %vm3537 = vweird.f32 %v3515
        %vm3538 = vweird.f32 %v3532
        %vm3539 = vmor %vm3537, %vm3538
        %v3540 = vsel %vm3539, %v3532, %v3536
        %v3541 = vand.u32 2147483647, %v3515
        %vm3542 = vcmp.eq.f32.partialorder %v3541, 8.507059e+37
        %v3543 = vand.u32 %v3515, 2147483648
        %v3544 = vor.u32 1.1754944e-38, %v3543
        %v3545 = vsel %vm3542, %v3544, %v3540
        %v3546 = vrcp.pop %v3516
        %v3547 = vmul.f32 %v3516, %v3546
        %v3548 = vsub.f32 1.0, %v3547
        %v3549 = vmul.f32 %v3546, %v3548
        %v3550 = vadd.f32 %v3546, %v3549
        %vm3551 = vweird.f32 %v3516
        %vm3552 = vweird.f32 %v3546
        %vm3553 = vmor %vm3551, %vm3552
        %v3554 = vsel %vm3553, %v3546, %v3550
        %v3555 = vand.u32 2147483647, %v3516
        %vm3556 = vcmp.eq.f32.partialorder %v3555, 8.507059e+37
        %v3557 = vand.u32 %v3516, 2147483648
        %v3558 = vor.u32 1.1754944e-38, %v3557
        %v3559 = vsel %vm3556, %v3558, %v3554
        %v3560 = vrcp.pop %v3517
        %v3561 = vmul.f32 %v3517, %v3560
        %v3562 = vsub.f32 1.0, %v3561
        %v3563 = vmul.f32 %v3560, %v3562
        %v3564 = vadd.f32 %v3560, %v3563
        %vm3565 = vweird.f32 %v3517
        %vm3566 = vweird.f32 %v3560
        %vm3567 = vmor %vm3565, %vm3566
        %v3568 = vsel %vm3567, %v3560, %v3564
        %v3569 = vand.u32 2147483647, %v3517
        %vm3570 = vcmp.eq.f32.partialorder %v3569, 8.507059e+37
        %v3571 = vand.u32 %v3517, 2147483648
        %v3572 = vor.u32 1.1754944e-38, %v3571
        %v3573 = vsel %vm3570, %v3572, %v3568
        %v3574 = vsub.f32 0.0, %v3471
        %v3575 = vsub.f32 0.0, %v3485
        %v3576 = vsub.f32 0.0, %v3499
        %v3577 = vsub.f32 0.0, %v3513
        %v3578 = vsub.f32 %v3446, 1.0
        %v3579 = vsub.f32 %v3447, 1.0
        %v3580 = vsub.f32 %v3448, 1.0
        %v3581 = vsub.f32 %v3449, 1.0
        %v3582 = vmul.f32 %v3578, %v3531
        %v3583 = vmul.f32 %v3579, %v3545
        %v3584 = vmul.f32 %v3580, %v3559
        %v3585 = vmul.f32 %v3581, %v3573
        %v3586 = vsel %vm3454, %v3582, %v3446
        %v3587 = vsel %vm3455, %v3583, %v3447
        %v3588 = vsel %vm3456, %v3584, %v3448
        %v3589 = vsel %vm3457, %v3585, %v3449
        %v3590 = vsel %vm3450, %v3574, %v3586
        %v3591 = vsel %vm3451, %v3575, %v3587
        %v3592 = vsel %vm3452, %v3576, %v3588
        %v3593 = vsel %vm3453, %v3577, %v3589
        %v3594 = vsel %vm3454, 0.7853982, 0.0
        %v3595 = vsel %vm3455, 0.7853982, 0.0
        %v3596 = vsel %vm3456, 0.7853982, 0.0
        %v3597 = vsel %vm3457, 0.7853982, 0.0
        %v3598 = vsel %vm3450, 1.5707964, %v3594
        %v3599 = vsel %vm3451, 1.5707964, %v3595
        %v3600 = vsel %vm3452, 1.5707964, %v3596
        %v3601 = vsel %vm3453, 1.5707964, %v3597
        %v3602 = vmul.f32 %v3590, %v3590
        %v3603 = vmul.f32 %v3591, %v3591
        %v3604 = vmul.f32 %v3592, %v3592
        %v3605 = vmul.f32 %v3593, %v3593
        %v3606 = vmul.f32 %v3602, 0.080537446
        %v3607 = vmul.f32 %v3603, 0.080537446
        %v3608 = vmul.f32 %v3604, 0.080537446
        %v3609 = vmul.f32 %v3605, 0.080537446
        %v3610 = vsub.f32 %v3606, 0.13877685
        %v3611 = vsub.f32 %v3607, 0.13877685
        %v3612 = vsub.f32 %v3608, 0.13877685
        %v3613 = vsub.f32 %v3609, 0.13877685
        %v3614 = vmul.f32 %v3610, %v3602
        %v3615 = vmul.f32 %v3611, %v3603
        %v3616 = vmul.f32 %v3612, %v3604
        %v3617 = vmul.f32 %v3613, %v3605
        %v3618 = vadd.f32 %v3614, 0.19977711
        %v3619 = vadd.f32 %v3615, 0.19977711
        %v3620 = vadd.f32 %v3616, 0.19977711
        %v3621 = vadd.f32 %v3617, 0.19977711
        %v3622 = vmul.f32 %v3618, %v3602
        %v3623 = vmul.f32 %v3619, %v3603
        %v3624 = vmul.f32 %v3620, %v3604
        %v3625 = vmul.f32 %v3621, %v3605
        %v3626 = vsub.f32 %v3622, 0.3333295
        %v3627 = vsub.f32 %v3623, 0.3333295
        %v3628 = vsub.f32 %v3624, 0.3333295
        %v3629 = vsub.f32 %v3625, 0.3333295
        %v3630 = vmul.f32 %v3626, %v3602
        %v3631 = vmul.f32 %v3627, %v3603
        %v3632 = vmul.f32 %v3628, %v3604
        %v3633 = vmul.f32 %v3629, %v3605
        %v3634 = vmul.f32 %v3630, %v3590
        %v3635 = vmul.f32 %v3631, %v3591
        %v3636 = vmul.f32 %v3632, %v3592
        %v3637 = vmul.f32 %v3633, %v3593
        %v3638 = vadd.f32 %v3634, %v3590
        %v3639 = vadd.f32 %v3635, %v3591
        %v3640 = vadd.f32 %v3636, %v3592
        %v3641 = vadd.f32 %v3637, %v3593
        %v3642 = vadd.f32 %v3598, %v3638
        %v3643 = vadd.f32 %v3599, %v3639
        %v3644 = vadd.f32 %v3600, %v3640
        %v3645 = vadd.f32 %v3601, %v3641
        %vm3646 = vcmp.lt.f32.partialorder %v3442, 0.0
        %vm3647 = vcmp.lt.f32.partialorder %v3443, 0.0
        %vm3648 = vcmp.lt.f32.partialorder %v3444, 0.0
        %vm3649 = vcmp.lt.f32.partialorder %v3445, 0.0
        %v3650 = vsub.f32 0.0, %v3642
        %v3651 = vsub.f32 0.0, %v3643
        %v3652 = vsub.f32 0.0, %v3644
        %v3653 = vsub.f32 0.0, %v3645
        %v3654 = vsel %vm3646, %v3650, %v3642
        %v3655 = vsel %vm3647, %v3651, %v3643
        %v3656 = vsel %vm3648, %v3652, %v3644
        %v3657 = vsel %vm3649, %v3653, %v3645
        %v3658 = vmul.f32 %v3654, 0.15915494
        %v3659 = vmul.f32 %v3655, 0.15915494
        %v3660 = vmul.f32 %v3656, 0.15915494
        %v3661 = vmul.f32 %v3657, 0.15915494
        %3662 = vst [vmem:[%s180] sm:$0xff] %v3658
        %3663 = vst [vmem:[%s180 + $0x8] sm:$0xff] %v3659
        %3664 = vst [vmem:[%s180 + $0x10] sm:$0xff] %v3660
        %3665 = vst [vmem:[%s180 + $0x18] sm:$0xff] %v3661
        %s3666 = sand.u32 %s94, 1
        %s3667 = scalar_lea.sflag [#allocation5], %s3666
        %s3668 = sand.u32 %s94, 1
        %s3669 = smul.addr %s3668, 32
        %s3670 = scalar_lea.vmem [#allocation6], %s3669
        // Predicated region
        $region37: #{tpu_custom_call.1} parent=31 // pred_check
          %p3671 = pneg %p104
        $region38: #{tpu_custom_call.1} parent=31 // pred_check_branch
          %3673 = sbr.rel (%p3671) target = $region40
        $region39: #{tpu_custom_call.1} parent=31 // pred_region
          %3675 = vsyncadd %s3667, 0
          %s3676 = smul.addr %s18, 4
          %s3677 = smul.addr %s3676, 8
          %s3678 = scalar_lea.hbm %s3, %s3677
          %s3679 = sshll.u32 %s3670, 4
          %s3680 = int_to_ptr.vmem [resolvable:$true] %s3679
          %s3681 = sshll.u32 %s3678, 4
          %s3682 = int_to_ptr.hbm [resolvable:$true] %s3681
          %3687 = dma.vmem_to_hbm [thread:$0]  %s3680, 512, %s3682, %s3667, 256, 256, 16
        $region40: #{tpu_custom_call.1} parent=31 // pred_fallthru
          _
      $region32: #{tpu_custom_call.1} parent=5 // pred_fallthru
        _
      %p3688 = scmp.le.s32.totalorder 2, %s13
      // Predicated region
      $region41: #{tpu_custom_call.1} parent=5 // pred_check
        %p3689 = pneg %p3688
      $region42: #{tpu_custom_call.1} parent=5 // pred_check_branch
        %3691 = sbr.rel (%p3689) target = $region44
      $region43: #{tpu_custom_call.1} parent=5 // pred_region
        %s3692 = ssub.s32 %s13, 2
        // Predicated region
        $region45: #{tpu_custom_call.1} parent=43 // pred_check
          %p3693 = pneg %p110
        $region46: #{tpu_custom_call.1} parent=43 // pred_check_branch
          %3695 = sbr.rel (%p3693) target = $region48
        $region47: #{tpu_custom_call.1} parent=43 // pred_region
          %s3696 = sand.u32 %s95, 1
          %s3697 = scalar_lea.sflag [#allocation5], %s3696
          %s3698 = sand.u32 %s95, 1
          %s3699 = smul.addr %s3698, 32
          %s3700 = scalar_lea.vmem [#allocation6], %s3699
          %3702 = dma.done %s3697, 512
        $region48: #{tpu_custom_call.1} parent=43 // pred_fallthru
          _
      $region44: #{tpu_custom_call.1} parent=5 // pred_fallthru
        _
    $region6: #{tpu_custom_call.1} parent=1 // loop_footer
      %s17 = sadd.s32 1, %s13
    $region7: #{tpu_custom_call.1} parent=1 // loop_footer_branch
      %12 = sbr.rel target = $region3
    $region8: #{tpu_custom_call.1} parent=1 // loop_exit
      _
    %3703 = vsyncpa [#allocation4], 1
    %s3704 = scalar_lea.sflag [#allocation4], 1
    %3705 = vsyncpa %s3704, 1
    %3706 = vsyncpa [#allocation5], 1
    %s3707 = scalar_lea.sflag [#allocation5], 1
    %3708 = vsyncpa %s3707, 1

</llo_original>
